<compile_context>
chip_gen: v7x
topology: tpu7x:2x2x1
jax: 0.10.0
libtpu: 0.0.40
codegen_flags: <defaults>
</compile_context>

<pallas_src>
import jax
import jax.numpy as jnp
from jax.experimental import pallas as pl
from jax.experimental.pallas import tpu as pltpu


def _mlp_kernel(x_ref, w1_ref, b1_ref, w2_ref, b2_ref, w3_ref, b3_ref, o_ref):
    # Layers 1+2: recomputed each step (negligible FLOPs, hides under the
    # per-step W3 tile DMA), keeping the grid axis safely "parallel".
    x = x_ref[...]
    h1 = jnp.dot(x, w1_ref[...], preferred_element_type=jnp.float32)
    h1 = jnp.maximum(h1 + b1_ref[...], 0.0).astype(jnp.bfloat16)

    h2 = jnp.dot(h1, w2_ref[...], preferred_element_type=jnp.float32)
    h2 = jnp.maximum(h2 + b2_ref[...], 0.0).astype(jnp.bfloat16)

    # Per-step work: one (512, TILE_N) slice of W3 -> lane-dense (B, TILE_N) store.
    h3 = jnp.dot(h2, w3_ref[...], preferred_element_type=jnp.float32)
    o_ref[...] = jnp.maximum(h3 + b3_ref[...], 0.0).astype(o_ref.dtype)


def s2i_sid_forward(x, params):
    """x: (B, input_size_cell, input_size_frs) float32 (PyTorch layout).
    Returns (B, 1, 64, 64) float32."""
    w1, b1, w2, b2, w3, b3 = params
    B = x.shape[0]
    d_in = x.shape[1] * x.shape[2]
    d1 = w1.shape[1]
    d2 = w2.shape[1]
    d_out = w3.shape[1]  # 4096 (fixed by the 64x64 reshape)

    # Column tile for layer 3: streams W3 in lane-dense chunks.  Shapes that
    # are multiples of 128 give clean lane layout; other sizes still work
    # (full-array blocks) but with padded tiles.
    if d_out % 1024 == 0:
        tile_n = 1024
    elif d_out % 512 == 0:
        tile_n = 512
    else:
        tile_n = d_out
    n_steps = d_out // tile_n

    # nn.Flatten semantics (row-major); bf16 inputs for MXU + halved HBM bytes.
    x2d = x.reshape(B, d_in).astype(jnp.bfloat16)
    w1b = w1.astype(jnp.bfloat16)
    w2b = w2.astype(jnp.bfloat16)
    w3b = w3.astype(jnp.bfloat16)

    const0 = lambda j: (0, 0)
    cost = pl.CostEstimate(
        flops=2 * B * (d_in * d1 + d1 * d2 + d2 * d_out),
        transcendentals=0,
        bytes_accessed=(
            B * d_in * 2                                   # x (bf16)
            + (d_in * d1 + d1 * d2 + d2 * d_out) * 2       # weights (bf16)
            + (d1 + d2 + d_out) * 4                        # biases (f32)
            + B * d_out * 4                                # output (f32)
        ),
    )

    out2d = pl.pallas_call(
        _mlp_kernel,
        out_shape=jax.ShapeDtypeStruct((B, d_out), jnp.float32),
        grid=(n_steps,),
        in_specs=[
            pl.BlockSpec((B, d_in), const0),                # x        (resident)
            pl.BlockSpec((d_in, d1), const0),               # W1       (resident)
            pl.BlockSpec((1, d1), const0),                  # b1       (resident)
            pl.BlockSpec((d1, d2), const0),                 # W2       (resident)
            pl.BlockSpec((1, d2), const0),                  # b2       (resident)
            pl.BlockSpec((d2, tile_n), lambda j: (0, j)),   # W3 column tile
            pl.BlockSpec((1, tile_n), lambda j: (0, j)),    # b3 column tile
        ],
        out_specs=pl.BlockSpec((B, tile_n), lambda j: (0, j)),
        compiler_params=pltpu.CompilerParams(
            # Column tiles are independent -> shard across v7x's 2 TensorCores.
            dimension_semantics=("parallel",),
        ),
        cost_estimate=cost,
    )(x2d, w1b, b1, w2b, b2, w3b, b3)

    return out2d.reshape(-1, 1, 64, 64)


def init_params(key, input_size_cell, input_size_frs, output_size=4096):
    """Deterministic synthetic init.  Shapes mirror the PyTorch Linears,
    but weights are stored transposed: (in_features, out_features)."""
    d0 = input_size_cell * input_size_frs
    d1 = input_size_cell
    d2 = 512
    d3 = output_size
    ks = jax.random.split(key, 6)

    def lin(kw, kb, din, dout):
        # Uniform(-1/sqrt(din), 1/sqrt(din)) like torch.nn.Linear default.
        bound = 1.0 / jnp.sqrt(jnp.float32(din))
        w = jax.random.uniform(kw, (din, dout), jnp.float32, -bound, bound)
        b = jax.random.uniform(kb, (1, dout), jnp.float32, -bound, bound)
        return w, b

    w1, b1 = lin(ks[0], ks[1], d0, d1)
    w2, b2 = lin(ks[2], ks[3], d1, d2)
    w3, b3 = lin(ks[4], ks[5], d2, d3)
    return (w1, b1, w2, b2, w3, b3)


def _reference(x, params):
    """Pure-JAX reference matching the kernel's bf16-weight / f32-accumulate
    numerics (PyTorch forward semantics, mixed-precision variant)."""
    w1, b1, w2, b2, w3, b3 = params
    bf = jnp.bfloat16
    h = x.reshape(x.shape[0], -1).astype(bf)
    h = jnp.maximum(
        jnp.dot(h, w1.astype(bf), preferred_element_type=jnp.float32) + b1, 0.0
    ).astype(bf)
    h = jnp.maximum(
        jnp.dot(h, w2.astype(bf), preferred_element_type=jnp.float32) + b2, 0.0
    ).astype(bf)
    h = jnp.maximum(
        jnp.dot(h, w3.astype(bf), preferred_element_type=jnp.float32) + b3, 0.0
    )
    return h.reshape(-1, 1, 64, 64)


if __name__ == "__main__":
    # output_size is fixed at 4096 by the reshape to (-1, 1, 64, 64);
    # keep cell/frs small: flattened input dim = 128 * 8 = 1024.
    INPUT_SIZE_CELL = 128
    INPUT_SIZE_FRS = 8
    BATCH = 8

    key = jax.random.PRNGKey(0)
    kx, kp = jax.random.split(key)
    x = jax.random.normal(kx, (BATCH, INPUT_SIZE_CELL, INPUT_SIZE_FRS), jnp.float32)
    params = init_params(kp, INPUT_SIZE_CELL, INPUT_SIZE_FRS, output_size=4096)

    fwd = jax.jit(s2i_sid_forward)
    out = jax.block_until_ready(fwd(x, params))

    ref = _reference(x, params)
    assert out.shape == (BATCH, 1, 64, 64), out.shape
    assert jnp.allclose(out, ref, atol=1e-2, rtol=1e-2), float(
        jnp.max(jnp.abs(out - ref))
    )

    print("KERNEL_OK")
</pallas_src>

<mosaic_0001>
module attributes {stable_mosaic.version = 11 : i64} {
  func.func @_mlp_kernel(%arg0: i32, %arg1: memref<8x1024xbf16, #tpu.memory_space<vmem>>, %arg2: memref<1024x128xbf16, #tpu.memory_space<vmem>>, %arg3: memref<1x128xf32, #tpu.memory_space<vmem>>, %arg4: memref<128x512xbf16, #tpu.memory_space<vmem>>, %arg5: memref<1x512xf32, #tpu.memory_space<vmem>>, %arg6: memref<512x1024xbf16, #tpu.memory_space<vmem>>, %arg7: memref<1x1024xf32, #tpu.memory_space<vmem>>, %arg8: memref<8x1024xf32, #tpu.memory_space<vmem>>) attributes {dimension_semantics = [#tpu.dimension_semantics<parallel>], iteration_bounds = array<i64: 4>, scalar_prefetch = 0 : i64, scratch_operands = 0 : i64, tpu.core_type = #tpu.core_type<tc>, window_params = [{pipeline_mode = #tpu.pipeline_mode<synchronous>, transform_indices = @transform_0, window_bounds = array<i64: 8, 1024>}, {pipeline_mode = #tpu.pipeline_mode<synchronous>, transform_indices = @transform_1, window_bounds = array<i64: 1024, 128>}, {pipeline_mode = #tpu.pipeline_mode<synchronous>, transform_indices = @transform_2, window_bounds = array<i64: 1, 128>}, {pipeline_mode = #tpu.pipeline_mode<synchronous>, transform_indices = @transform_3, window_bounds = array<i64: 128, 512>}, {pipeline_mode = #tpu.pipeline_mode<synchronous>, transform_indices = @transform_4, window_bounds = array<i64: 1, 512>}, {transform_indices = @transform_5, window_bounds = array<i64: 512, 1024>}, {transform_indices = @transform_6, window_bounds = array<i64: 1, 1024>}, {transform_indices = @transform_7, window_bounds = array<i64: 8, 1024>}]} {
    %c0 = arith.constant 0 : index
    %c0_0 = arith.constant 0 : index
    %0 = vector.load %arg1[%c0, %c0_0] : memref<8x1024xbf16, #tpu.memory_space<vmem>>, vector<8x1024xbf16>
    %c0_1 = arith.constant 0 : index
    %c0_2 = arith.constant 0 : index
    %1 = vector.load %arg2[%c0_1, %c0_2] : memref<1024x128xbf16, #tpu.memory_space<vmem>>, vector<1024x128xbf16>
    %cst = arith.constant dense<0.000000e+00> : vector<8x128xf32>
    %2 = tpu.matmul %0, %1, %cst {dimension_numbers = #tpu.dot_dimension_numbers<[1], [0], [0], [1], [0, 0, 1, 1], [], []>} : vector<8x1024xbf16>, vector<1024x128xbf16>, vector<8x128xf32> -> vector<8x128xf32>
    %c0_3 = arith.constant 0 : index
    %c0_4 = arith.constant 0 : index
    %3 = vector.load %arg3[%c0_3, %c0_4] : memref<1x128xf32, #tpu.memory_space<vmem>>, vector<1x128xf32>
    %4 = vector.broadcast %3 : vector<1x128xf32> to vector<8x128xf32>
    %5 = arith.addf %2, %4 : vector<8x128xf32>
    %cst_5 = arith.constant 0.000000e+00 : f32
    %6 = vector.broadcast %cst_5 : f32 to vector<8x128xf32>
    %7 = arith.maximumf %5, %6 : vector<8x128xf32>
    %8 = arith.truncf %7 : vector<8x128xf32> to vector<8x128xbf16>
    %c0_6 = arith.constant 0 : index
    %c0_7 = arith.constant 0 : index
    %9 = vector.load %arg4[%c0_6, %c0_7] : memref<128x512xbf16, #tpu.memory_space<vmem>>, vector<128x512xbf16>
    %cst_8 = arith.constant dense<0.000000e+00> : vector<8x512xf32>
    %10 = tpu.matmul %8, %9, %cst_8 {dimension_numbers = #tpu.dot_dimension_numbers<[1], [0], [0], [1], [0, 0, 1, 1], [], []>} : vector<8x128xbf16>, vector<128x512xbf16>, vector<8x512xf32> -> vector<8x512xf32>
    %c0_9 = arith.constant 0 : index
    %c0_10 = arith.constant 0 : index
    %11 = vector.load %arg5[%c0_9, %c0_10] : memref<1x512xf32, #tpu.memory_space<vmem>>, vector<1x512xf32>
    %12 = vector.broadcast %11 : vector<1x512xf32> to vector<8x512xf32>
    %13 = arith.addf %10, %12 : vector<8x512xf32>
    %cst_11 = arith.constant 0.000000e+00 : f32
    %14 = vector.broadcast %cst_11 : f32 to vector<8x512xf32>
    %15 = arith.maximumf %13, %14 : vector<8x512xf32>
    %16 = arith.truncf %15 : vector<8x512xf32> to vector<8x512xbf16>
    %c0_12 = arith.constant 0 : index
    %c0_13 = arith.constant 0 : index
    %17 = vector.load %arg6[%c0_12, %c0_13] : memref<512x1024xbf16, #tpu.memory_space<vmem>>, vector<512x1024xbf16>
    %cst_14 = arith.constant dense<0.000000e+00> : vector<8x1024xf32>
    %18 = tpu.matmul %16, %17, %cst_14 {dimension_numbers = #tpu.dot_dimension_numbers<[1], [0], [0], [1], [0, 0, 1, 1], [], []>} : vector<8x512xbf16>, vector<512x1024xbf16>, vector<8x1024xf32> -> vector<8x1024xf32>
    %c0_15 = arith.constant 0 : index
    %c0_16 = arith.constant 0 : index
    %19 = vector.load %arg7[%c0_15, %c0_16] : memref<1x1024xf32, #tpu.memory_space<vmem>>, vector<1x1024xf32>
    %20 = vector.broadcast %19 : vector<1x1024xf32> to vector<8x1024xf32>
    %21 = arith.addf %18, %20 : vector<8x1024xf32>
    %cst_17 = arith.constant 0.000000e+00 : f32
    %22 = vector.broadcast %cst_17 : f32 to vector<8x1024xf32>
    %23 = arith.maximumf %21, %22 : vector<8x1024xf32>
    %c0_18 = arith.constant 0 : index
    %c0_19 = arith.constant 0 : index
    %24 = vector.load %arg8[%c0_18, %c0_19] : memref<8x1024xf32, #tpu.memory_space<vmem>>, vector<8x1024xf32>
    tpu.vector_store %arg8[%c0_18, %c0_19], %23 {strides = array<i32>} : memref<8x1024xf32, #tpu.memory_space<vmem>>, vector<8x1024xf32>,
    return
  }
  func.func @transform_0(%arg0: i32) -> (i32, i32) {
    %c0_i32 = arith.constant 0 : i32
    %c0_i32_0 = arith.constant 0 : i32
    %c0_i32_1 = arith.constant 0 : i32
    return %c0_i32, %c0_i32_0 : i32, i32
  }
  func.func @transform_1(%arg0: i32) -> (i32, i32) {
    %c0_i32 = arith.constant 0 : i32
    %c0_i32_0 = arith.constant 0 : i32
    %c0_i32_1 = arith.constant 0 : i32
    return %c0_i32, %c0_i32_0 : i32, i32
  }
  func.func @transform_2(%arg0: i32) -> (i32, i32) {
    %c0_i32 = arith.constant 0 : i32
    %c0_i32_0 = arith.constant 0 : i32
    %c0_i32_1 = arith.constant 0 : i32
    return %c0_i32, %c0_i32_0 : i32, i32
  }
  func.func @transform_3(%arg0: i32) -> (i32, i32) {
    %c0_i32 = arith.constant 0 : i32
    %c0_i32_0 = arith.constant 0 : i32
    %c0_i32_1 = arith.constant 0 : i32
    return %c0_i32, %c0_i32_0 : i32, i32
  }
  func.func @transform_4(%arg0: i32) -> (i32, i32) {
    %c0_i32 = arith.constant 0 : i32
    %c0_i32_0 = arith.constant 0 : i32
    %c0_i32_1 = arith.constant 0 : i32
    return %c0_i32, %c0_i32_0 : i32, i32
  }
  func.func @transform_5(%arg0: i32) -> (i32, i32) {
    %c0_i32 = arith.constant 0 : i32
    %c0_i32_0 = arith.constant 0 : i32
    return %c0_i32, %arg0 : i32, i32
  }
  func.func @transform_6(%arg0: i32) -> (i32, i32) {
    %c0_i32 = arith.constant 0 : i32
    %c0_i32_0 = arith.constant 0 : i32
    return %c0_i32, %arg0 : i32, i32
  }
  func.func @transform_7(%arg0: i32) -> (i32, i32) {
    %c0_i32 = arith.constant 0 : i32
    %c0_i32_0 = arith.constant 0 : i32
    return %c0_i32, %arg0 : i32, i32
  }
}

</mosaic_0001>

<llo_original>
// kernel: s2i_sid_forward.1
$region0: #{s2i_sid_forward.1}
  #allocation0 [shape = 'u32[]', space=smem, size = 0x4, offset = 0x4, fixed_abs, tag = 'smem constant byte address 0x4 - core index']
  #allocation1 [shape = 'u32[144,128]{1,0:T(1,128)}', space=vmem, size = 0x12000, scoped, tag = 'internal scratch']
  %s0 = inlined_call_operand.vmem [shape: bf16[8,1024], index: 0, kind: input, shape index: {}]
  %s1 = inlined_call_operand.vmem [shape: bf16[1024,128], index: 1, kind: input, shape index: {}]
  %s2 = inlined_call_operand.vmem [shape: f32[1,128], index: 2, kind: input, shape index: {}]
  %s3 = inlined_call_operand.vmem [shape: bf16[128,512], index: 3, kind: input, shape index: {}]
  %s4 = inlined_call_operand.vmem [shape: f32[1,512], index: 4, kind: input, shape index: {}]
  %s5 = inlined_call_operand.vmem [shape: bf16[512,4096], index: 5, kind: input, shape index: {}]
  %s6 = inlined_call_operand.vmem [shape: f32[1,4096], index: 6, kind: input, shape index: {}]
  %s7 = inlined_call_operand.vmem [shape: f32[8,4096], index: 7, kind: output, shape index: {}]
  %s8 = sld [smem:[#allocation0]]
  $region84: #{s2i_sid_forward.1} parent=0
    _
  %s10 = ssub.s32 1, %s8
  %s11 = scalar_select 0, %s10, %s8
  $region1: #{s2i_sid_forward.1} parent=0
    #allocation2 [shape = 'u8[2097152]{0}', space=vmem, size = 0x200000, scoped, tag = 'input window, operand 5']
    loop: start=0, step=1, limit=6
    $region2: #{s2i_sid_forward.1} parent=1 // loop_pre_header
      _
    $region3: #{s2i_sid_forward.1} parent=1 // loop_header
      %s13 = sphi 0, %s17
      %p14 = scmp.ge.s32.totalorder %s13, 6
      %s21 = sphi 0, %s21
      %s23 = sphi 0, %s21
      %s24 = sphi 0, %s23
      %s38 = sphi 0, %s24
      %s42 = sphi 0, %s42
      %s44 = sphi 0, %s42
      %s45 = sphi 0, %s44
      %s59 = sphi 0, %s45
      %s63 = sphi 0, %s63
      %s65 = sphi 0, %s63
      %s66 = sphi 0, %s65
      %s80 = sphi 0, %s66
      %s84 = sphi 0, %s84
      %s86 = sphi 0, %s84
      %s87 = sphi 0, %s86
      %s101 = sphi 0, %s87
      %s105 = sphi 0, %s105
      %s107 = sphi 0, %s105
      %s108 = sphi 0, %s107
      %s122 = sphi 0, %s108
      %s128 = sphi 0, %s130
      %s131 = sphi 0, %s128
      %s132 = sphi 0, %s131
      %s148 = sphi 0, %s132
      %s154 = sphi 0, %s156
      %s157 = sphi 0, %s154
      %s158 = sphi 0, %s157
      %s174 = sphi 0, %s158
      %s180 = sphi 0, %s182
      %s183 = sphi 0, %s180
      %s184 = sphi 0, %s183
      %s200 = sphi 0, %s184
    $region4: #{s2i_sid_forward.1} parent=1 // loop_header_branch
      %16 = sbr.rel (%p14) target = $region8
    $region5: #{s2i_sid_forward.1} parent=1 // loop_body
      %s18 = ssub.s32 %s13, 1
      %s19 = ssub.s32 %s13, 2
      %s20 = sadd.s32 %s13, 1
      %s22 = sadd.s32 %s21, 1
      %p25 = scmp.eq.s32.totalorder %s13, 3
      %p26 = scmp.ne.s32.totalorder %s21, %s23
      %p27 = scmp.eq.s32.totalorder %s13, 0
      %p28 = por %p26, %p27
      %p29 = scmp.ne.s32.totalorder %s21, %s23
      %p30 = scmp.eq.s32.totalorder %s18, 3
      %p31 = por %p29, %p30
      %p32 = scmp.ne.s32.totalorder %s23, %s24
      %p33 = scmp.eq.s32.totalorder %s18, 0
      %p34 = por %p32, %p33
      %p35 = scmp.ne.s32.totalorder %s23, %s24
      %p36 = scmp.eq.s32.totalorder %s19, 3
      %p37 = por %p35, %p36
      %p39 = scmp.ne.s32.totalorder %s24, %s38
      %p40 = scmp.eq.s32.totalorder %s19, 0
      %p41 = por %p39, %p40
      %s43 = sadd.s32 %s42, 1
      %p46 = scmp.eq.s32.totalorder %s13, 3
      %p47 = scmp.ne.s32.totalorder %s42, %s44
      %p48 = scmp.eq.s32.totalorder %s13, 0
      %p49 = por %p47, %p48
      %p50 = scmp.ne.s32.totalorder %s42, %s44
      %p51 = scmp.eq.s32.totalorder %s18, 3
      %p52 = por %p50, %p51
      %p53 = scmp.ne.s32.totalorder %s44, %s45
      %p54 = scmp.eq.s32.totalorder %s18, 0
      %p55 = por %p53, %p54
      %p56 = scmp.ne.s32.totalorder %s44, %s45
      %p57 = scmp.eq.s32.totalorder %s19, 3
      %p58 = por %p56, %p57
      %p60 = scmp.ne.s32.totalorder %s45, %s59
      %p61 = scmp.eq.s32.totalorder %s19, 0
      %p62 = por %p60, %p61
      %s64 = sadd.s32 %s63, 1
      %p67 = scmp.eq.s32.totalorder %s13, 3
      %p68 = scmp.ne.s32.totalorder %s63, %s65
      %p69 = scmp.eq.s32.totalorder %s13, 0
      %p70 = por %p68, %p69
      %p71 = scmp.ne.s32.totalorder %s63, %s65
      %p72 = scmp.eq.s32.totalorder %s18, 3
      %p73 = por %p71, %p72
      %p74 = scmp.ne.s32.totalorder %s65, %s66
      %p75 = scmp.eq.s32.totalorder %s18, 0
      %p76 = por %p74, %p75
      %p77 = scmp.ne.s32.totalorder %s65, %s66
      %p78 = scmp.eq.s32.totalorder %s19, 3
      %p79 = por %p77, %p78
      %p81 = scmp.ne.s32.totalorder %s66, %s80
      %p82 = scmp.eq.s32.totalorder %s19, 0
      %p83 = por %p81, %p82
      %s85 = sadd.s32 %s84, 1
      %p88 = scmp.eq.s32.totalorder %s13, 3
      %p89 = scmp.ne.s32.totalorder %s84, %s86
      %p90 = scmp.eq.s32.totalorder %s13, 0
      %p91 = por %p89, %p90
      %p92 = scmp.ne.s32.totalorder %s84, %s86
      %p93 = scmp.eq.s32.totalorder %s18, 3
      %p94 = por %p92, %p93
      %p95 = scmp.ne.s32.totalorder %s86, %s87
      %p96 = scmp.eq.s32.totalorder %s18, 0
      %p97 = por %p95, %p96
      %p98 = scmp.ne.s32.totalorder %s86, %s87
      %p99 = scmp.eq.s32.totalorder %s19, 3
      %p100 = por %p98, %p99
      %p102 = scmp.ne.s32.totalorder %s87, %s101
      %p103 = scmp.eq.s32.totalorder %s19, 0
      %p104 = por %p102, %p103
      %s106 = sadd.s32 %s105, 1
      %p109 = scmp.eq.s32.totalorder %s13, 3
      %p110 = scmp.ne.s32.totalorder %s105, %s107
      %p111 = scmp.eq.s32.totalorder %s13, 0
      %p112 = por %p110, %p111
      %p113 = scmp.ne.s32.totalorder %s105, %s107
      %p114 = scmp.eq.s32.totalorder %s18, 3
      %p115 = por %p113, %p114
      %p116 = scmp.ne.s32.totalorder %s107, %s108
      %p117 = scmp.eq.s32.totalorder %s18, 0
      %p118 = por %p116, %p117
      %p119 = scmp.ne.s32.totalorder %s107, %s108
      %p120 = scmp.eq.s32.totalorder %s19, 3
      %p121 = por %p119, %p120
      %p123 = scmp.ne.s32.totalorder %s108, %s122
      %p124 = scmp.eq.s32.totalorder %s19, 0
      %p125 = por %p123, %p124
      %s126 = ssub.s32 %s13, %s20
      %p127 = scmp.eq.s32.totalorder %s126, 0
      %s129 = sadd.s32 %s128, 1
      %s130 = scalar_select %p127, %s128, %s129
      %p133 = pneg %p127
      %p134 = scmp.eq.s32.totalorder %s13, 3
      %p135 = por %p133, %p134
      %p136 = scmp.ne.s32.totalorder %s128, %s131
      %p137 = scmp.eq.s32.totalorder %s13, 0
      %p138 = por %p136, %p137
      %p139 = scmp.ne.s32.totalorder %s128, %s131
      %p140 = scmp.eq.s32.totalorder %s18, 3
      %p141 = por %p139, %p140
      %p142 = scmp.ne.s32.totalorder %s131, %s132
      %p143 = scmp.eq.s32.totalorder %s18, 0
      %p144 = por %p142, %p143
      %p145 = scmp.ne.s32.totalorder %s131, %s132
      %p146 = scmp.eq.s32.totalorder %s19, 3
      %p147 = por %p145, %p146
      %p149 = scmp.ne.s32.totalorder %s132, %s148
      %p150 = scmp.eq.s32.totalorder %s19, 0
      %p151 = por %p149, %p150
      %s152 = ssub.s32 %s13, %s20
      %p153 = scmp.eq.s32.totalorder %s152, 0
      %s155 = sadd.s32 %s154, 1
      %s156 = scalar_select %p153, %s154, %s155
      %p159 = pneg %p153
      %p160 = scmp.eq.s32.totalorder %s13, 3
      %p161 = por %p159, %p160
      %p162 = scmp.ne.s32.totalorder %s154, %s157
      %p163 = scmp.eq.s32.totalorder %s13, 0
      %p164 = por %p162, %p163
      %p165 = scmp.ne.s32.totalorder %s154, %s157
      %p166 = scmp.eq.s32.totalorder %s18, 3
      %p167 = por %p165, %p166
      %p168 = scmp.ne.s32.totalorder %s157, %s158
      %p169 = scmp.eq.s32.totalorder %s18, 0
      %p170 = por %p168, %p169
      %p171 = scmp.ne.s32.totalorder %s157, %s158
      %p172 = scmp.eq.s32.totalorder %s19, 3
      %p173 = por %p171, %p172
      %p175 = scmp.ne.s32.totalorder %s158, %s174
      %p176 = scmp.eq.s32.totalorder %s19, 0
      %p177 = por %p175, %p176
      %s178 = ssub.s32 %s13, %s20
      %p179 = scmp.eq.s32.totalorder %s178, 0
      %s181 = sadd.s32 %s180, 1
      %s182 = scalar_select %p179, %s180, %s181
      %p185 = pneg %p179
      %p186 = scmp.eq.s32.totalorder %s13, 3
      %p187 = por %p185, %p186
      %p188 = scmp.ne.s32.totalorder %s180, %s183
      %p189 = scmp.eq.s32.totalorder %s13, 0
      %p190 = por %p188, %p189
      %p191 = scmp.ne.s32.totalorder %s180, %s183
      %p192 = scmp.eq.s32.totalorder %s18, 3
      %p193 = por %p191, %p192
      %p194 = scmp.ne.s32.totalorder %s183, %s184
      %p195 = scmp.eq.s32.totalorder %s18, 0
      %p196 = por %p194, %p195
      %p197 = scmp.ne.s32.totalorder %s183, %s184
      %p198 = scmp.eq.s32.totalorder %s19, 3
      %p199 = por %p197, %p198
      %p201 = scmp.ne.s32.totalorder %s184, %s200
      %p202 = scmp.eq.s32.totalorder %s19, 0
      %p203 = por %p201, %p202
      %p204 = scmp.le.s32.totalorder 1, %s13
      %p205 = scmp.lt.s32.totalorder %s13, 5
      %p206 = pnand %p204, %p205
      %p207 = pneg %p206
      // Predicated region
      $region9: #{s2i_sid_forward.1} parent=5 // pred_check
        _
      $region10: #{s2i_sid_forward.1} parent=5 // pred_check_branch
        %209 = sbr.rel (%p206) target = $region12
      $region11: #{s2i_sid_forward.1} parent=5 // pred_region
        %s210 = ssub.s32 %s13, 1
        // Predicated region
        $region13: #{s2i_sid_forward.1} parent=11 // pred_check
          %p211 = pneg %p34
        $region14: #{s2i_sid_forward.1} parent=11 // pred_check_branch
          %213 = sbr.rel (%p211) target = $region16
        $region15: #{s2i_sid_forward.1} parent=11 // pred_region
          _
        $region16: #{s2i_sid_forward.1} parent=11 // pred_fallthru
          _
        // Predicated region
        $region17: #{s2i_sid_forward.1} parent=11 // pred_check
          %p214 = pneg %p55
        $region18: #{s2i_sid_forward.1} parent=11 // pred_check_branch
          %216 = sbr.rel (%p214) target = $region20
        $region19: #{s2i_sid_forward.1} parent=11 // pred_region
          _
        $region20: #{s2i_sid_forward.1} parent=11 // pred_fallthru
          _
        // Predicated region
        $region21: #{s2i_sid_forward.1} parent=11 // pred_check
          %p217 = pneg %p76
        $region22: #{s2i_sid_forward.1} parent=11 // pred_check_branch
          %219 = sbr.rel (%p217) target = $region24
        $region23: #{s2i_sid_forward.1} parent=11 // pred_region
          _
        $region24: #{s2i_sid_forward.1} parent=11 // pred_fallthru
          _
        // Predicated region
        $region25: #{s2i_sid_forward.1} parent=11 // pred_check
          %p220 = pneg %p97
        $region26: #{s2i_sid_forward.1} parent=11 // pred_check_branch
          %222 = sbr.rel (%p220) target = $region28
        $region27: #{s2i_sid_forward.1} parent=11 // pred_region
          _
        $region28: #{s2i_sid_forward.1} parent=11 // pred_fallthru
          _
        // Predicated region
        $region29: #{s2i_sid_forward.1} parent=11 // pred_check
          %p223 = pneg %p118
        $region30: #{s2i_sid_forward.1} parent=11 // pred_check_branch
          %225 = sbr.rel (%p223) target = $region32
        $region31: #{s2i_sid_forward.1} parent=11 // pred_region
          _
        $region32: #{s2i_sid_forward.1} parent=11 // pred_fallthru
          _
      $region12: #{s2i_sid_forward.1} parent=5 // pred_fallthru
        _
      %p226 = scmp.lt.s32.totalorder %s13, 4
      // Predicated region
      $region33: #{s2i_sid_forward.1} parent=5 // pred_check
        %p227 = pneg %p226
      $region34: #{s2i_sid_forward.1} parent=5 // pred_check_branch
        %229 = sbr.rel (%p227) target = $region36
      $region35: #{s2i_sid_forward.1} parent=5 // pred_region
        // Predicated region
        $region37: #{s2i_sid_forward.1} parent=35 // pred_check
          %p230 = pneg %p138
        $region38: #{s2i_sid_forward.1} parent=35 // pred_check_branch
          %232 = sbr.rel (%p230) target = $region40
        $region39: #{s2i_sid_forward.1} parent=35 // pred_region
          %s233 = sand.u32 %s128, 1
          %s234 = sand.u32 %s128, 1
          %s235 = smul.addr %s234, 2048
          %s236 = scalar_lea.vmem [#allocation2], %s235
          %s237 = smul.u32 8, %s13
          %s238 = smul.addr %s237, 4
          %s239 = scalar_lea.vmem %s5, %s238
          // Predicated region
          $region41: #{s2i_sid_forward.1} parent=39 // pred_check
            _
          $region42: #{s2i_sid_forward.1} parent=39 // pred_check_branch
            %241 = sbr.rel (0) target = $region44
          $region43: #{s2i_sid_forward.1} parent=39 // pred_region
            // Predicated region
            $region45: #{s2i_sid_forward.1} parent=43 // pred_check
              _
            $region46: #{s2i_sid_forward.1} parent=43 // pred_check_branch
              %243 = sbr.rel (0) target = $region48
            $region47: #{s2i_sid_forward.1} parent=43 // pred_region
              loop: start=0, step=1, limit=1
              $region49: #{s2i_sid_forward.1} parent=47 // loop_pre_header
                _
              $region50: #{s2i_sid_forward.1} parent=47 // loop_header
                %s245 = sphi 0, %s249
                %p246 = scmp.ge.s32.totalorder %s245, 1
                %s250 = sphi %s239, %s239
                %s251 = sphi %s236, %s236
              $region51: #{s2i_sid_forward.1} parent=47 // loop_header_branch
                %248 = sbr.rel (%p246) target = $region55
              $region52: #{s2i_sid_forward.1} parent=47 // loop_body
                %v252 = vld [vmem:[%s250] sm:$0xff]
                %253 = vst [vmem:[%s251] sm:$0xff] %v252
                %v254 = vld [vmem:[%s250 + $0x8] sm:$0xff]
                %255 = vst [vmem:[%s251 + $0x8] sm:$0xff] %v254
                %v256 = vld [vmem:[%s250 + $0x10] sm:$0xff]
                %257 = vst [vmem:[%s251 + $0x10] sm:$0xff] %v256
                %v258 = vld [vmem:[%s250 + $0x18] sm:$0xff]
                %259 = vst [vmem:[%s251 + $0x18] sm:$0xff] %v258
                %v260 = vld [vmem:[%s250 + $0x80] sm:$0xff]
                %261 = vst [vmem:[%s251 + $0x20] sm:$0xff] %v260
                %v262 = vld [vmem:[%s250 + $0x88] sm:$0xff]
                %263 = vst [vmem:[%s251 + $0x28] sm:$0xff] %v262
                %v264 = vld [vmem:[%s250 + $0x90] sm:$0xff]
                %265 = vst [vmem:[%s251 + $0x30] sm:$0xff] %v264
                %v266 = vld [vmem:[%s250 + $0x98] sm:$0xff]
                %267 = vst [vmem:[%s251 + $0x38] sm:$0xff] %v266
                %v268 = vld [vmem:[%s250 + $0x100] sm:$0xff]
                %269 = vst [vmem:[%s251 + $0x40] sm:$0xff] %v268
                %v270 = vld [vmem:[%s250 + $0x108] sm:$0xff]
                %271 = vst [vmem:[%s251 + $0x48] sm:$0xff] %v270
                %v272 = vld [vmem:[%s250 + $0x110] sm:$0xff]
                %273 = vst [vmem:[%s251 + $0x50] sm:$0xff] %v272
                %v274 = vld [vmem:[%s250 + $0x118] sm:$0xff]
                %275 = vst [vmem:[%s251 + $0x58] sm:$0xff] %v274
                %v276 = vld [vmem:[%s250 + $0x180] sm:$0xff]
                %277 = vst [vmem:[%s251 + $0x60] sm:$0xff] %v276
                %v278 = vld [vmem:[%s250 + $0x188] sm:$0xff]
                %279 = vst [vmem:[%s251 + $0x68] sm:$0xff] %v278
                %v280 = vld [vmem:[%s250 + $0x190] sm:$0xff]
                %281 = vst [vmem:[%s251 + $0x70] sm:$0xff] %v280
                %v282 = vld [vmem:[%s250 + $0x198] sm:$0xff]
                %283 = vst [vmem:[%s251 + $0x78] sm:$0xff] %v282
                %v284 = vld [vmem:[%s250 + $0x200] sm:$0xff]
                %285 = vst [vmem:[%s251 + $0x80] sm:$0xff] %v284
                %v286 = vld [vmem:[%s250 + $0x208] sm:$0xff]
                %287 = vst [vmem:[%s251 + $0x88] sm:$0xff] %v286
                %v288 = vld [vmem:[%s250 + $0x210] sm:$0xff]
                %289 = vst [vmem:[%s251 + $0x90] sm:$0xff] %v288
                %v290 = vld [vmem:[%s250 + $0x218] sm:$0xff]
                %291 = vst [vmem:[%s251 + $0x98] sm:$0xff] %v290
                %v292 = vld [vmem:[%s250 + $0x280] sm:$0xff]
                %293 = vst [vmem:[%s251 + $0xa0] sm:$0xff] %v292
                %v294 = vld [vmem:[%s250 + $0x288] sm:$0xff]
                %295 = vst [vmem:[%s251 + $0xa8] sm:$0xff] %v294
                %v296 = vld [vmem:[%s250 + $0x290] sm:$0xff]
                %297 = vst [vmem:[%s251 + $0xb0] sm:$0xff] %v296
                %v298 = vld [vmem:[%s250 + $0x298] sm:$0xff]
                %299 = vst [vmem:[%s251 + $0xb8] sm:$0xff] %v298
                %v300 = vld [vmem:[%s250 + $0x300] sm:$0xff]
                %301 = vst [vmem:[%s251 + $0xc0] sm:$0xff] %v300
                %v302 = vld [vmem:[%s250 + $0x308] sm:$0xff]
                %303 = vst [vmem:[%s251 + $0xc8] sm:$0xff] %v302
                %v304 = vld [vmem:[%s250 + $0x310] sm:$0xff]
                %305 = vst [vmem:[%s251 + $0xd0] sm:$0xff] %v304
                %v306 = vld [vmem:[%s250 + $0x318] sm:$0xff]
                %307 = vst [vmem:[%s251 + $0xd8] sm:$0xff] %v306
                %v308 = vld [vmem:[%s250 + $0x380] sm:$0xff]
                %309 = vst [vmem:[%s251 + $0xe0] sm:$0xff] %v308
                %v310 = vld [vmem:[%s250 + $0x388] sm:$0xff]
                %311 = vst [vmem:[%s251 + $0xe8] sm:$0xff] %v310
                %v312 = vld [vmem:[%s250 + $0x390] sm:$0xff]
                %313 = vst [vmem:[%s251 + $0xf0] sm:$0xff] %v312
                %v314 = vld [vmem:[%s250 + $0x398] sm:$0xff]
                %315 = vst [vmem:[%s251 + $0xf8] sm:$0xff] %v314
                %v316 = vld [vmem:[%s250 + $0x400] sm:$0xff]
                %317 = vst [vmem:[%s251 + $0x100] sm:$0xff] %v316
                %v318 = vld [vmem:[%s250 + $0x408] sm:$0xff]
                %319 = vst [vmem:[%s251 + $0x108] sm:$0xff] %v318
                %v320 = vld [vmem:[%s250 + $0x410] sm:$0xff]
                %321 = vst [vmem:[%s251 + $0x110] sm:$0xff] %v320
                %v322 = vld [vmem:[%s250 + $0x418] sm:$0xff]
                %323 = vst [vmem:[%s251 + $0x118] sm:$0xff] %v322
                %v324 = vld [vmem:[%s250 + $0x480] sm:$0xff]
                %325 = vst [vmem:[%s251 + $0x120] sm:$0xff] %v324
                %v326 = vld [vmem:[%s250 + $0x488] sm:$0xff]
                %327 = vst [vmem:[%s251 + $0x128] sm:$0xff] %v326
                %v328 = vld [vmem:[%s250 + $0x490] sm:$0xff]
                %329 = vst [vmem:[%s251 + $0x130] sm:$0xff] %v328
                %v330 = vld [vmem:[%s250 + $0x498] sm:$0xff]
                %331 = vst [vmem:[%s251 + $0x138] sm:$0xff] %v330
                %v332 = vld [vmem:[%s250 + $0x500] sm:$0xff]
                %333 = vst [vmem:[%s251 + $0x140] sm:$0xff] %v332
                %v334 = vld [vmem:[%s250 + $0x508] sm:$0xff]
                %335 = vst [vmem:[%s251 + $0x148] sm:$0xff] %v334
                %v336 = vld [vmem:[%s250 + $0x510] sm:$0xff]
                %337 = vst [vmem:[%s251 + $0x150] sm:$0xff] %v336
                %v338 = vld [vmem:[%s250 + $0x518] sm:$0xff]
                %339 = vst [vmem:[%s251 + $0x158] sm:$0xff] %v338
                %v340 = vld [vmem:[%s250 + $0x580] sm:$0xff]
                %341 = vst [vmem:[%s251 + $0x160] sm:$0xff] %v340
                %v342 = vld [vmem:[%s250 + $0x588] sm:$0xff]
                %343 = vst [vmem:[%s251 + $0x168] sm:$0xff] %v342
                %v344 = vld [vmem:[%s250 + $0x590] sm:$0xff]
                %345 = vst [vmem:[%s251 + $0x170] sm:$0xff] %v344
                %v346 = vld [vmem:[%s250 + $0x598] sm:$0xff]
                %347 = vst [vmem:[%s251 + $0x178] sm:$0xff] %v346
                %v348 = vld [vmem:[%s250 + $0x600] sm:$0xff]
                %349 = vst [vmem:[%s251 + $0x180] sm:$0xff] %v348
                %v350 = vld [vmem:[%s250 + $0x608] sm:$0xff]
                %351 = vst [vmem:[%s251 + $0x188] sm:$0xff] %v350
                %v352 = vld [vmem:[%s250 + $0x610] sm:$0xff]
                %353 = vst [vmem:[%s251 + $0x190] sm:$0xff] %v352
                %v354 = vld [vmem:[%s250 + $0x618] sm:$0xff]
                %355 = vst [vmem:[%s251 + $0x198] sm:$0xff] %v354
                %v356 = vld [vmem:[%s250 + $0x680] sm:$0xff]
                %357 = vst [vmem:[%s251 + $0x1a0] sm:$0xff] %v356
                %v358 = vld [vmem:[%s250 + $0x688] sm:$0xff]
                %359 = vst [vmem:[%s251 + $0x1a8] sm:$0xff] %v358
                %v360 = vld [vmem:[%s250 + $0x690] sm:$0xff]
                %361 = vst [vmem:[%s251 + $0x1b0] sm:$0xff] %v360
                %v362 = vld [vmem:[%s250 + $0x698] sm:$0xff]
                %363 = vst [vmem:[%s251 + $0x1b8] sm:$0xff] %v362
                %v364 = vld [vmem:[%s250 + $0x700] sm:$0xff]
                %365 = vst [vmem:[%s251 + $0x1c0] sm:$0xff] %v364
                %v366 = vld [vmem:[%s250 + $0x708] sm:$0xff]
                %367 = vst [vmem:[%s251 + $0x1c8] sm:$0xff] %v366
                %v368 = vld [vmem:[%s250 + $0x710] sm:$0xff]
                %369 = vst [vmem:[%s251 + $0x1d0] sm:$0xff] %v368
                %v370 = vld [vmem:[%s250 + $0x718] sm:$0xff]
                %371 = vst [vmem:[%s251 + $0x1d8] sm:$0xff] %v370
                %v372 = vld [vmem:[%s250 + $0x780] sm:$0xff]
                %373 = vst [vmem:[%s251 + $0x1e0] sm:$0xff] %v372
                %v374 = vld [vmem:[%s250 + $0x788] sm:$0xff]
                %375 = vst [vmem:[%s251 + $0x1e8] sm:$0xff] %v374
                %v376 = vld [vmem:[%s250 + $0x790] sm:$0xff]
                %377 = vst [vmem:[%s251 + $0x1f0] sm:$0xff] %v376
                %v378 = vld [vmem:[%s250 + $0x798] sm:$0xff]
                %379 = vst [vmem:[%s251 + $0x1f8] sm:$0xff] %v378
                %v380 = vld [vmem:[%s250 + $0x800] sm:$0xff]
                %381 = vst [vmem:[%s251 + $0x200] sm:$0xff] %v380
                %v382 = vld [vmem:[%s250 + $0x808] sm:$0xff]
                %383 = vst [vmem:[%s251 + $0x208] sm:$0xff] %v382
                %v384 = vld [vmem:[%s250 + $0x810] sm:$0xff]
                %385 = vst [vmem:[%s251 + $0x210] sm:$0xff] %v384
                %v386 = vld [vmem:[%s250 + $0x818] sm:$0xff]
                %387 = vst [vmem:[%s251 + $0x218] sm:$0xff] %v386
                %v388 = vld [vmem:[%s250 + $0x880] sm:$0xff]
                %389 = vst [vmem:[%s251 + $0x220] sm:$0xff] %v388
                %v390 = vld [vmem:[%s250 + $0x888] sm:$0xff]
                %391 = vst [vmem:[%s251 + $0x228] sm:$0xff] %v390
                %v392 = vld [vmem:[%s250 + $0x890] sm:$0xff]
                %393 = vst [vmem:[%s251 + $0x230] sm:$0xff] %v392
                %v394 = vld [vmem:[%s250 + $0x898] sm:$0xff]
                %395 = vst [vmem:[%s251 + $0x238] sm:$0xff] %v394
                %v396 = vld [vmem:[%s250 + $0x900] sm:$0xff]
                %397 = vst [vmem:[%s251 + $0x240] sm:$0xff] %v396
                %v398 = vld [vmem:[%s250 + $0x908] sm:$0xff]
                %399 = vst [vmem:[%s251 + $0x248] sm:$0xff] %v398
                %v400 = vld [vmem:[%s250 + $0x910] sm:$0xff]
                %401 = vst [vmem:[%s251 + $0x250] sm:$0xff] %v400
                %v402 = vld [vmem:[%s250 + $0x918] sm:$0xff]
                %403 = vst [vmem:[%s251 + $0x258] sm:$0xff] %v402
                %v404 = vld [vmem:[%s250 + $0x980] sm:$0xff]
                %405 = vst [vmem:[%s251 + $0x260] sm:$0xff] %v404
                %v406 = vld [vmem:[%s250 + $0x988] sm:$0xff]
                %407 = vst [vmem:[%s251 + $0x268] sm:$0xff] %v406
                %v408 = vld [vmem:[%s250 + $0x990] sm:$0xff]
                %409 = vst [vmem:[%s251 + $0x270] sm:$0xff] %v408
                %v410 = vld [vmem:[%s250 + $0x998] sm:$0xff]
                %411 = vst [vmem:[%s251 + $0x278] sm:$0xff] %v410
                %v412 = vld [vmem:[%s250 + $0xa00] sm:$0xff]
                %413 = vst [vmem:[%s251 + $0x280] sm:$0xff] %v412
                %v414 = vld [vmem:[%s250 + $0xa08] sm:$0xff]
                %415 = vst [vmem:[%s251 + $0x288] sm:$0xff] %v414
                %v416 = vld [vmem:[%s250 + $0xa10] sm:$0xff]
                %417 = vst [vmem:[%s251 + $0x290] sm:$0xff] %v416
                %v418 = vld [vmem:[%s250 + $0xa18] sm:$0xff]
                %419 = vst [vmem:[%s251 + $0x298] sm:$0xff] %v418
                %v420 = vld [vmem:[%s250 + $0xa80] sm:$0xff]
                %421 = vst [vmem:[%s251 + $0x2a0] sm:$0xff] %v420
                %v422 = vld [vmem:[%s250 + $0xa88] sm:$0xff]
                %423 = vst [vmem:[%s251 + $0x2a8] sm:$0xff] %v422
                %v424 = vld [vmem:[%s250 + $0xa90] sm:$0xff]
                %425 = vst [vmem:[%s251 + $0x2b0] sm:$0xff] %v424
                %v426 = vld [vmem:[%s250 + $0xa98] sm:$0xff]
                %427 = vst [vmem:[%s251 + $0x2b8] sm:$0xff] %v426
                %v428 = vld [vmem:[%s250 + $0xb00] sm:$0xff]
                %429 = vst [vmem:[%s251 + $0x2c0] sm:$0xff] %v428
                %v430 = vld [vmem:[%s250 + $0xb08] sm:$0xff]
                %431 = vst [vmem:[%s251 + $0x2c8] sm:$0xff] %v430
                %v432 = vld [vmem:[%s250 + $0xb10] sm:$0xff]
                %433 = vst [vmem:[%s251 + $0x2d0] sm:$0xff] %v432
                %v434 = vld [vmem:[%s250 + $0xb18] sm:$0xff]
                %435 = vst [vmem:[%s251 + $0x2d8] sm:$0xff] %v434
                %v436 = vld [vmem:[%s250 + $0xb80] sm:$0xff]
                %437 = vst [vmem:[%s251 + $0x2e0] sm:$0xff] %v436
                %v438 = vld [vmem:[%s250 + $0xb88] sm:$0xff]
                %439 = vst [vmem:[%s251 + $0x2e8] sm:$0xff] %v438
                %v440 = vld [vmem:[%s250 + $0xb90] sm:$0xff]
                %441 = vst [vmem:[%s251 + $0x2f0] sm:$0xff] %v440
                %v442 = vld [vmem:[%s250 + $0xb98] sm:$0xff]
                %443 = vst [vmem:[%s251 + $0x2f8] sm:$0xff] %v442
                %v444 = vld [vmem:[%s250 + $0xc00] sm:$0xff]
                %445 = vst [vmem:[%s251 + $0x300] sm:$0xff] %v444
                %v446 = vld [vmem:[%s250 + $0xc08] sm:$0xff]
                %447 = vst [vmem:[%s251 + $0x308] sm:$0xff] %v446
                %v448 = vld [vmem:[%s250 + $0xc10] sm:$0xff]
                %449 = vst [vmem:[%s251 + $0x310] sm:$0xff] %v448
                %v450 = vld [vmem:[%s250 + $0xc18] sm:$0xff]
                %451 = vst [vmem:[%s251 + $0x318] sm:$0xff] %v450
                %v452 = vld [vmem:[%s250 + $0xc80] sm:$0xff]
                %453 = vst [vmem:[%s251 + $0x320] sm:$0xff] %v452
                %v454 = vld [vmem:[%s250 + $0xc88] sm:$0xff]
                %455 = vst [vmem:[%s251 + $0x328] sm:$0xff] %v454
                %v456 = vld [vmem:[%s250 + $0xc90] sm:$0xff]
                %457 = vst [vmem:[%s251 + $0x330] sm:$0xff] %v456
                %v458 = vld [vmem:[%s250 + $0xc98] sm:$0xff]
                %459 = vst [vmem:[%s251 + $0x338] sm:$0xff] %v458
                %v460 = vld [vmem:[%s250 + $0xd00] sm:$0xff]
                %461 = vst [vmem:[%s251 + $0x340] sm:$0xff] %v460
                %v462 = vld [vmem:[%s250 + $0xd08] sm:$0xff]
                %463 = vst [vmem:[%s251 + $0x348] sm:$0xff] %v462
                %v464 = vld [vmem:[%s250 + $0xd10] sm:$0xff]
                %465 = vst [vmem:[%s251 + $0x350] sm:$0xff] %v464
                %v466 = vld [vmem:[%s250 + $0xd18] sm:$0xff]
                %467 = vst [vmem:[%s251 + $0x358] sm:$0xff] %v466
                %v468 = vld [vmem:[%s250 + $0xd80] sm:$0xff]
                %469 = vst [vmem:[%s251 + $0x360] sm:$0xff] %v468
                %v470 = vld [vmem:[%s250 + $0xd88] sm:$0xff]
                %471 = vst [vmem:[%s251 + $0x368] sm:$0xff] %v470
                %v472 = vld [vmem:[%s250 + $0xd90] sm:$0xff]
                %473 = vst [vmem:[%s251 + $0x370] sm:$0xff] %v472
                %v474 = vld [vmem:[%s250 + $0xd98] sm:$0xff]
                %475 = vst [vmem:[%s251 + $0x378] sm:$0xff] %v474
                %v476 = vld [vmem:[%s250 + $0xe00] sm:$0xff]
                %477 = vst [vmem:[%s251 + $0x380] sm:$0xff] %v476
                %v478 = vld [vmem:[%s250 + $0xe08] sm:$0xff]
                %479 = vst [vmem:[%s251 + $0x388] sm:$0xff] %v478
                %v480 = vld [vmem:[%s250 + $0xe10] sm:$0xff]
                %481 = vst [vmem:[%s251 + $0x390] sm:$0xff] %v480
                %v482 = vld [vmem:[%s250 + $0xe18] sm:$0xff]
                %483 = vst [vmem:[%s251 + $0x398] sm:$0xff] %v482
                %v484 = vld [vmem:[%s250 + $0xe80] sm:$0xff]
                %485 = vst [vmem:[%s251 + $0x3a0] sm:$0xff] %v484
                %v486 = vld [vmem:[%s250 + $0xe88] sm:$0xff]
                %487 = vst [vmem:[%s251 + $0x3a8] sm:$0xff] %v486
                %v488 = vld [vmem:[%s250 + $0xe90] sm:$0xff]
                %489 = vst [vmem:[%s251 + $0x3b0] sm:$0xff] %v488
                %v490 = vld [vmem:[%s250 + $0xe98] sm:$0xff]
                %491 = vst [vmem:[%s251 + $0x3b8] sm:$0xff] %v490
                %v492 = vld [vmem:[%s250 + $0xf00] sm:$0xff]
                %493 = vst [vmem:[%s251 + $0x3c0] sm:$0xff] %v492
                %v494 = vld [vmem:[%s250 + $0xf08] sm:$0xff]
                %495 = vst [vmem:[%s251 + $0x3c8] sm:$0xff] %v494
                %v496 = vld [vmem:[%s250 + $0xf10] sm:$0xff]
                %497 = vst [vmem:[%s251 + $0x3d0] sm:$0xff] %v496
                %v498 = vld [vmem:[%s250 + $0xf18] sm:$0xff]
                %499 = vst [vmem:[%s251 + $0x3d8] sm:$0xff] %v498
                %v500 = vld [vmem:[%s250 + $0xf80] sm:$0xff]
                %501 = vst [vmem:[%s251 + $0x3e0] sm:$0xff] %v500
                %v502 = vld [vmem:[%s250 + $0xf88] sm:$0xff]
                %503 = vst [vmem:[%s251 + $0x3e8] sm:$0xff] %v502
                %v504 = vld [vmem:[%s250 + $0xf90] sm:$0xff]
                %505 = vst [vmem:[%s251 + $0x3f0] sm:$0xff] %v504
                %v506 = vld [vmem:[%s250 + $0xf98] sm:$0xff]
                %507 = vst [vmem:[%s251 + $0x3f8] sm:$0xff] %v506
                %v508 = vld [vmem:[%s250 + $0x1000] sm:$0xff]
                %509 = vst [vmem:[%s251 + $0x400] sm:$0xff] %v508
                %v510 = vld [vmem:[%s250 + $0x1008] sm:$0xff]
                %511 = vst [vmem:[%s251 + $0x408] sm:$0xff] %v510
                %v512 = vld [vmem:[%s250 + $0x1010] sm:$0xff]
                %513 = vst [vmem:[%s251 + $0x410] sm:$0xff] %v512
                %v514 = vld [vmem:[%s250 + $0x1018] sm:$0xff]
                %515 = vst [vmem:[%s251 + $0x418] sm:$0xff] %v514
                %v516 = vld [vmem:[%s250 + $0x1080] sm:$0xff]
                %517 = vst [vmem:[%s251 + $0x420] sm:$0xff] %v516
                %v518 = vld [vmem:[%s250 + $0x1088] sm:$0xff]
                %519 = vst [vmem:[%s251 + $0x428] sm:$0xff] %v518
                %v520 = vld [vmem:[%s250 + $0x1090] sm:$0xff]
                %521 = vst [vmem:[%s251 + $0x430] sm:$0xff] %v520
                %v522 = vld [vmem:[%s250 + $0x1098] sm:$0xff]
                %523 = vst [vmem:[%s251 + $0x438] sm:$0xff] %v522
                %v524 = vld [vmem:[%s250 + $0x1100] sm:$0xff]
                %525 = vst [vmem:[%s251 + $0x440] sm:$0xff] %v524
                %v526 = vld [vmem:[%s250 + $0x1108] sm:$0xff]
                %527 = vst [vmem:[%s251 + $0x448] sm:$0xff] %v526
                %v528 = vld [vmem:[%s250 + $0x1110] sm:$0xff]
                %529 = vst [vmem:[%s251 + $0x450] sm:$0xff] %v528
                %v530 = vld [vmem:[%s250 + $0x1118] sm:$0xff]
                %531 = vst [vmem:[%s251 + $0x458] sm:$0xff] %v530
                %v532 = vld [vmem:[%s250 + $0x1180] sm:$0xff]
                %533 = vst [vmem:[%s251 + $0x460] sm:$0xff] %v532
                %v534 = vld [vmem:[%s250 + $0x1188] sm:$0xff]
                %535 = vst [vmem:[%s251 + $0x468] sm:$0xff] %v534
                %v536 = vld [vmem:[%s250 + $0x1190] sm:$0xff]
                %537 = vst [vmem:[%s251 + $0x470] sm:$0xff] %v536
                %v538 = vld [vmem:[%s250 + $0x1198] sm:$0xff]
                %539 = vst [vmem:[%s251 + $0x478] sm:$0xff] %v538
                %v540 = vld [vmem:[%s250 + $0x1200] sm:$0xff]
                %541 = vst [vmem:[%s251 + $0x480] sm:$0xff] %v540
                %v542 = vld [vmem:[%s250 + $0x1208] sm:$0xff]
                %543 = vst [vmem:[%s251 + $0x488] sm:$0xff] %v542
                %v544 = vld [vmem:[%s250 + $0x1210] sm:$0xff]
                %545 = vst [vmem:[%s251 + $0x490] sm:$0xff] %v544
                %v546 = vld [vmem:[%s250 + $0x1218] sm:$0xff]
                %547 = vst [vmem:[%s251 + $0x498] sm:$0xff] %v546
                %v548 = vld [vmem:[%s250 + $0x1280] sm:$0xff]
                %549 = vst [vmem:[%s251 + $0x4a0] sm:$0xff] %v548
                %v550 = vld [vmem:[%s250 + $0x1288] sm:$0xff]
                %551 = vst [vmem:[%s251 + $0x4a8] sm:$0xff] %v550
                %v552 = vld [vmem:[%s250 + $0x1290] sm:$0xff]
                %553 = vst [vmem:[%s251 + $0x4b0] sm:$0xff] %v552
                %v554 = vld [vmem:[%s250 + $0x1298] sm:$0xff]
                %555 = vst [vmem:[%s251 + $0x4b8] sm:$0xff] %v554
                %v556 = vld [vmem:[%s250 + $0x1300] sm:$0xff]
                %557 = vst [vmem:[%s251 + $0x4c0] sm:$0xff] %v556
                %v558 = vld [vmem:[%s250 + $0x1308] sm:$0xff]
                %559 = vst [vmem:[%s251 + $0x4c8] sm:$0xff] %v558
                %v560 = vld [vmem:[%s250 + $0x1310] sm:$0xff]
                %561 = vst [vmem:[%s251 + $0x4d0] sm:$0xff] %v560
                %v562 = vld [vmem:[%s250 + $0x1318] sm:$0xff]
                %563 = vst [vmem:[%s251 + $0x4d8] sm:$0xff] %v562
                %v564 = vld [vmem:[%s250 + $0x1380] sm:$0xff]
                %565 = vst [vmem:[%s251 + $0x4e0] sm:$0xff] %v564
                %v566 = vld [vmem:[%s250 + $0x1388] sm:$0xff]
                %567 = vst [vmem:[%s251 + $0x4e8] sm:$0xff] %v566
                %v568 = vld [vmem:[%s250 + $0x1390] sm:$0xff]
                %569 = vst [vmem:[%s251 + $0x4f0] sm:$0xff] %v568
                %v570 = vld [vmem:[%s250 + $0x1398] sm:$0xff]
                %571 = vst [vmem:[%s251 + $0x4f8] sm:$0xff] %v570
                %v572 = vld [vmem:[%s250 + $0x1400] sm:$0xff]
                %573 = vst [vmem:[%s251 + $0x500] sm:$0xff] %v572
                %v574 = vld [vmem:[%s250 + $0x1408] sm:$0xff]
                %575 = vst [vmem:[%s251 + $0x508] sm:$0xff] %v574
                %v576 = vld [vmem:[%s250 + $0x1410] sm:$0xff]
                %577 = vst [vmem:[%s251 + $0x510] sm:$0xff] %v576
                %v578 = vld [vmem:[%s250 + $0x1418] sm:$0xff]
                %579 = vst [vmem:[%s251 + $0x518] sm:$0xff] %v578
                %v580 = vld [vmem:[%s250 + $0x1480] sm:$0xff]
                %581 = vst [vmem:[%s251 + $0x520] sm:$0xff] %v580
                %v582 = vld [vmem:[%s250 + $0x1488] sm:$0xff]
                %583 = vst [vmem:[%s251 + $0x528] sm:$0xff] %v582
                %v584 = vld [vmem:[%s250 + $0x1490] sm:$0xff]
                %585 = vst [vmem:[%s251 + $0x530] sm:$0xff] %v584
                %v586 = vld [vmem:[%s250 + $0x1498] sm:$0xff]
                %587 = vst [vmem:[%s251 + $0x538] sm:$0xff] %v586
                %v588 = vld [vmem:[%s250 + $0x1500] sm:$0xff]
                %589 = vst [vmem:[%s251 + $0x540] sm:$0xff] %v588
                %v590 = vld [vmem:[%s250 + $0x1508] sm:$0xff]
                %591 = vst [vmem:[%s251 + $0x548] sm:$0xff] %v590
                %v592 = vld [vmem:[%s250 + $0x1510] sm:$0xff]
                %593 = vst [vmem:[%s251 + $0x550] sm:$0xff] %v592
                %v594 = vld [vmem:[%s250 + $0x1518] sm:$0xff]
                %595 = vst [vmem:[%s251 + $0x558] sm:$0xff] %v594
                %v596 = vld [vmem:[%s250 + $0x1580] sm:$0xff]
                %597 = vst [vmem:[%s251 + $0x560] sm:$0xff] %v596
                %v598 = vld [vmem:[%s250 + $0x1588] sm:$0xff]
                %599 = vst [vmem:[%s251 + $0x568] sm:$0xff] %v598
                %v600 = vld [vmem:[%s250 + $0x1590] sm:$0xff]
                %601 = vst [vmem:[%s251 + $0x570] sm:$0xff] %v600
                %v602 = vld [vmem:[%s250 + $0x1598] sm:$0xff]
                %603 = vst [vmem:[%s251 + $0x578] sm:$0xff] %v602
                %v604 = vld [vmem:[%s250 + $0x1600] sm:$0xff]
                %605 = vst [vmem:[%s251 + $0x580] sm:$0xff] %v604
                %v606 = vld [vmem:[%s250 + $0x1608] sm:$0xff]
                %607 = vst [vmem:[%s251 + $0x588] sm:$0xff] %v606
                %v608 = vld [vmem:[%s250 + $0x1610] sm:$0xff]
                %609 = vst [vmem:[%s251 + $0x590] sm:$0xff] %v608
                %v610 = vld [vmem:[%s250 + $0x1618] sm:$0xff]
                %611 = vst [vmem:[%s251 + $0x598] sm:$0xff] %v610
                %v612 = vld [vmem:[%s250 + $0x1680] sm:$0xff]
                %613 = vst [vmem:[%s251 + $0x5a0] sm:$0xff] %v612
                %v614 = vld [vmem:[%s250 + $0x1688] sm:$0xff]
                %615 = vst [vmem:[%s251 + $0x5a8] sm:$0xff] %v614
                %v616 = vld [vmem:[%s250 + $0x1690] sm:$0xff]
                %617 = vst [vmem:[%s251 + $0x5b0] sm:$0xff] %v616
                %v618 = vld [vmem:[%s250 + $0x1698] sm:$0xff]
                %619 = vst [vmem:[%s251 + $0x5b8] sm:$0xff] %v618
                %v620 = vld [vmem:[%s250 + $0x1700] sm:$0xff]
                %621 = vst [vmem:[%s251 + $0x5c0] sm:$0xff] %v620
                %v622 = vld [vmem:[%s250 + $0x1708] sm:$0xff]
                %623 = vst [vmem:[%s251 + $0x5c8] sm:$0xff] %v622
                %v624 = vld [vmem:[%s250 + $0x1710] sm:$0xff]
                %625 = vst [vmem:[%s251 + $0x5d0] sm:$0xff] %v624
                %v626 = vld [vmem:[%s250 + $0x1718] sm:$0xff]
                %627 = vst [vmem:[%s251 + $0x5d8] sm:$0xff] %v626
                %v628 = vld [vmem:[%s250 + $0x1780] sm:$0xff]
                %629 = vst [vmem:[%s251 + $0x5e0] sm:$0xff] %v628
                %v630 = vld [vmem:[%s250 + $0x1788] sm:$0xff]
                %631 = vst [vmem:[%s251 + $0x5e8] sm:$0xff] %v630
                %v632 = vld [vmem:[%s250 + $0x1790] sm:$0xff]
                %633 = vst [vmem:[%s251 + $0x5f0] sm:$0xff] %v632
                %v634 = vld [vmem:[%s250 + $0x1798] sm:$0xff]
                %635 = vst [vmem:[%s251 + $0x5f8] sm:$0xff] %v634
                %v636 = vld [vmem:[%s250 + $0x1800] sm:$0xff]
                %637 = vst [vmem:[%s251 + $0x600] sm:$0xff] %v636
                %v638 = vld [vmem:[%s250 + $0x1808] sm:$0xff]
                %639 = vst [vmem:[%s251 + $0x608] sm:$0xff] %v638
                %v640 = vld [vmem:[%s250 + $0x1810] sm:$0xff]
                %641 = vst [vmem:[%s251 + $0x610] sm:$0xff] %v640
                %v642 = vld [vmem:[%s250 + $0x1818] sm:$0xff]
                %643 = vst [vmem:[%s251 + $0x618] sm:$0xff] %v642
                %v644 = vld [vmem:[%s250 + $0x1880] sm:$0xff]
                %645 = vst [vmem:[%s251 + $0x620] sm:$0xff] %v644
                %v646 = vld [vmem:[%s250 + $0x1888] sm:$0xff]
                %647 = vst [vmem:[%s251 + $0x628] sm:$0xff] %v646
                %v648 = vld [vmem:[%s250 + $0x1890] sm:$0xff]
                %649 = vst [vmem:[%s251 + $0x630] sm:$0xff] %v648
                %v650 = vld [vmem:[%s250 + $0x1898] sm:$0xff]
                %651 = vst [vmem:[%s251 + $0x638] sm:$0xff] %v650
                %v652 = vld [vmem:[%s250 + $0x1900] sm:$0xff]
                %653 = vst [vmem:[%s251 + $0x640] sm:$0xff] %v652
                %v654 = vld [vmem:[%s250 + $0x1908] sm:$0xff]
                %655 = vst [vmem:[%s251 + $0x648] sm:$0xff] %v654
                %v656 = vld [vmem:[%s250 + $0x1910] sm:$0xff]
                %657 = vst [vmem:[%s251 + $0x650] sm:$0xff] %v656
                %v658 = vld [vmem:[%s250 + $0x1918] sm:$0xff]
                %659 = vst [vmem:[%s251 + $0x658] sm:$0xff] %v658
                %v660 = vld [vmem:[%s250 + $0x1980] sm:$0xff]
                %661 = vst [vmem:[%s251 + $0x660] sm:$0xff] %v660
                %v662 = vld [vmem:[%s250 + $0x1988] sm:$0xff]
                %663 = vst [vmem:[%s251 + $0x668] sm:$0xff] %v662
                %v664 = vld [vmem:[%s250 + $0x1990] sm:$0xff]
                %665 = vst [vmem:[%s251 + $0x670] sm:$0xff] %v664
                %v666 = vld [vmem:[%s250 + $0x1998] sm:$0xff]
                %667 = vst [vmem:[%s251 + $0x678] sm:$0xff] %v666
                %v668 = vld [vmem:[%s250 + $0x1a00] sm:$0xff]
                %669 = vst [vmem:[%s251 + $0x680] sm:$0xff] %v668
                %v670 = vld [vmem:[%s250 + $0x1a08] sm:$0xff]
                %671 = vst [vmem:[%s251 + $0x688] sm:$0xff] %v670
                %v672 = vld [vmem:[%s250 + $0x1a10] sm:$0xff]
                %673 = vst [vmem:[%s251 + $0x690] sm:$0xff] %v672
                %v674 = vld [vmem:[%s250 + $0x1a18] sm:$0xff]
                %675 = vst [vmem:[%s251 + $0x698] sm:$0xff] %v674
                %v676 = vld [vmem:[%s250 + $0x1a80] sm:$0xff]
                %677 = vst [vmem:[%s251 + $0x6a0] sm:$0xff] %v676
                %v678 = vld [vmem:[%s250 + $0x1a88] sm:$0xff]
                %679 = vst [vmem:[%s251 + $0x6a8] sm:$0xff] %v678
                %v680 = vld [vmem:[%s250 + $0x1a90] sm:$0xff]
                %681 = vst [vmem:[%s251 + $0x6b0] sm:$0xff] %v680
                %v682 = vld [vmem:[%s250 + $0x1a98] sm:$0xff]
                %683 = vst [vmem:[%s251 + $0x6b8] sm:$0xff] %v682
                %v684 = vld [vmem:[%s250 + $0x1b00] sm:$0xff]
                %685 = vst [vmem:[%s251 + $0x6c0] sm:$0xff] %v684
                %v686 = vld [vmem:[%s250 + $0x1b08] sm:$0xff]
                %687 = vst [vmem:[%s251 + $0x6c8] sm:$0xff] %v686
                %v688 = vld [vmem:[%s250 + $0x1b10] sm:$0xff]
                %689 = vst [vmem:[%s251 + $0x6d0] sm:$0xff] %v688
                %v690 = vld [vmem:[%s250 + $0x1b18] sm:$0xff]
                %691 = vst [vmem:[%s251 + $0x6d8] sm:$0xff] %v690
                %v692 = vld [vmem:[%s250 + $0x1b80] sm:$0xff]
                %693 = vst [vmem:[%s251 + $0x6e0] sm:$0xff] %v692
                %v694 = vld [vmem:[%s250 + $0x1b88] sm:$0xff]
                %695 = vst [vmem:[%s251 + $0x6e8] sm:$0xff] %v694
                %v696 = vld [vmem:[%s250 + $0x1b90] sm:$0xff]
                %697 = vst [vmem:[%s251 + $0x6f0] sm:$0xff] %v696
                %v698 = vld [vmem:[%s250 + $0x1b98] sm:$0xff]
                %699 = vst [vmem:[%s251 + $0x6f8] sm:$0xff] %v698
                %v700 = vld [vmem:[%s250 + $0x1c00] sm:$0xff]
                %701 = vst [vmem:[%s251 + $0x700] sm:$0xff] %v700
                %v702 = vld [vmem:[%s250 + $0x1c08] sm:$0xff]
                %703 = vst [vmem:[%s251 + $0x708] sm:$0xff] %v702
                %v704 = vld [vmem:[%s250 + $0x1c10] sm:$0xff]
                %705 = vst [vmem:[%s251 + $0x710] sm:$0xff] %v704
                %v706 = vld [vmem:[%s250 + $0x1c18] sm:$0xff]
                %707 = vst [vmem:[%s251 + $0x718] sm:$0xff] %v706
                %v708 = vld [vmem:[%s250 + $0x1c80] sm:$0xff]
                %709 = vst [vmem:[%s251 + $0x720] sm:$0xff] %v708
                %v710 = vld [vmem:[%s250 + $0x1c88] sm:$0xff]
                %711 = vst [vmem:[%s251 + $0x728] sm:$0xff] %v710
                %v712 = vld [vmem:[%s250 + $0x1c90] sm:$0xff]
                %713 = vst [vmem:[%s251 + $0x730] sm:$0xff] %v712
                %v714 = vld [vmem:[%s250 + $0x1c98] sm:$0xff]
                %715 = vst [vmem:[%s251 + $0x738] sm:$0xff] %v714
                %v716 = vld [vmem:[%s250 + $0x1d00] sm:$0xff]
                %717 = vst [vmem:[%s251 + $0x740] sm:$0xff] %v716
                %v718 = vld [vmem:[%s250 + $0x1d08] sm:$0xff]
                %719 = vst [vmem:[%s251 + $0x748] sm:$0xff] %v718
                %v720 = vld [vmem:[%s250 + $0x1d10] sm:$0xff]
                %721 = vst [vmem:[%s251 + $0x750] sm:$0xff] %v720
                %v722 = vld [vmem:[%s250 + $0x1d18] sm:$0xff]
                %723 = vst [vmem:[%s251 + $0x758] sm:$0xff] %v722
                %v724 = vld [vmem:[%s250 + $0x1d80] sm:$0xff]
                %725 = vst [vmem:[%s251 + $0x760] sm:$0xff] %v724
                %v726 = vld [vmem:[%s250 + $0x1d88] sm:$0xff]
                %727 = vst [vmem:[%s251 + $0x768] sm:$0xff] %v726
                %v728 = vld [vmem:[%s250 + $0x1d90] sm:$0xff]
                %729 = vst [vmem:[%s251 + $0x770] sm:$0xff] %v728
                %v730 = vld [vmem:[%s250 + $0x1d98] sm:$0xff]
                %731 = vst [vmem:[%s251 + $0x778] sm:$0xff] %v730
                %v732 = vld [vmem:[%s250 + $0x1e00] sm:$0xff]
                %733 = vst [vmem:[%s251 + $0x780] sm:$0xff] %v732
                %v734 = vld [vmem:[%s250 + $0x1e08] sm:$0xff]
                %735 = vst [vmem:[%s251 + $0x788] sm:$0xff] %v734
                %v736 = vld [vmem:[%s250 + $0x1e10] sm:$0xff]
                %737 = vst [vmem:[%s251 + $0x790] sm:$0xff] %v736
                %v738 = vld [vmem:[%s250 + $0x1e18] sm:$0xff]
                %739 = vst [vmem:[%s251 + $0x798] sm:$0xff] %v738
                %v740 = vld [vmem:[%s250 + $0x1e80] sm:$0xff]
                %741 = vst [vmem:[%s251 + $0x7a0] sm:$0xff] %v740
                %v742 = vld [vmem:[%s250 + $0x1e88] sm:$0xff]
                %743 = vst [vmem:[%s251 + $0x7a8] sm:$0xff] %v742
                %v744 = vld [vmem:[%s250 + $0x1e90] sm:$0xff]
                %745 = vst [vmem:[%s251 + $0x7b0] sm:$0xff] %v744
                %v746 = vld [vmem:[%s250 + $0x1e98] sm:$0xff]
                %747 = vst [vmem:[%s251 + $0x7b8] sm:$0xff] %v746
                %v748 = vld [vmem:[%s250 + $0x1f00] sm:$0xff]
                %749 = vst [vmem:[%s251 + $0x7c0] sm:$0xff] %v748
                %v750 = vld [vmem:[%s250 + $0x1f08] sm:$0xff]
                %751 = vst [vmem:[%s251 + $0x7c8] sm:$0xff] %v750
                %v752 = vld [vmem:[%s250 + $0x1f10] sm:$0xff]
                %753 = vst [vmem:[%s251 + $0x7d0] sm:$0xff] %v752
                %v754 = vld [vmem:[%s250 + $0x1f18] sm:$0xff]
                %755 = vst [vmem:[%s251 + $0x7d8] sm:$0xff] %v754
                %v756 = vld [vmem:[%s250 + $0x1f80] sm:$0xff]
                %757 = vst [vmem:[%s251 + $0x7e0] sm:$0xff] %v756
                %v758 = vld [vmem:[%s250 + $0x1f88] sm:$0xff]
                %759 = vst [vmem:[%s251 + $0x7e8] sm:$0xff] %v758
                %v760 = vld [vmem:[%s250 + $0x1f90] sm:$0xff]
                %761 = vst [vmem:[%s251 + $0x7f0] sm:$0xff] %v760
                %v762 = vld [vmem:[%s250 + $0x1f98] sm:$0xff]
                %763 = vst [vmem:[%s251 + $0x7f8] sm:$0xff] %v762
              $region53: #{s2i_sid_forward.1} parent=47 // loop_footer
                %s249 = sadd.s32 1, %s245
              $region54: #{s2i_sid_forward.1} parent=47 // loop_footer_branch
                %244 = sbr.rel target = $region50
              $region55: #{s2i_sid_forward.1} parent=47 // loop_exit
                _
            $region48: #{s2i_sid_forward.1} parent=43 // pred_fallthru
              _
            // Predicated region
            $region56: #{s2i_sid_forward.1} parent=43 // pred_check
              _
            $region57: #{s2i_sid_forward.1} parent=43 // pred_check_branch
              %765 = sbr.rel target = $region59
            $region58: #{s2i_sid_forward.1} parent=43 // pred_region
              _
            $region59: #{s2i_sid_forward.1} parent=43 // pred_fallthru
              _
          $region44: #{s2i_sid_forward.1} parent=39 // pred_fallthru
            _
          %766 = vnop
        $region40: #{s2i_sid_forward.1} parent=35 // pred_fallthru
          _
        // Predicated region
        $region60: #{s2i_sid_forward.1} parent=35 // pred_check
          %p767 = pneg %p164
        $region61: #{s2i_sid_forward.1} parent=35 // pred_check_branch
          %769 = sbr.rel (%p767) target = $region63
        $region62: #{s2i_sid_forward.1} parent=35 // pred_region
          %s770 = smul.u32 8, %s13
          %p771 = scmp.lt.s32.totalorder %s770, 31
          %s772 = scalar_select %p771, %s770, 31
          %s773 = scalar_lea.vmem %s6, %s772
          %s774 = smul.u32 8, %s13
        $region63: #{s2i_sid_forward.1} parent=35 // pred_fallthru
          _
      $region36: #{s2i_sid_forward.1} parent=5 // pred_fallthru
        _
      %p775 = scmp.le.s32.totalorder 1, %s13
      %p776 = scmp.lt.s32.totalorder %s13, 5
      %p777 = pnand %p775, %p776
      %p778 = pneg %p777
      // Predicated region
      $region64: #{s2i_sid_forward.1} parent=5 // pred_check
        _
      $region65: #{s2i_sid_forward.1} parent=5 // pred_check_branch
        %780 = sbr.rel (%p777) target = $region67
      $region66: #{s2i_sid_forward.1} parent=5 // pred_region
        %s781 = ssub.s32 %s13, 1
        %s782 = sand.u32 %s131, 1
        %s783 = sand.u32 %s131, 1
        %s784 = smul.addr %s783, 2048
        %s785 = scalar_lea.vmem [#allocation2], %s784
        // Predicated region
        $region68: #{s2i_sid_forward.1} parent=66 // pred_check
          %p786 = pneg %p144
        $region69: #{s2i_sid_forward.1} parent=66 // pred_check_branch
          %788 = sbr.rel (%p786) target = $region71
        $region70: #{s2i_sid_forward.1} parent=66 // pred_region
          _
        $region71: #{s2i_sid_forward.1} parent=66 // pred_fallthru
          _
        %p789 = pneg %p34
        %p790 = pneg %p31
        %p791 = pneg %p55
        %p792 = pneg %p52
        %p793 = pneg %p76
        %p794 = pneg %p73
        %p795 = pneg %p97
        %p796 = pneg %p94
        %p797 = pneg %p118
        %p798 = pneg %p115
        %s799 = sand.u32 %s131, 1
        %s800 = sand.u32 %s131, 1
        %s801 = smul.addr %s800, 2048
        %s802 = scalar_lea.vmem [#allocation2], %s801
        %p803 = pneg %p144
        %p804 = pneg %p141
        %s805 = smul.u32 8, %s18
        %p806 = scmp.lt.s32.totalorder %s805, 31
        %s807 = scalar_select %p806, %s805, 31
        %s808 = scalar_lea.vmem %s6, %s807
        %p809 = pneg %p170
        %p810 = pneg %p167
        %p811 = pneg %p196
        %p812 = pneg %p193
        %s813 = smul.u32 8, %s18
        %p814 = scmp.lt.s32.totalorder %s813, 31
        %s815 = scalar_select %p814, %s813, 31
        %s816 = smul.addr %s815, 8
        %s817 = scalar_lea.vmem %s7, %s816
        %s818 = smul.u32 8, %s18
        %s819 = smul.u32 8, %s18
        %p820 = scmp.lt.s32.totalorder %s819, 31
        %s821 = scalar_select %p820, %s819, 31
        %s822 = scalar_lea.vmem %s6, %s821
        %s823 = smul.u32 8, %s18
        %s824 = smul.u32 8, %s18
        %p825 = scmp.lt.s32.totalorder %s824, 31
        %s826 = scalar_select %p825, %s824, 31
        %s827 = smul.addr %s826, 8
        %s828 = scalar_lea.vmem %s7, %s827
        %s829 = smul.u32 8, %s18
        %v831 = vld [vmem:[%s0] sm:$0xff]
        %v832 = vld [vmem:[%s0 + $0x8] sm:$0xff]
        %v833 = vld [vmem:[%s0 + $0x10] sm:$0xff]
        %v834 = vld [vmem:[%s0 + $0x18] sm:$0xff]
        %v835 = vld [vmem:[%s1] sm:$0xf]
        %v836 = vld [vmem:[%s1 + $0x4] sm:$0xf]
        %v837 = vld [vmem:[%s1 + $0x8] sm:$0xf]
        %v838 = vld [vmem:[%s1 + $0xc] sm:$0xf]
        %v839 = vld [vmem:[%s1 + $0x10] sm:$0xf]
        %v840 = vld [vmem:[%s1 + $0x14] sm:$0xf]
        %v841 = vld [vmem:[%s1 + $0x18] sm:$0xf]
        %v842 = vld [vmem:[%s1 + $0x1c] sm:$0xf]
        %v843 = vld [vmem:[%s1 + $0x20] sm:$0xf]
        %v844 = vld [vmem:[%s1 + $0x24] sm:$0xf]
        %v845 = vld [vmem:[%s1 + $0x28] sm:$0xf]
        %v846 = vld [vmem:[%s1 + $0x2c] sm:$0xf]
        %v847 = vld [vmem:[%s1 + $0x30] sm:$0xf]
        %v848 = vld [vmem:[%s1 + $0x34] sm:$0xf]
        %v849 = vld [vmem:[%s1 + $0x38] sm:$0xf]
        %v850 = vld [vmem:[%s1 + $0x3c] sm:$0xf]
        %v851 = vld [vmem:[%s1 + $0x40] sm:$0xf]
        %v852 = vld [vmem:[%s1 + $0x44] sm:$0xf]
        %v853 = vld [vmem:[%s1 + $0x48] sm:$0xf]
        %v854 = vld [vmem:[%s1 + $0x4c] sm:$0xf]
        %v855 = vld [vmem:[%s1 + $0x50] sm:$0xf]
        %v856 = vld [vmem:[%s1 + $0x54] sm:$0xf]
        %v857 = vld [vmem:[%s1 + $0x58] sm:$0xf]
        %v858 = vld [vmem:[%s1 + $0x5c] sm:$0xf]
        %v859 = vld [vmem:[%s1 + $0x60] sm:$0xf]
        %v860 = vld [vmem:[%s1 + $0x64] sm:$0xf]
        %v861 = vld [vmem:[%s1 + $0x68] sm:$0xf]
        %v862 = vld [vmem:[%s1 + $0x6c] sm:$0xf]
        %v863 = vld [vmem:[%s1 + $0x70] sm:$0xf]
        %v864 = vld [vmem:[%s1 + $0x74] sm:$0xf]
        %v865 = vld [vmem:[%s1 + $0x78] sm:$0xf]
        %v866 = vld [vmem:[%s1 + $0x7c] sm:$0xf]
        %v867 = vld [vmem:[%s1 + $0x80] sm:$0xf]
        %v868 = vld [vmem:[%s1 + $0x84] sm:$0xf]
        %v869 = vld [vmem:[%s1 + $0x88] sm:$0xf]
        %v870 = vld [vmem:[%s1 + $0x8c] sm:$0xf]
        %v871 = vld [vmem:[%s1 + $0x90] sm:$0xf]
        %v872 = vld [vmem:[%s1 + $0x94] sm:$0xf]
        %v873 = vld [vmem:[%s1 + $0x98] sm:$0xf]
        %v874 = vld [vmem:[%s1 + $0x9c] sm:$0xf]
        %v875 = vld [vmem:[%s1 + $0xa0] sm:$0xf]
        %v876 = vld [vmem:[%s1 + $0xa4] sm:$0xf]
        %v877 = vld [vmem:[%s1 + $0xa8] sm:$0xf]
        %v878 = vld [vmem:[%s1 + $0xac] sm:$0xf]
        %v879 = vld [vmem:[%s1 + $0xb0] sm:$0xf]
        %v880 = vld [vmem:[%s1 + $0xb4] sm:$0xf]
        %v881 = vld [vmem:[%s1 + $0xb8] sm:$0xf]
        %v882 = vld [vmem:[%s1 + $0xbc] sm:$0xf]
        %v883 = vld [vmem:[%s1 + $0xc0] sm:$0xf]
        %v884 = vld [vmem:[%s1 + $0xc4] sm:$0xf]
        %v885 = vld [vmem:[%s1 + $0xc8] sm:$0xf]
        %v886 = vld [vmem:[%s1 + $0xcc] sm:$0xf]
        %v887 = vld [vmem:[%s1 + $0xd0] sm:$0xf]
        %v888 = vld [vmem:[%s1 + $0xd4] sm:$0xf]
        %v889 = vld [vmem:[%s1 + $0xd8] sm:$0xf]
        %v890 = vld [vmem:[%s1 + $0xdc] sm:$0xf]
        %v891 = vld [vmem:[%s1 + $0xe0] sm:$0xf]
        %v892 = vld [vmem:[%s1 + $0xe4] sm:$0xf]
        %v893 = vld [vmem:[%s1 + $0xe8] sm:$0xf]
        %v894 = vld [vmem:[%s1 + $0xec] sm:$0xf]
        %v895 = vld [vmem:[%s1 + $0xf0] sm:$0xf]
        %v896 = vld [vmem:[%s1 + $0xf4] sm:$0xf]
        %v897 = vld [vmem:[%s1 + $0xf8] sm:$0xf]
        %v898 = vld [vmem:[%s1 + $0xfc] sm:$0xf]
        %v899 = vld [vmem:[%s1 + $0x100] sm:$0xf]
        %v900 = vld [vmem:[%s1 + $0x104] sm:$0xf]
        %v901 = vld [vmem:[%s1 + $0x108] sm:$0xf]
        %v902 = vld [vmem:[%s1 + $0x10c] sm:$0xf]
        %v903 = vld [vmem:[%s1 + $0x110] sm:$0xf]
        %v904 = vld [vmem:[%s1 + $0x114] sm:$0xf]
        %v905 = vld [vmem:[%s1 + $0x118] sm:$0xf]
        %v906 = vld [vmem:[%s1 + $0x11c] sm:$0xf]
        %v907 = vld [vmem:[%s1 + $0x120] sm:$0xf]
        %v908 = vld [vmem:[%s1 + $0x124] sm:$0xf]
        %v909 = vld [vmem:[%s1 + $0x128] sm:$0xf]
        %v910 = vld [vmem:[%s1 + $0x12c] sm:$0xf]
        %v911 = vld [vmem:[%s1 + $0x130] sm:$0xf]
        %v912 = vld [vmem:[%s1 + $0x134] sm:$0xf]
        %v913 = vld [vmem:[%s1 + $0x138] sm:$0xf]
        %v914 = vld [vmem:[%s1 + $0x13c] sm:$0xf]
        %v915 = vld [vmem:[%s1 + $0x140] sm:$0xf]
        %v916 = vld [vmem:[%s1 + $0x144] sm:$0xf]
        %v917 = vld [vmem:[%s1 + $0x148] sm:$0xf]
        %v918 = vld [vmem:[%s1 + $0x14c] sm:$0xf]
        %v919 = vld [vmem:[%s1 + $0x150] sm:$0xf]
        %v920 = vld [vmem:[%s1 + $0x154] sm:$0xf]
        %v921 = vld [vmem:[%s1 + $0x158] sm:$0xf]
        %v922 = vld [vmem:[%s1 + $0x15c] sm:$0xf]
        %v923 = vld [vmem:[%s1 + $0x160] sm:$0xf]
        %v924 = vld [vmem:[%s1 + $0x164] sm:$0xf]
        %v925 = vld [vmem:[%s1 + $0x168] sm:$0xf]
        %v926 = vld [vmem:[%s1 + $0x16c] sm:$0xf]
        %v927 = vld [vmem:[%s1 + $0x170] sm:$0xf]
        %v928 = vld [vmem:[%s1 + $0x174] sm:$0xf]
        %v929 = vld [vmem:[%s1 + $0x178] sm:$0xf]
        %v930 = vld [vmem:[%s1 + $0x17c] sm:$0xf]
        %v931 = vld [vmem:[%s1 + $0x180] sm:$0xf]
        %v932 = vld [vmem:[%s1 + $0x184] sm:$0xf]
        %v933 = vld [vmem:[%s1 + $0x188] sm:$0xf]
        %v934 = vld [vmem:[%s1 + $0x18c] sm:$0xf]
        %v935 = vld [vmem:[%s1 + $0x190] sm:$0xf]
        %v936 = vld [vmem:[%s1 + $0x194] sm:$0xf]
        %v937 = vld [vmem:[%s1 + $0x198] sm:$0xf]
        %v938 = vld [vmem:[%s1 + $0x19c] sm:$0xf]
        %v939 = vld [vmem:[%s1 + $0x1a0] sm:$0xf]
        %v940 = vld [vmem:[%s1 + $0x1a4] sm:$0xf]
        %v941 = vld [vmem:[%s1 + $0x1a8] sm:$0xf]
        %v942 = vld [vmem:[%s1 + $0x1ac] sm:$0xf]
        %v943 = vld [vmem:[%s1 + $0x1b0] sm:$0xf]
        %v944 = vld [vmem:[%s1 + $0x1b4] sm:$0xf]
        %v945 = vld [vmem:[%s1 + $0x1b8] sm:$0xf]
        %v946 = vld [vmem:[%s1 + $0x1bc] sm:$0xf]
        %v947 = vld [vmem:[%s1 + $0x1c0] sm:$0xf]
        %v948 = vld [vmem:[%s1 + $0x1c4] sm:$0xf]
        %v949 = vld [vmem:[%s1 + $0x1c8] sm:$0xf]
        %v950 = vld [vmem:[%s1 + $0x1cc] sm:$0xf]
        %v951 = vld [vmem:[%s1 + $0x1d0] sm:$0xf]
        %v952 = vld [vmem:[%s1 + $0x1d4] sm:$0xf]
        %v953 = vld [vmem:[%s1 + $0x1d8] sm:$0xf]
        %v954 = vld [vmem:[%s1 + $0x1dc] sm:$0xf]
        %v955 = vld [vmem:[%s1 + $0x1e0] sm:$0xf]
        %v956 = vld [vmem:[%s1 + $0x1e4] sm:$0xf]
        %v957 = vld [vmem:[%s1 + $0x1e8] sm:$0xf]
        %v958 = vld [vmem:[%s1 + $0x1ec] sm:$0xf]
        %v959 = vld [vmem:[%s1 + $0x1f0] sm:$0xf]
        %v960 = vld [vmem:[%s1 + $0x1f4] sm:$0xf]
        %v961 = vld [vmem:[%s1 + $0x1f8] sm:$0xf]
        %v962 = vld [vmem:[%s1 + $0x1fc] sm:$0xf]
        %v963 = vld [vmem:[%s2] sm:$0x1]
        %v965 = vlaneseq
        %v966 = vshrl.u32 %v965, 7
        %v967 = vsub.s32 0, %v966
        %v968 = vrot.slane %v963, %v967
        %v974 = vunpack.c.l.b16 %v831
        %v975 = vunpack.c.h.b16 %v831
        %v976 = vunpack.c.l.b16 %v832
        %v977 = vunpack.c.h.b16 %v832
        %v978 = vunpack.c.l.b16 %v833
        %v979 = vunpack.c.h.b16 %v833
        %v980 = vunpack.c.l.b16 %v834
        %v981 = vunpack.c.h.b16 %v834
        %v982 = vpack.c.b16 %v974, %v974
        %v983 = vpack.c.b16 %v975, %v975
        %v984 = vpack.c.b16 %v976, %v976
        %v985 = vpack.c.b16 %v977, %v977
        %v986 = vpack.c.b16 %v978, %v978
        %v987 = vpack.c.b16 %v979, %v979
        %v988 = vpack.c.b16 %v980, %v980
        %v989 = vpack.c.b16 %v981, %v981
        %v1126 = vunpack.c.l.b16 %v835
        %v1127 = vunpack.c.l.b16 %v836
        %v1128 = vunpack.c.l.b16 %v837
        %v1129 = vunpack.c.l.b16 %v838
        %v1130 = vunpack.c.l.b16 %v839
        %v1131 = vunpack.c.l.b16 %v840
        %v1132 = vunpack.c.l.b16 %v841
        %v1133 = vunpack.c.l.b16 %v842
        %v1134 = vunpack.c.l.b16 %v843
        %v1135 = vunpack.c.l.b16 %v844
        %v1136 = vunpack.c.l.b16 %v845
        %v1137 = vunpack.c.l.b16 %v846
        %v1138 = vunpack.c.l.b16 %v847
        %v1139 = vunpack.c.l.b16 %v848
        %v1140 = vunpack.c.l.b16 %v849
        %v1141 = vunpack.c.l.b16 %v850
        %v1142 = vunpack.c.l.b16 %v851
        %v1143 = vunpack.c.l.b16 %v852
        %v1144 = vunpack.c.l.b16 %v853
        %v1145 = vunpack.c.l.b16 %v854
        %v1146 = vunpack.c.l.b16 %v855
        %v1147 = vunpack.c.l.b16 %v856
        %v1148 = vunpack.c.l.b16 %v857
        %v1149 = vunpack.c.l.b16 %v858
        %v1150 = vunpack.c.l.b16 %v859
        %v1151 = vunpack.c.l.b16 %v860
        %v1152 = vunpack.c.l.b16 %v861
        %v1153 = vunpack.c.l.b16 %v862
        %v1154 = vunpack.c.l.b16 %v863
        %v1155 = vunpack.c.l.b16 %v864
        %v1156 = vunpack.c.l.b16 %v865
        %v1157 = vunpack.c.l.b16 %v866
        %v1158 = vunpack.c.l.b16 %v867
        %v1159 = vunpack.c.l.b16 %v868
        %v1160 = vunpack.c.l.b16 %v869
        %v1161 = vunpack.c.l.b16 %v870
        %v1162 = vunpack.c.l.b16 %v871
        %v1163 = vunpack.c.l.b16 %v872
        %v1164 = vunpack.c.l.b16 %v873
        %v1165 = vunpack.c.l.b16 %v874
        %v1166 = vunpack.c.l.b16 %v875
        %v1167 = vunpack.c.l.b16 %v876
        %v1168 = vunpack.c.l.b16 %v877
        %v1169 = vunpack.c.l.b16 %v878
        %v1170 = vunpack.c.l.b16 %v879
        %v1171 = vunpack.c.l.b16 %v880
        %v1172 = vunpack.c.l.b16 %v881
        %v1173 = vunpack.c.l.b16 %v882
        %v1174 = vunpack.c.l.b16 %v883
        %v1175 = vunpack.c.l.b16 %v884
        %v1176 = vunpack.c.l.b16 %v885
        %v1177 = vunpack.c.l.b16 %v886
        %v1178 = vunpack.c.l.b16 %v887
        %v1179 = vunpack.c.l.b16 %v888
        %v1180 = vunpack.c.l.b16 %v889
        %v1181 = vunpack.c.l.b16 %v890
        %v1182 = vunpack.c.l.b16 %v891
        %v1183 = vunpack.c.l.b16 %v892
        %v1184 = vunpack.c.l.b16 %v893
        %v1185 = vunpack.c.l.b16 %v894
        %v1186 = vunpack.c.l.b16 %v895
        %v1187 = vunpack.c.l.b16 %v896
        %v1188 = vunpack.c.l.b16 %v897
        %v1189 = vunpack.c.l.b16 %v898
        %v1190 = vunpack.c.l.b16 %v899
        %v1191 = vunpack.c.l.b16 %v900
        %v1192 = vunpack.c.l.b16 %v901
        %v1193 = vunpack.c.l.b16 %v902
        %v1194 = vunpack.c.l.b16 %v903
        %v1195 = vunpack.c.l.b16 %v904
        %v1196 = vunpack.c.l.b16 %v905
        %v1197 = vunpack.c.l.b16 %v906
        %v1198 = vunpack.c.l.b16 %v907
        %v1199 = vunpack.c.l.b16 %v908
        %v1200 = vunpack.c.l.b16 %v909
        %v1201 = vunpack.c.l.b16 %v910
        %v1202 = vunpack.c.l.b16 %v911
        %v1203 = vunpack.c.l.b16 %v912
        %v1204 = vunpack.c.l.b16 %v913
        %v1205 = vunpack.c.l.b16 %v914
        %v1206 = vunpack.c.l.b16 %v915
        %v1207 = vunpack.c.l.b16 %v916
        %v1208 = vunpack.c.l.b16 %v917
        %v1209 = vunpack.c.l.b16 %v918
        %v1210 = vunpack.c.l.b16 %v919
        %v1211 = vunpack.c.l.b16 %v920
        %v1212 = vunpack.c.l.b16 %v921
        %v1213 = vunpack.c.l.b16 %v922
        %v1214 = vunpack.c.l.b16 %v923
        %v1215 = vunpack.c.l.b16 %v924
        %v1216 = vunpack.c.l.b16 %v925
        %v1217 = vunpack.c.l.b16 %v926
        %v1218 = vunpack.c.l.b16 %v927
        %v1219 = vunpack.c.l.b16 %v928
        %v1220 = vunpack.c.l.b16 %v929
        %v1221 = vunpack.c.l.b16 %v930
        %v1222 = vunpack.c.l.b16 %v931
        %v1223 = vunpack.c.l.b16 %v932
        %v1224 = vunpack.c.l.b16 %v933
        %v1225 = vunpack.c.l.b16 %v934
        %v1226 = vunpack.c.l.b16 %v935
        %v1227 = vunpack.c.l.b16 %v936
        %v1228 = vunpack.c.l.b16 %v937
        %v1229 = vunpack.c.l.b16 %v938
        %v1230 = vunpack.c.l.b16 %v939
        %v1231 = vunpack.c.l.b16 %v940
        %v1232 = vunpack.c.l.b16 %v941
        %v1233 = vunpack.c.l.b16 %v942
        %v1234 = vunpack.c.l.b16 %v943
        %v1235 = vunpack.c.l.b16 %v944
        %v1236 = vunpack.c.l.b16 %v945
        %v1237 = vunpack.c.l.b16 %v946
        %v1238 = vunpack.c.l.b16 %v947
        %v1239 = vunpack.c.l.b16 %v948
        %v1240 = vunpack.c.l.b16 %v949
        %v1241 = vunpack.c.l.b16 %v950
        %v1242 = vunpack.c.l.b16 %v951
        %v1243 = vunpack.c.l.b16 %v952
        %v1244 = vunpack.c.l.b16 %v953
        %v1245 = vunpack.c.l.b16 %v954
        %v1246 = vunpack.c.l.b16 %v955
        %v1247 = vunpack.c.l.b16 %v956
        %v1248 = vunpack.c.l.b16 %v957
        %v1249 = vunpack.c.l.b16 %v958
        %v1250 = vunpack.c.l.b16 %v959
        %v1251 = vunpack.c.l.b16 %v960
        %v1252 = vunpack.c.l.b16 %v961
        %v1253 = vunpack.c.l.b16 %v962
        %v1254 = vpack.c.b16 %v1127, %v1126
        %v1255 = vpack.c.b16 %v1129, %v1128
        %v1256 = vpack.c.b16 %v1131, %v1130
        %v1257 = vpack.c.b16 %v1133, %v1132
        %v1258 = vpack.c.b16 %v1135, %v1134
        %v1259 = vpack.c.b16 %v1137, %v1136
        %v1260 = vpack.c.b16 %v1139, %v1138
        %v1261 = vpack.c.b16 %v1141, %v1140
        %v1262 = vpack.c.b16 %v1143, %v1142
        %v1263 = vpack.c.b16 %v1145, %v1144
        %v1264 = vpack.c.b16 %v1147, %v1146
        %v1265 = vpack.c.b16 %v1149, %v1148
        %v1266 = vpack.c.b16 %v1151, %v1150
        %v1267 = vpack.c.b16 %v1153, %v1152
        %v1268 = vpack.c.b16 %v1155, %v1154
        %v1269 = vpack.c.b16 %v1157, %v1156
        %v1270 = vpack.c.b16 %v1159, %v1158
        %v1271 = vpack.c.b16 %v1161, %v1160
        %v1272 = vpack.c.b16 %v1163, %v1162
        %v1273 = vpack.c.b16 %v1165, %v1164
        %v1274 = vpack.c.b16 %v1167, %v1166
        %v1275 = vpack.c.b16 %v1169, %v1168
        %v1276 = vpack.c.b16 %v1171, %v1170
        %v1277 = vpack.c.b16 %v1173, %v1172
        %v1278 = vpack.c.b16 %v1175, %v1174
        %v1279 = vpack.c.b16 %v1177, %v1176
        %v1280 = vpack.c.b16 %v1179, %v1178
        %v1281 = vpack.c.b16 %v1181, %v1180
        %v1282 = vpack.c.b16 %v1183, %v1182
        %v1283 = vpack.c.b16 %v1185, %v1184
        %v1284 = vpack.c.b16 %v1187, %v1186
        %v1285 = vpack.c.b16 %v1189, %v1188
        %v1286 = vpack.c.b16 %v1191, %v1190
        %v1287 = vpack.c.b16 %v1193, %v1192
        %v1288 = vpack.c.b16 %v1195, %v1194
        %v1289 = vpack.c.b16 %v1197, %v1196
        %v1290 = vpack.c.b16 %v1199, %v1198
        %v1291 = vpack.c.b16 %v1201, %v1200
        %v1292 = vpack.c.b16 %v1203, %v1202
        %v1293 = vpack.c.b16 %v1205, %v1204
        %v1294 = vpack.c.b16 %v1207, %v1206
        %v1295 = vpack.c.b16 %v1209, %v1208
        %v1296 = vpack.c.b16 %v1211, %v1210
        %v1297 = vpack.c.b16 %v1213, %v1212
        %v1298 = vpack.c.b16 %v1215, %v1214
        %v1299 = vpack.c.b16 %v1217, %v1216
        %v1300 = vpack.c.b16 %v1219, %v1218
        %v1301 = vpack.c.b16 %v1221, %v1220
        %v1302 = vpack.c.b16 %v1223, %v1222
        %v1303 = vpack.c.b16 %v1225, %v1224
        %v1304 = vpack.c.b16 %v1227, %v1226
        %v1305 = vpack.c.b16 %v1229, %v1228
        %v1306 = vpack.c.b16 %v1231, %v1230
        %v1307 = vpack.c.b16 %v1233, %v1232
        %v1308 = vpack.c.b16 %v1235, %v1234
        %v1309 = vpack.c.b16 %v1237, %v1236
        %v1310 = vpack.c.b16 %v1239, %v1238
        %v1311 = vpack.c.b16 %v1241, %v1240
        %v1312 = vpack.c.b16 %v1243, %v1242
        %v1313 = vpack.c.b16 %v1245, %v1244
        %v1314 = vpack.c.b16 %v1247, %v1246
        %v1315 = vpack.c.b16 %v1249, %v1248
        %v1316 = vpack.c.b16 %v1251, %v1250
        %v1317 = vpack.c.b16 %v1253, %v1252
        %1382 = vmatprep.subr.bf16.mxu0 0
        %1383 = vmatpush1.bf16.msra.mxu0 %v1254
        %1384 = vmatprep.subr.bf16.mxu0 0
        %1385 = vmatpush1.bf16.msra.mxu0 %v1255
        %1386 = vmatprep.subr.bf16.mxu0 0
        %1387 = vmatpush1.bf16.msra.mxu0 %v1256
        %1388 = vmatprep.subr.bf16.mxu0 0
        %1389 = vmatpush1.bf16.msra.mxu0 %v1257
        %1390 = vmatprep.subr.bf16.mxu0 0
        %1391 = vmatpush1.bf16.msra.mxu0 %v1258
        %1392 = vmatprep.subr.bf16.mxu0 0
        %1393 = vmatpush1.bf16.msra.mxu0 %v1259
        %1394 = vmatprep.subr.bf16.mxu0 0
        %1395 = vmatpush1.bf16.msra.mxu0 %v1260
        %1396 = vmatprep.subr.bf16.mxu0 0
        %1397 = vmatpush1.bf16.msra.mxu0 %v1261
        %1398 = vmatprep.subr.bf16.mxu0 0
        %1399 = vmatpush1.bf16.msra.mxu0 %v1262
        %1400 = vmatprep.subr.bf16.mxu0 0
        %1401 = vmatpush1.bf16.msra.mxu0 %v1263
        %1402 = vmatprep.subr.bf16.mxu0 0
        %1403 = vmatpush1.bf16.msra.mxu0 %v1264
        %1404 = vmatprep.subr.bf16.mxu0 0
        %1405 = vmatpush1.bf16.msra.mxu0 %v1265
        %1406 = vmatprep.subr.bf16.mxu0 0
        %1407 = vmatpush1.bf16.msra.mxu0 %v1266
        %1408 = vmatprep.subr.bf16.mxu0 0
        %1409 = vmatpush1.bf16.msra.mxu0 %v1267
        %1410 = vmatprep.subr.bf16.mxu0 0
        %1411 = vmatpush1.bf16.msra.mxu0 %v1268
        %1412 = vmatprep.subr.bf16.mxu0 0
        %1413 = vmatpush1.bf16.msra.mxu0 %v1269
        %1414 = vmatprep.mubr.bf16.mxu0 %v983
        %1415 = vmatmul.mubr.bf16.gmra.mrb[0].mxu0 %v982
        %v1416 = vpop.f32.mrb[0].mxu0
        %v1417 = vadd.f32 %v968, %v1416
        %v1418 = vpop.f32.mrb[0].mxu0
        %v1419 = vpop.f32.mrb[0].mxu0
        %v1420 = vpop.f32.mrb[0].mxu0
        %1421 = vdwg.mxu0
        %1422 = vmatprep.subr.bf16.mxu0 0
        %1423 = vmatpush1.bf16.msra.mxu0 %v1270
        %1424 = vmatprep.subr.bf16.mxu0 0
        %1425 = vmatpush1.bf16.msra.mxu0 %v1271
        %1426 = vmatprep.subr.bf16.mxu0 0
        %1427 = vmatpush1.bf16.msra.mxu0 %v1272
        %1428 = vmatprep.subr.bf16.mxu0 0
        %1429 = vmatpush1.bf16.msra.mxu0 %v1273
        %1430 = vmatprep.subr.bf16.mxu0 0
        %1431 = vmatpush1.bf16.msra.mxu0 %v1274
        %1432 = vmatprep.subr.bf16.mxu0 0
        %1433 = vmatpush1.bf16.msra.mxu0 %v1275
        %1434 = vmatprep.subr.bf16.mxu0 0
        %1435 = vmatpush1.bf16.msra.mxu0 %v1276
        %1436 = vmatprep.subr.bf16.mxu0 0
        %1437 = vmatpush1.bf16.msra.mxu0 %v1277
        %1438 = vmatprep.subr.bf16.mxu0 0
        %1439 = vmatpush1.bf16.msra.mxu0 %v1278
        %1440 = vmatprep.subr.bf16.mxu0 0
        %1441 = vmatpush1.bf16.msra.mxu0 %v1279
        %1442 = vmatprep.subr.bf16.mxu0 0
        %1443 = vmatpush1.bf16.msra.mxu0 %v1280
        %1444 = vmatprep.subr.bf16.mxu0 0
        %1445 = vmatpush1.bf16.msra.mxu0 %v1281
        %1446 = vmatprep.subr.bf16.mxu0 0
        %1447 = vmatpush1.bf16.msra.mxu0 %v1282
        %1448 = vmatprep.subr.bf16.mxu0 0
        %1449 = vmatpush1.bf16.msra.mxu0 %v1283
        %1450 = vmatprep.subr.bf16.mxu0 0
        %1451 = vmatpush1.bf16.msra.mxu0 %v1284
        %1452 = vmatprep.subr.bf16.mxu0 0
        %1453 = vmatpush1.bf16.msra.mxu0 %v1285
        %1454 = vmatprep.mubr.bf16.mxu0 %v985
        %1455 = vmatmul.mubr.bf16.gmra.mrb[0].mxu0 %v984
        %v1456 = vpop.f32.mrb[0].mxu0
        %v1457 = vadd.f32 %v1417, %v1456
        %v1458 = vpop.f32.mrb[0].mxu0
        %v1459 = vpop.f32.mrb[0].mxu0
        %v1460 = vpop.f32.mrb[0].mxu0
        %1461 = vdwg.mxu0
        %1462 = vmatprep.subr.bf16.mxu0 0
        %1463 = vmatpush1.bf16.msra.mxu0 %v1286
        %1464 = vmatprep.subr.bf16.mxu0 0
        %1465 = vmatpush1.bf16.msra.mxu0 %v1287
        %1466 = vmatprep.subr.bf16.mxu0 0
        %1467 = vmatpush1.bf16.msra.mxu0 %v1288
        %1468 = vmatprep.subr.bf16.mxu0 0
        %1469 = vmatpush1.bf16.msra.mxu0 %v1289
        %1470 = vmatprep.subr.bf16.mxu0 0
        %1471 = vmatpush1.bf16.msra.mxu0 %v1290
        %1472 = vmatprep.subr.bf16.mxu0 0
        %1473 = vmatpush1.bf16.msra.mxu0 %v1291
        %1474 = vmatprep.subr.bf16.mxu0 0
        %1475 = vmatpush1.bf16.msra.mxu0 %v1292
        %1476 = vmatprep.subr.bf16.mxu0 0
        %1477 = vmatpush1.bf16.msra.mxu0 %v1293
        %1478 = vmatprep.subr.bf16.mxu0 0
        %1479 = vmatpush1.bf16.msra.mxu0 %v1294
        %1480 = vmatprep.subr.bf16.mxu0 0
        %1481 = vmatpush1.bf16.msra.mxu0 %v1295
        %1482 = vmatprep.subr.bf16.mxu0 0
        %1483 = vmatpush1.bf16.msra.mxu0 %v1296
        %1484 = vmatprep.subr.bf16.mxu0 0
        %1485 = vmatpush1.bf16.msra.mxu0 %v1297
        %1486 = vmatprep.subr.bf16.mxu0 0
        %1487 = vmatpush1.bf16.msra.mxu0 %v1298
        %1488 = vmatprep.subr.bf16.mxu0 0
        %1489 = vmatpush1.bf16.msra.mxu0 %v1299
        %1490 = vmatprep.subr.bf16.mxu0 0
        %1491 = vmatpush1.bf16.msra.mxu0 %v1300
        %1492 = vmatprep.subr.bf16.mxu0 0
        %1493 = vmatpush1.bf16.msra.mxu0 %v1301
        %1494 = vmatprep.mubr.bf16.mxu0 %v987
        %1495 = vmatmul.mubr.bf16.gmra.mrb[0].mxu0 %v986
        %v1496 = vpop.f32.mrb[0].mxu0
        %v1497 = vadd.f32 %v1457, %v1496
        %v1498 = vpop.f32.mrb[0].mxu0
        %v1499 = vpop.f32.mrb[0].mxu0
        %v1500 = vpop.f32.mrb[0].mxu0
        %1501 = vdwg.mxu0
        %1502 = vmatprep.subr.bf16.mxu0 0
        %1503 = vmatpush1.bf16.msra.mxu0 %v1302
        %1504 = vmatprep.subr.bf16.mxu0 0
        %1505 = vmatpush1.bf16.msra.mxu0 %v1303
        %1506 = vmatprep.subr.bf16.mxu0 0
        %1507 = vmatpush1.bf16.msra.mxu0 %v1304
        %1508 = vmatprep.subr.bf16.mxu0 0
        %1509 = vmatpush1.bf16.msra.mxu0 %v1305
        %1510 = vmatprep.subr.bf16.mxu0 0
        %1511 = vmatpush1.bf16.msra.mxu0 %v1306
        %1512 = vmatprep.subr.bf16.mxu0 0
        %1513 = vmatpush1.bf16.msra.mxu0 %v1307
        %1514 = vmatprep.subr.bf16.mxu0 0
        %1515 = vmatpush1.bf16.msra.mxu0 %v1308
        %1516 = vmatprep.subr.bf16.mxu0 0
        %1517 = vmatpush1.bf16.msra.mxu0 %v1309
        %1518 = vmatprep.subr.bf16.mxu0 0
        %1519 = vmatpush1.bf16.msra.mxu0 %v1310
        %1520 = vmatprep.subr.bf16.mxu0 0
        %1521 = vmatpush1.bf16.msra.mxu0 %v1311
        %1522 = vmatprep.subr.bf16.mxu0 0
        %1523 = vmatpush1.bf16.msra.mxu0 %v1312
        %1524 = vmatprep.subr.bf16.mxu0 0
        %1525 = vmatpush1.bf16.msra.mxu0 %v1313
        %1526 = vmatprep.subr.bf16.mxu0 0
        %1527 = vmatpush1.bf16.msra.mxu0 %v1314
        %1528 = vmatprep.subr.bf16.mxu0 0
        %1529 = vmatpush1.bf16.msra.mxu0 %v1315
        %1530 = vmatprep.subr.bf16.mxu0 0
        %1531 = vmatpush1.bf16.msra.mxu0 %v1316
        %1532 = vmatprep.subr.bf16.mxu0 0
        %1533 = vmatpush1.bf16.msra.mxu0 %v1317
        %1534 = vmatprep.mubr.bf16.mxu0 %v989
        %1535 = vmatmul.mubr.bf16.gmra.mrb[0].mxu0 %v988
        %v1536 = vpop.f32.mrb[0].mxu0
        %v1537 = vadd.f32 %v1497, %v1536
        %v1538 = vpop.f32.mrb[0].mxu0
        %v1539 = vpop.f32.mrb[0].mxu0
        %v1540 = vpop.f32.mrb[0].mxu0
        %1541 = vdwg.mxu0
        %v1542 = vmax.f32 %v1537, 0.0
        %v1543 = vpack.c.bf16 %v1542, %v1542
        %v1544 = vld [vmem:[%s3] sm:$0xff]
        %v1545 = vld [vmem:[%s3 + $0x8] sm:$0xff]
        %v1546 = vld [vmem:[%s3 + $0x10] sm:$0xff]
        %v1547 = vld [vmem:[%s3 + $0x18] sm:$0xff]
        %v1548 = vld [vmem:[%s3 + $0x20] sm:$0xff]
        %v1549 = vld [vmem:[%s3 + $0x28] sm:$0xff]
        %v1550 = vld [vmem:[%s3 + $0x30] sm:$0xff]
        %v1551 = vld [vmem:[%s3 + $0x38] sm:$0xff]
        %v1552 = vld [vmem:[%s3 + $0x40] sm:$0xff]
        %v1553 = vld [vmem:[%s3 + $0x48] sm:$0xff]
        %v1554 = vld [vmem:[%s3 + $0x50] sm:$0xff]
        %v1555 = vld [vmem:[%s3 + $0x58] sm:$0xff]
        %v1556 = vld [vmem:[%s3 + $0x60] sm:$0xff]
        %v1557 = vld [vmem:[%s3 + $0x68] sm:$0xff]
        %v1558 = vld [vmem:[%s3 + $0x70] sm:$0xff]
        %v1559 = vld [vmem:[%s3 + $0x78] sm:$0xff]
        %v1560 = vld [vmem:[%s3 + $0x80] sm:$0xff]
        %v1561 = vld [vmem:[%s3 + $0x88] sm:$0xff]
        %v1562 = vld [vmem:[%s3 + $0x90] sm:$0xff]
        %v1563 = vld [vmem:[%s3 + $0x98] sm:$0xff]
        %v1564 = vld [vmem:[%s3 + $0xa0] sm:$0xff]
        %v1565 = vld [vmem:[%s3 + $0xa8] sm:$0xff]
        %v1566 = vld [vmem:[%s3 + $0xb0] sm:$0xff]
        %v1567 = vld [vmem:[%s3 + $0xb8] sm:$0xff]
        %v1568 = vld [vmem:[%s3 + $0xc0] sm:$0xff]
        %v1569 = vld [vmem:[%s3 + $0xc8] sm:$0xff]
        %v1570 = vld [vmem:[%s3 + $0xd0] sm:$0xff]
        %v1571 = vld [vmem:[%s3 + $0xd8] sm:$0xff]
        %v1572 = vld [vmem:[%s3 + $0xe0] sm:$0xff]
        %v1573 = vld [vmem:[%s3 + $0xe8] sm:$0xff]
        %v1574 = vld [vmem:[%s3 + $0xf0] sm:$0xff]
        %v1575 = vld [vmem:[%s3 + $0xf8] sm:$0xff]
        %v1576 = vld [vmem:[%s4] sm:$0xf]
        %v1578 = vlaneseq
        %v1579 = vshrl.u32 %v1578, 7
        %v1580 = vsub.s32 0, %v1579
        %v1581 = vrot.slane %v1576, %v1580
        %v1582 = vlaneseq
        %v1583 = vshrl.u32 %v1582, 7
        %v1584 = vsub.s32 1, %v1583
        %v1585 = vrot.slane %v1576, %v1584
        %v1586 = vlaneseq
        %v1587 = vshrl.u32 %v1586, 7
        %v1588 = vsub.s32 2, %v1587
        %v1589 = vrot.slane %v1576, %v1588
        %v1590 = vlaneseq
        %v1591 = vshrl.u32 %v1590, 7
        %v1592 = vsub.s32 3, %v1591
        %v1593 = vrot.slane %v1576, %v1592
        %v1630 = vunpack.c.l.b16 %v1544
        %v1631 = vunpack.c.h.b16 %v1544
        %v1632 = vunpack.c.l.b16 %v1545
        %v1633 = vunpack.c.h.b16 %v1545
        %v1634 = vunpack.c.l.b16 %v1546
        %v1635 = vunpack.c.h.b16 %v1546
        %v1636 = vunpack.c.l.b16 %v1547
        %v1637 = vunpack.c.h.b16 %v1547
        %v1638 = vunpack.c.l.b16 %v1548
        %v1639 = vunpack.c.h.b16 %v1548
        %v1640 = vunpack.c.l.b16 %v1549
        %v1641 = vunpack.c.h.b16 %v1549
        %v1642 = vunpack.c.l.b16 %v1550
        %v1643 = vunpack.c.h.b16 %v1550
        %v1644 = vunpack.c.l.b16 %v1551
        %v1645 = vunpack.c.h.b16 %v1551
        %v1646 = vunpack.c.l.b16 %v1552
        %v1647 = vunpack.c.h.b16 %v1552
        %v1648 = vunpack.c.l.b16 %v1553
        %v1649 = vunpack.c.h.b16 %v1553
        %v1650 = vunpack.c.l.b16 %v1554
        %v1651 = vunpack.c.h.b16 %v1554
        %v1652 = vunpack.c.l.b16 %v1555
        %v1653 = vunpack.c.h.b16 %v1555
        %v1654 = vunpack.c.l.b16 %v1556
        %v1655 = vunpack.c.h.b16 %v1556
        %v1656 = vunpack.c.l.b16 %v1557
        %v1657 = vunpack.c.h.b16 %v1557
        %v1658 = vunpack.c.l.b16 %v1558
        %v1659 = vunpack.c.h.b16 %v1558
        %v1660 = vunpack.c.l.b16 %v1559
        %v1661 = vunpack.c.h.b16 %v1559
        %v1662 = vunpack.c.l.b16 %v1560
        %v1663 = vunpack.c.h.b16 %v1560
        %v1664 = vunpack.c.l.b16 %v1561
        %v1665 = vunpack.c.h.b16 %v1561
        %v1666 = vunpack.c.l.b16 %v1562
        %v1667 = vunpack.c.h.b16 %v1562
        %v1668 = vunpack.c.l.b16 %v1563
        %v1669 = vunpack.c.h.b16 %v1563
        %v1670 = vunpack.c.l.b16 %v1564
        %v1671 = vunpack.c.h.b16 %v1564
        %v1672 = vunpack.c.l.b16 %v1565
        %v1673 = vunpack.c.h.b16 %v1565
        %v1674 = vunpack.c.l.b16 %v1566
        %v1675 = vunpack.c.h.b16 %v1566
        %v1676 = vunpack.c.l.b16 %v1567
        %v1677 = vunpack.c.h.b16 %v1567
        %v1678 = vunpack.c.l.b16 %v1568
        %v1679 = vunpack.c.h.b16 %v1568
        %v1680 = vunpack.c.l.b16 %v1569
        %v1681 = vunpack.c.h.b16 %v1569
        %v1682 = vunpack.c.l.b16 %v1570
        %v1683 = vunpack.c.h.b16 %v1570
        %v1684 = vunpack.c.l.b16 %v1571
        %v1685 = vunpack.c.h.b16 %v1571
        %v1686 = vunpack.c.l.b16 %v1572
        %v1687 = vunpack.c.h.b16 %v1572
        %v1688 = vunpack.c.l.b16 %v1573
        %v1689 = vunpack.c.h.b16 %v1573
        %v1690 = vunpack.c.l.b16 %v1574
        %v1691 = vunpack.c.h.b16 %v1574
        %v1692 = vunpack.c.l.b16 %v1575
        %v1693 = vunpack.c.h.b16 %v1575
        %v1694 = vpack.c.b16 %v1634, %v1630
        %v1695 = vpack.c.b16 %v1635, %v1631
        %v1696 = vpack.c.b16 %v1636, %v1632
        %v1697 = vpack.c.b16 %v1637, %v1633
        %v1698 = vpack.c.b16 %v1642, %v1638
        %v1699 = vpack.c.b16 %v1643, %v1639
        %v1700 = vpack.c.b16 %v1644, %v1640
        %v1701 = vpack.c.b16 %v1645, %v1641
        %v1702 = vpack.c.b16 %v1650, %v1646
        %v1703 = vpack.c.b16 %v1651, %v1647
        %v1704 = vpack.c.b16 %v1652, %v1648
        %v1705 = vpack.c.b16 %v1653, %v1649
        %v1706 = vpack.c.b16 %v1658, %v1654
        %v1707 = vpack.c.b16 %v1659, %v1655
        %v1708 = vpack.c.b16 %v1660, %v1656
        %v1709 = vpack.c.b16 %v1661, %v1657
        %v1710 = vpack.c.b16 %v1666, %v1662
        %v1711 = vpack.c.b16 %v1667, %v1663
        %v1712 = vpack.c.b16 %v1668, %v1664
        %v1713 = vpack.c.b16 %v1669, %v1665
        %v1714 = vpack.c.b16 %v1674, %v1670
        %v1715 = vpack.c.b16 %v1675, %v1671
        %v1716 = vpack.c.b16 %v1676, %v1672
        %v1717 = vpack.c.b16 %v1677, %v1673
        %v1718 = vpack.c.b16 %v1682, %v1678
        %v1719 = vpack.c.b16 %v1683, %v1679
        %v1720 = vpack.c.b16 %v1684, %v1680
        %v1721 = vpack.c.b16 %v1685, %v1681
        %v1722 = vpack.c.b16 %v1690, %v1686
        %v1723 = vpack.c.b16 %v1691, %v1687
        %v1724 = vpack.c.b16 %v1692, %v1688
        %v1725 = vpack.c.b16 %v1693, %v1689
        %1758 = vmatprep.subr.bf16.mxu0 %v1695
        %1759 = vmatpush1.bf16.msra.mxu0 %v1694
        %1760 = vmatprep.subr.bf16.mxu0 %v1699
        %1761 = vmatpush1.bf16.msra.mxu0 %v1698
        %1762 = vmatprep.subr.bf16.mxu0 %v1703
        %1763 = vmatpush1.bf16.msra.mxu0 %v1702
        %1764 = vmatprep.subr.bf16.mxu0 %v1707
        %1765 = vmatpush1.bf16.msra.mxu0 %v1706
        %1766 = vmatprep.subr.bf16.mxu0 %v1711
        %1767 = vmatpush1.bf16.msra.mxu0 %v1710
        %1768 = vmatprep.subr.bf16.mxu0 %v1715
        %1769 = vmatpush1.bf16.msra.mxu0 %v1714
        %1770 = vmatprep.subr.bf16.mxu0 %v1719
        %1771 = vmatpush1.bf16.msra.mxu0 %v1718
        %1772 = vmatprep.subr.bf16.mxu0 %v1723
        %1773 = vmatpush1.bf16.msra.mxu0 %v1722
        %1774 = vmatprep.subr.bf16.mxu0 0
        %1775 = vmatpush1.bf16.msra.mxu0 0
        %1776 = vmatprep.subr.bf16.mxu0 0
        %1777 = vmatpush1.bf16.msra.mxu0 0
        %1778 = vmatprep.subr.bf16.mxu0 0
        %1779 = vmatpush1.bf16.msra.mxu0 0
        %1780 = vmatprep.subr.bf16.mxu0 0
        %1781 = vmatpush1.bf16.msra.mxu0 0
        %1782 = vmatprep.subr.bf16.mxu0 0
        %1783 = vmatpush1.bf16.msra.mxu0 0
        %1784 = vmatprep.subr.bf16.mxu0 0
        %1785 = vmatpush1.bf16.msra.mxu0 0
        %1786 = vmatprep.subr.bf16.mxu0 0
        %1787 = vmatpush1.bf16.msra.mxu0 0
        %1788 = vmatprep.subr.bf16.mxu0 0
        %1789 = vmatpush1.bf16.msra.mxu0 0
        %1790 = vmatprep.mubr.bf16.mxu0 0
        %1791 = vmatmul.mubr.bf16.gmra.mrb[0].mxu0 %v1543
        %v1792 = vpop.f32.mrb[0].mxu0
        %v1793 = vadd.f32 %v1581, %v1792
        %v1794 = vpop.f32.mrb[0].mxu0
        %v1795 = vadd.f32 %v1585, %v1794
        %v1796 = vpop.f32.mrb[0].mxu0
        %v1797 = vpop.f32.mrb[0].mxu0
        %1798 = vdwg.mxu0
        %1799 = vmatprep.subr.bf16.mxu0 %v1697
        %1800 = vmatpush1.bf16.msra.mxu0 %v1696
        %1801 = vmatprep.subr.bf16.mxu0 %v1701
        %1802 = vmatpush1.bf16.msra.mxu0 %v1700
        %1803 = vmatprep.subr.bf16.mxu0 %v1705
        %1804 = vmatpush1.bf16.msra.mxu0 %v1704
        %1805 = vmatprep.subr.bf16.mxu0 %v1709
        %1806 = vmatpush1.bf16.msra.mxu0 %v1708
        %1807 = vmatprep.subr.bf16.mxu0 %v1713
        %1808 = vmatpush1.bf16.msra.mxu0 %v1712
        %1809 = vmatprep.subr.bf16.mxu0 %v1717
        %1810 = vmatpush1.bf16.msra.mxu0 %v1716
        %1811 = vmatprep.subr.bf16.mxu0 %v1721
        %1812 = vmatpush1.bf16.msra.mxu0 %v1720
        %1813 = vmatprep.subr.bf16.mxu0 %v1725
        %1814 = vmatpush1.bf16.msra.mxu0 %v1724
        %1815 = vmatprep.subr.bf16.mxu0 0
        %1816 = vmatpush1.bf16.msra.mxu0 0
        %1817 = vmatprep.subr.bf16.mxu0 0
        %1818 = vmatpush1.bf16.msra.mxu0 0
        %1819 = vmatprep.subr.bf16.mxu0 0
        %1820 = vmatpush1.bf16.msra.mxu0 0
        %1821 = vmatprep.subr.bf16.mxu0 0
        %1822 = vmatpush1.bf16.msra.mxu0 0
        %1823 = vmatprep.subr.bf16.mxu0 0
        %1824 = vmatpush1.bf16.msra.mxu0 0
        %1825 = vmatprep.subr.bf16.mxu0 0
        %1826 = vmatpush1.bf16.msra.mxu0 0
        %1827 = vmatprep.subr.bf16.mxu0 0
        %1828 = vmatpush1.bf16.msra.mxu0 0
        %1829 = vmatprep.subr.bf16.mxu0 0
        %1830 = vmatpush1.bf16.msra.mxu0 0
        %1831 = vmatprep.mubr.bf16.mxu0 0
        %1832 = vmatmul.mubr.bf16.gmra.mrb[0].mxu0 %v1543
        %v1833 = vpop.f32.mrb[0].mxu0
        %v1834 = vadd.f32 %v1589, %v1833
        %v1835 = vpop.f32.mrb[0].mxu0
        %v1836 = vadd.f32 %v1593, %v1835
        %v1837 = vpop.f32.mrb[0].mxu0
        %v1838 = vpop.f32.mrb[0].mxu0
        %1839 = vdwg.mxu0
        %v1840 = vmax.f32 %v1793, 0.0
        %v1841 = vmax.f32 %v1795, 0.0
        %v1842 = vmax.f32 %v1834, 0.0
        %v1843 = vmax.f32 %v1836, 0.0
        %v1844 = vpack.c.bf16 %v1840, %v1840
        %v1845 = vpack.c.bf16 %v1841, %v1841
        %v1846 = vpack.c.bf16 %v1842, %v1842
        %v1847 = vpack.c.bf16 %v1843, %v1843
        %v1848 = vld [vmem:[%s785] sm:$0xff]
        %v1849 = vld [vmem:[%s785 + $0x8] sm:$0xff]
        %v1850 = vld [vmem:[%s785 + $0x10] sm:$0xff]
        %v1851 = vld [vmem:[%s785 + $0x18] sm:$0xff]
        %v1852 = vld [vmem:[%s785 + $0x20] sm:$0xff]
        %v1853 = vld [vmem:[%s785 + $0x28] sm:$0xff]
        %v1854 = vld [vmem:[%s785 + $0x30] sm:$0xff]
        %v1855 = vld [vmem:[%s785 + $0x38] sm:$0xff]
        %v1856 = vld [vmem:[%s785 + $0x40] sm:$0xff]
        %v1857 = vld [vmem:[%s785 + $0x48] sm:$0xff]
        %v1858 = vld [vmem:[%s785 + $0x50] sm:$0xff]
        %v1859 = vld [vmem:[%s785 + $0x58] sm:$0xff]
        %v1860 = vld [vmem:[%s785 + $0x60] sm:$0xff]
        %v1861 = vld [vmem:[%s785 + $0x68] sm:$0xff]
        %v1862 = vld [vmem:[%s785 + $0x70] sm:$0xff]
        %v1863 = vld [vmem:[%s785 + $0x78] sm:$0xff]
        %v1864 = vld [vmem:[%s785 + $0x80] sm:$0xff]
        %v1865 = vld [vmem:[%s785 + $0x88] sm:$0xff]
        %v1866 = vld [vmem:[%s785 + $0x90] sm:$0xff]
        %v1867 = vld [vmem:[%s785 + $0x98] sm:$0xff]
        %v1868 = vld [vmem:[%s785 + $0xa0] sm:$0xff]
        %v1869 = vld [vmem:[%s785 + $0xa8] sm:$0xff]
        %v1870 = vld [vmem:[%s785 + $0xb0] sm:$0xff]
        %v1871 = vld [vmem:[%s785 + $0xb8] sm:$0xff]
        %v1872 = vld [vmem:[%s785 + $0xc0] sm:$0xff]
        %v1873 = vld [vmem:[%s785 + $0xc8] sm:$0xff]
        %v1874 = vld [vmem:[%s785 + $0xd0] sm:$0xff]
        %v1875 = vld [vmem:[%s785 + $0xd8] sm:$0xff]
        %v1876 = vld [vmem:[%s785 + $0xe0] sm:$0xff]
        %v1877 = vld [vmem:[%s785 + $0xe8] sm:$0xff]
        %v1878 = vld [vmem:[%s785 + $0xf0] sm:$0xff]
        %v1879 = vld [vmem:[%s785 + $0xf8] sm:$0xff]
        %v1880 = vld [vmem:[%s785 + $0x100] sm:$0xff]
        %v1881 = vld [vmem:[%s785 + $0x108] sm:$0xff]
        %v1882 = vld [vmem:[%s785 + $0x110] sm:$0xff]
        %v1883 = vld [vmem:[%s785 + $0x118] sm:$0xff]
        %v1884 = vld [vmem:[%s785 + $0x120] sm:$0xff]
        %v1885 = vld [vmem:[%s785 + $0x128] sm:$0xff]
        %v1886 = vld [vmem:[%s785 + $0x130] sm:$0xff]
        %v1887 = vld [vmem:[%s785 + $0x138] sm:$0xff]
        %v1888 = vld [vmem:[%s785 + $0x140] sm:$0xff]
        %v1889 = vld [vmem:[%s785 + $0x148] sm:$0xff]
        %v1890 = vld [vmem:[%s785 + $0x150] sm:$0xff]
        %v1891 = vld [vmem:[%s785 + $0x158] sm:$0xff]
        %v1892 = vld [vmem:[%s785 + $0x160] sm:$0xff]
        %v1893 = vld [vmem:[%s785 + $0x168] sm:$0xff]
        %v1894 = vld [vmem:[%s785 + $0x170] sm:$0xff]
        %v1895 = vld [vmem:[%s785 + $0x178] sm:$0xff]
        %v1896 = vld [vmem:[%s785 + $0x180] sm:$0xff]
        %v1897 = vld [vmem:[%s785 + $0x188] sm:$0xff]
        %v1898 = vld [vmem:[%s785 + $0x190] sm:$0xff]
        %v1899 = vld [vmem:[%s785 + $0x198] sm:$0xff]
        %v1900 = vld [vmem:[%s785 + $0x1a0] sm:$0xff]
        %v1901 = vld [vmem:[%s785 + $0x1a8] sm:$0xff]
        %v1902 = vld [vmem:[%s785 + $0x1b0] sm:$0xff]
        %v1903 = vld [vmem:[%s785 + $0x1b8] sm:$0xff]
        %v1904 = vld [vmem:[%s785 + $0x1c0] sm:$0xff]
        %v1905 = vld [vmem:[%s785 + $0x1c8] sm:$0xff]
        %v1906 = vld [vmem:[%s785 + $0x1d0] sm:$0xff]
        %v1907 = vld [vmem:[%s785 + $0x1d8] sm:$0xff]
        %v1908 = vld [vmem:[%s785 + $0x1e0] sm:$0xff]
        %v1909 = vld [vmem:[%s785 + $0x1e8] sm:$0xff]
        %v1910 = vld [vmem:[%s785 + $0x1f0] sm:$0xff]
        %v1911 = vld [vmem:[%s785 + $0x1f8] sm:$0xff]
        %v1912 = vld [vmem:[%s785 + $0x200] sm:$0xff]
        %v1913 = vld [vmem:[%s785 + $0x208] sm:$0xff]
        %v1914 = vld [vmem:[%s785 + $0x210] sm:$0xff]
        %v1915 = vld [vmem:[%s785 + $0x218] sm:$0xff]
        %v1916 = vld [vmem:[%s785 + $0x220] sm:$0xff]
        %v1917 = vld [vmem:[%s785 + $0x228] sm:$0xff]
        %v1918 = vld [vmem:[%s785 + $0x230] sm:$0xff]
        %v1919 = vld [vmem:[%s785 + $0x238] sm:$0xff]
        %v1920 = vld [vmem:[%s785 + $0x240] sm:$0xff]
        %v1921 = vld [vmem:[%s785 + $0x248] sm:$0xff]
        %v1922 = vld [vmem:[%s785 + $0x250] sm:$0xff]
        %v1923 = vld [vmem:[%s785 + $0x258] sm:$0xff]
        %v1924 = vld [vmem:[%s785 + $0x260] sm:$0xff]
        %v1925 = vld [vmem:[%s785 + $0x268] sm:$0xff]
        %v1926 = vld [vmem:[%s785 + $0x270] sm:$0xff]
        %v1927 = vld [vmem:[%s785 + $0x278] sm:$0xff]
        %v1928 = vld [vmem:[%s785 + $0x280] sm:$0xff]
        %v1929 = vld [vmem:[%s785 + $0x288] sm:$0xff]
        %v1930 = vld [vmem:[%s785 + $0x290] sm:$0xff]
        %v1931 = vld [vmem:[%s785 + $0x298] sm:$0xff]
        %v1932 = vld [vmem:[%s785 + $0x2a0] sm:$0xff]
        %v1933 = vld [vmem:[%s785 + $0x2a8] sm:$0xff]
        %v1934 = vld [vmem:[%s785 + $0x2b0] sm:$0xff]
        %v1935 = vld [vmem:[%s785 + $0x2b8] sm:$0xff]
        %v1936 = vld [vmem:[%s785 + $0x2c0] sm:$0xff]
        %v1937 = vld [vmem:[%s785 + $0x2c8] sm:$0xff]
        %v1938 = vld [vmem:[%s785 + $0x2d0] sm:$0xff]
        %v1939 = vld [vmem:[%s785 + $0x2d8] sm:$0xff]
        %v1940 = vld [vmem:[%s785 + $0x2e0] sm:$0xff]
        %v1941 = vld [vmem:[%s785 + $0x2e8] sm:$0xff]
        %v1942 = vld [vmem:[%s785 + $0x2f0] sm:$0xff]
        %v1943 = vld [vmem:[%s785 + $0x2f8] sm:$0xff]
        %v1944 = vld [vmem:[%s785 + $0x300] sm:$0xff]
        %v1945 = vld [vmem:[%s785 + $0x308] sm:$0xff]
        %v1946 = vld [vmem:[%s785 + $0x310] sm:$0xff]
        %v1947 = vld [vmem:[%s785 + $0x318] sm:$0xff]
        %v1948 = vld [vmem:[%s785 + $0x320] sm:$0xff]
        %v1949 = vld [vmem:[%s785 + $0x328] sm:$0xff]
        %v1950 = vld [vmem:[%s785 + $0x330] sm:$0xff]
        %v1951 = vld [vmem:[%s785 + $0x338] sm:$0xff]
        %v1952 = vld [vmem:[%s785 + $0x340] sm:$0xff]
        %v1953 = vld [vmem:[%s785 + $0x348] sm:$0xff]
        %v1954 = vld [vmem:[%s785 + $0x350] sm:$0xff]
        %v1955 = vld [vmem:[%s785 + $0x358] sm:$0xff]
        %v1956 = vld [vmem:[%s785 + $0x360] sm:$0xff]
        %v1957 = vld [vmem:[%s785 + $0x368] sm:$0xff]
        %v1958 = vld [vmem:[%s785 + $0x370] sm:$0xff]
        %v1959 = vld [vmem:[%s785 + $0x378] sm:$0xff]
        %v1960 = vld [vmem:[%s785 + $0x380] sm:$0xff]
        %v1961 = vld [vmem:[%s785 + $0x388] sm:$0xff]
        %v1962 = vld [vmem:[%s785 + $0x390] sm:$0xff]
        %v1963 = vld [vmem:[%s785 + $0x398] sm:$0xff]
        %v1964 = vld [vmem:[%s785 + $0x3a0] sm:$0xff]
        %v1965 = vld [vmem:[%s785 + $0x3a8] sm:$0xff]
        %v1966 = vld [vmem:[%s785 + $0x3b0] sm:$0xff]
        %v1967 = vld [vmem:[%s785 + $0x3b8] sm:$0xff]
        %v1968 = vld [vmem:[%s785 + $0x3c0] sm:$0xff]
        %v1969 = vld [vmem:[%s785 + $0x3c8] sm:$0xff]
        %v1970 = vld [vmem:[%s785 + $0x3d0] sm:$0xff]
        %v1971 = vld [vmem:[%s785 + $0x3d8] sm:$0xff]
        %v1972 = vld [vmem:[%s785 + $0x3e0] sm:$0xff]
        %v1973 = vld [vmem:[%s785 + $0x3e8] sm:$0xff]
        %v1974 = vld [vmem:[%s785 + $0x3f0] sm:$0xff]
        %v1975 = vld [vmem:[%s785 + $0x3f8] sm:$0xff]
        %v1976 = vld [vmem:[%s785 + $0x400] sm:$0xff]
        %v1977 = vld [vmem:[%s785 + $0x408] sm:$0xff]
        %v1978 = vld [vmem:[%s785 + $0x410] sm:$0xff]
        %v1979 = vld [vmem:[%s785 + $0x418] sm:$0xff]
        %v1980 = vld [vmem:[%s785 + $0x420] sm:$0xff]
        %v1981 = vld [vmem:[%s785 + $0x428] sm:$0xff]
        %v1982 = vld [vmem:[%s785 + $0x430] sm:$0xff]
        %v1983 = vld [vmem:[%s785 + $0x438] sm:$0xff]
        %v1984 = vld [vmem:[%s785 + $0x440] sm:$0xff]
        %v1985 = vld [vmem:[%s785 + $0x448] sm:$0xff]
        %v1986 = vld [vmem:[%s785 + $0x450] sm:$0xff]
        %v1987 = vld [vmem:[%s785 + $0x458] sm:$0xff]
        %v1988 = vld [vmem:[%s785 + $0x460] sm:$0xff]
        %v1989 = vld [vmem:[%s785 + $0x468] sm:$0xff]
        %v1990 = vld [vmem:[%s785 + $0x470] sm:$0xff]
        %v1991 = vld [vmem:[%s785 + $0x478] sm:$0xff]
        %v1992 = vld [vmem:[%s785 + $0x480] sm:$0xff]
        %v1993 = vld [vmem:[%s785 + $0x488] sm:$0xff]
        %v1994 = vld [vmem:[%s785 + $0x490] sm:$0xff]
        %v1995 = vld [vmem:[%s785 + $0x498] sm:$0xff]
        %v1996 = vld [vmem:[%s785 + $0x4a0] sm:$0xff]
        %v1997 = vld [vmem:[%s785 + $0x4a8] sm:$0xff]
        %v1998 = vld [vmem:[%s785 + $0x4b0] sm:$0xff]
        %v1999 = vld [vmem:[%s785 + $0x4b8] sm:$0xff]
        %v2000 = vld [vmem:[%s785 + $0x4c0] sm:$0xff]
        %v2001 = vld [vmem:[%s785 + $0x4c8] sm:$0xff]
        %v2002 = vld [vmem:[%s785 + $0x4d0] sm:$0xff]
        %v2003 = vld [vmem:[%s785 + $0x4d8] sm:$0xff]
        %v2004 = vld [vmem:[%s785 + $0x4e0] sm:$0xff]
        %v2005 = vld [vmem:[%s785 + $0x4e8] sm:$0xff]
        %v2006 = vld [vmem:[%s785 + $0x4f0] sm:$0xff]
        %v2007 = vld [vmem:[%s785 + $0x4f8] sm:$0xff]
        %v2008 = vld [vmem:[%s785 + $0x500] sm:$0xff]
        %v2009 = vld [vmem:[%s785 + $0x508] sm:$0xff]
        %v2010 = vld [vmem:[%s785 + $0x510] sm:$0xff]
        %v2011 = vld [vmem:[%s785 + $0x518] sm:$0xff]
        %v2012 = vld [vmem:[%s785 + $0x520] sm:$0xff]
        %v2013 = vld [vmem:[%s785 + $0x528] sm:$0xff]
        %v2014 = vld [vmem:[%s785 + $0x530] sm:$0xff]
        %v2015 = vld [vmem:[%s785 + $0x538] sm:$0xff]
        %v2016 = vld [vmem:[%s785 + $0x540] sm:$0xff]
        %v2017 = vld [vmem:[%s785 + $0x548] sm:$0xff]
        %v2018 = vld [vmem:[%s785 + $0x550] sm:$0xff]
        %v2019 = vld [vmem:[%s785 + $0x558] sm:$0xff]
        %v2020 = vld [vmem:[%s785 + $0x560] sm:$0xff]
        %v2021 = vld [vmem:[%s785 + $0x568] sm:$0xff]
        %v2022 = vld [vmem:[%s785 + $0x570] sm:$0xff]
        %v2023 = vld [vmem:[%s785 + $0x578] sm:$0xff]
        %v2024 = vld [vmem:[%s785 + $0x580] sm:$0xff]
        %v2025 = vld [vmem:[%s785 + $0x588] sm:$0xff]
        %v2026 = vld [vmem:[%s785 + $0x590] sm:$0xff]
        %v2027 = vld [vmem:[%s785 + $0x598] sm:$0xff]
        %v2028 = vld [vmem:[%s785 + $0x5a0] sm:$0xff]
        %v2029 = vld [vmem:[%s785 + $0x5a8] sm:$0xff]
        %v2030 = vld [vmem:[%s785 + $0x5b0] sm:$0xff]
        %v2031 = vld [vmem:[%s785 + $0x5b8] sm:$0xff]
        %v2032 = vld [vmem:[%s785 + $0x5c0] sm:$0xff]
        %v2033 = vld [vmem:[%s785 + $0x5c8] sm:$0xff]
        %v2034 = vld [vmem:[%s785 + $0x5d0] sm:$0xff]
        %v2035 = vld [vmem:[%s785 + $0x5d8] sm:$0xff]
        %v2036 = vld [vmem:[%s785 + $0x5e0] sm:$0xff]
        %v2037 = vld [vmem:[%s785 + $0x5e8] sm:$0xff]
        %v2038 = vld [vmem:[%s785 + $0x5f0] sm:$0xff]
        %v2039 = vld [vmem:[%s785 + $0x5f8] sm:$0xff]
        %v2040 = vld [vmem:[%s785 + $0x600] sm:$0xff]
        %v2041 = vld [vmem:[%s785 + $0x608] sm:$0xff]
        %v2042 = vld [vmem:[%s785 + $0x610] sm:$0xff]
        %v2043 = vld [vmem:[%s785 + $0x618] sm:$0xff]
        %v2044 = vld [vmem:[%s785 + $0x620] sm:$0xff]
        %v2045 = vld [vmem:[%s785 + $0x628] sm:$0xff]
        %v2046 = vld [vmem:[%s785 + $0x630] sm:$0xff]
        %v2047 = vld [vmem:[%s785 + $0x638] sm:$0xff]
        %v2048 = vld [vmem:[%s785 + $0x640] sm:$0xff]
        %v2049 = vld [vmem:[%s785 + $0x648] sm:$0xff]
        %v2050 = vld [vmem:[%s785 + $0x650] sm:$0xff]
        %v2051 = vld [vmem:[%s785 + $0x658] sm:$0xff]
        %v2052 = vld [vmem:[%s785 + $0x660] sm:$0xff]
        %v2053 = vld [vmem:[%s785 + $0x668] sm:$0xff]
        %v2054 = vld [vmem:[%s785 + $0x670] sm:$0xff]
        %v2055 = vld [vmem:[%s785 + $0x678] sm:$0xff]
        %v2056 = vld [vmem:[%s785 + $0x680] sm:$0xff]
        %v2057 = vld [vmem:[%s785 + $0x688] sm:$0xff]
        %v2058 = vld [vmem:[%s785 + $0x690] sm:$0xff]
        %v2059 = vld [vmem:[%s785 + $0x698] sm:$0xff]
        %v2060 = vld [vmem:[%s785 + $0x6a0] sm:$0xff]
        %v2061 = vld [vmem:[%s785 + $0x6a8] sm:$0xff]
        %v2062 = vld [vmem:[%s785 + $0x6b0] sm:$0xff]
        %v2063 = vld [vmem:[%s785 + $0x6b8] sm:$0xff]
        %v2064 = vld [vmem:[%s785 + $0x6c0] sm:$0xff]
        %v2065 = vld [vmem:[%s785 + $0x6c8] sm:$0xff]
        %v2066 = vld [vmem:[%s785 + $0x6d0] sm:$0xff]
        %v2067 = vld [vmem:[%s785 + $0x6d8] sm:$0xff]
        %v2068 = vld [vmem:[%s785 + $0x6e0] sm:$0xff]
        %v2069 = vld [vmem:[%s785 + $0x6e8] sm:$0xff]
        %v2070 = vld [vmem:[%s785 + $0x6f0] sm:$0xff]
        %v2071 = vld [vmem:[%s785 + $0x6f8] sm:$0xff]
        %v2072 = vld [vmem:[%s785 + $0x700] sm:$0xff]
        %v2073 = vld [vmem:[%s785 + $0x708] sm:$0xff]
        %v2074 = vld [vmem:[%s785 + $0x710] sm:$0xff]
        %v2075 = vld [vmem:[%s785 + $0x718] sm:$0xff]
        %v2076 = vld [vmem:[%s785 + $0x720] sm:$0xff]
        %v2077 = vld [vmem:[%s785 + $0x728] sm:$0xff]
        %v2078 = vld [vmem:[%s785 + $0x730] sm:$0xff]
        %v2079 = vld [vmem:[%s785 + $0x738] sm:$0xff]
        %v2080 = vld [vmem:[%s785 + $0x740] sm:$0xff]
        %v2081 = vld [vmem:[%s785 + $0x748] sm:$0xff]
        %v2082 = vld [vmem:[%s785 + $0x750] sm:$0xff]
        %v2083 = vld [vmem:[%s785 + $0x758] sm:$0xff]
        %v2084 = vld [vmem:[%s785 + $0x760] sm:$0xff]
        %v2085 = vld [vmem:[%s785 + $0x768] sm:$0xff]
        %v2086 = vld [vmem:[%s785 + $0x770] sm:$0xff]
        %v2087 = vld [vmem:[%s785 + $0x778] sm:$0xff]
        %v2088 = vld [vmem:[%s785 + $0x780] sm:$0xff]
        %v2089 = vld [vmem:[%s785 + $0x788] sm:$0xff]
        %v2090 = vld [vmem:[%s785 + $0x790] sm:$0xff]
        %v2091 = vld [vmem:[%s785 + $0x798] sm:$0xff]
        %v2092 = vld [vmem:[%s785 + $0x7a0] sm:$0xff]
        %v2093 = vld [vmem:[%s785 + $0x7a8] sm:$0xff]
        %v2094 = vld [vmem:[%s785 + $0x7b0] sm:$0xff]
        %v2095 = vld [vmem:[%s785 + $0x7b8] sm:$0xff]
        %v2096 = vld [vmem:[%s785 + $0x7c0] sm:$0xff]
        %v2097 = vld [vmem:[%s785 + $0x7c8] sm:$0xff]
        %v2098 = vld [vmem:[%s785 + $0x7d0] sm:$0xff]
        %v2099 = vld [vmem:[%s785 + $0x7d8] sm:$0xff]
        %v2100 = vld [vmem:[%s785 + $0x7e0] sm:$0xff]
        %v2101 = vld [vmem:[%s785 + $0x7e8] sm:$0xff]
        %v2102 = vld [vmem:[%s785 + $0x7f0] sm:$0xff]
        %v2103 = vld [vmem:[%s785 + $0x7f8] sm:$0xff]
        %v2104 = vld [vmem:[%s822] sm:$0xff]
        %v2106 = vlaneseq
        %v2107 = vshrl.u32 %v2106, 7
        %v2108 = vsub.s32 0, %v2107
        %v2109 = vrot.slane %v2104, %v2108
        %v2110 = vlaneseq
        %v2111 = vshrl.u32 %v2110, 7
        %v2112 = vsub.s32 1, %v2111
        %v2113 = vrot.slane %v2104, %v2112
        %v2114 = vlaneseq
        %v2115 = vshrl.u32 %v2114, 7
        %v2116 = vsub.s32 2, %v2115
        %v2117 = vrot.slane %v2104, %v2116
        %v2118 = vlaneseq
        %v2119 = vshrl.u32 %v2118, 7
        %v2120 = vsub.s32 3, %v2119
        %v2121 = vrot.slane %v2104, %v2120
        %v2122 = vlaneseq
        %v2123 = vshrl.u32 %v2122, 7
        %v2124 = vsub.s32 4, %v2123
        %v2125 = vrot.slane %v2104, %v2124
        %v2126 = vlaneseq
        %v2127 = vshrl.u32 %v2126, 7
        %v2128 = vsub.s32 5, %v2127
        %v2129 = vrot.slane %v2104, %v2128
        %v2130 = vlaneseq
        %v2131 = vshrl.u32 %v2130, 7
        %v2132 = vsub.s32 6, %v2131
        %v2133 = vrot.slane %v2104, %v2132
        %v2134 = vlaneseq
        %v2135 = vshrl.u32 %v2134, 7
        %v2136 = vsub.s32 7, %v2135
        %v2137 = vrot.slane %v2104, %v2136
        %v2402 = vunpack.c.l.b16 %v1848
        %v2403 = vunpack.c.h.b16 %v1848
        %v2404 = vunpack.c.l.b16 %v1849
        %v2405 = vunpack.c.h.b16 %v1849
        %v2406 = vunpack.c.l.b16 %v1850
        %v2407 = vunpack.c.h.b16 %v1850
        %v2408 = vunpack.c.l.b16 %v1851
        %v2409 = vunpack.c.h.b16 %v1851
        %v2410 = vunpack.c.l.b16 %v1852
        %v2411 = vunpack.c.h.b16 %v1852
        %v2412 = vunpack.c.l.b16 %v1853
        %v2413 = vunpack.c.h.b16 %v1853
        %v2414 = vunpack.c.l.b16 %v1854
        %v2415 = vunpack.c.h.b16 %v1854
        %v2416 = vunpack.c.l.b16 %v1855
        %v2417 = vunpack.c.h.b16 %v1855
        %v2418 = vunpack.c.l.b16 %v1856
        %v2419 = vunpack.c.h.b16 %v1856
        %v2420 = vunpack.c.l.b16 %v1857
        %v2421 = vunpack.c.h.b16 %v1857
        %v2422 = vunpack.c.l.b16 %v1858
        %v2423 = vunpack.c.h.b16 %v1858
        %v2424 = vunpack.c.l.b16 %v1859
        %v2425 = vunpack.c.h.b16 %v1859
        %v2426 = vunpack.c.l.b16 %v1860
        %v2427 = vunpack.c.h.b16 %v1860
        %v2428 = vunpack.c.l.b16 %v1861
        %v2429 = vunpack.c.h.b16 %v1861
        %v2430 = vunpack.c.l.b16 %v1862
        %v2431 = vunpack.c.h.b16 %v1862
        %v2432 = vunpack.c.l.b16 %v1863
        %v2433 = vunpack.c.h.b16 %v1863
        %v2434 = vunpack.c.l.b16 %v1864
        %v2435 = vunpack.c.h.b16 %v1864
        %v2436 = vunpack.c.l.b16 %v1865
        %v2437 = vunpack.c.h.b16 %v1865
        %v2438 = vunpack.c.l.b16 %v1866
        %v2439 = vunpack.c.h.b16 %v1866
        %v2440 = vunpack.c.l.b16 %v1867
        %v2441 = vunpack.c.h.b16 %v1867
        %v2442 = vunpack.c.l.b16 %v1868
        %v2443 = vunpack.c.h.b16 %v1868
        %v2444 = vunpack.c.l.b16 %v1869
        %v2445 = vunpack.c.h.b16 %v1869
        %v2446 = vunpack.c.l.b16 %v1870
        %v2447 = vunpack.c.h.b16 %v1870
        %v2448 = vunpack.c.l.b16 %v1871
        %v2449 = vunpack.c.h.b16 %v1871
        %v2450 = vunpack.c.l.b16 %v1872
        %v2451 = vunpack.c.h.b16 %v1872
        %v2452 = vunpack.c.l.b16 %v1873
        %v2453 = vunpack.c.h.b16 %v1873
        %v2454 = vunpack.c.l.b16 %v1874
        %v2455 = vunpack.c.h.b16 %v1874
        %v2456 = vunpack.c.l.b16 %v1875
        %v2457 = vunpack.c.h.b16 %v1875
        %v2458 = vunpack.c.l.b16 %v1876
        %v2459 = vunpack.c.h.b16 %v1876
        %v2460 = vunpack.c.l.b16 %v1877
        %v2461 = vunpack.c.h.b16 %v1877
        %v2462 = vunpack.c.l.b16 %v1878
        %v2463 = vunpack.c.h.b16 %v1878
        %v2464 = vunpack.c.l.b16 %v1879
        %v2465 = vunpack.c.h.b16 %v1879
        %v2466 = vunpack.c.l.b16 %v1880
        %v2467 = vunpack.c.h.b16 %v1880
        %v2468 = vunpack.c.l.b16 %v1881
        %v2469 = vunpack.c.h.b16 %v1881
        %v2470 = vunpack.c.l.b16 %v1882
        %v2471 = vunpack.c.h.b16 %v1882
        %v2472 = vunpack.c.l.b16 %v1883
        %v2473 = vunpack.c.h.b16 %v1883
        %v2474 = vunpack.c.l.b16 %v1884
        %v2475 = vunpack.c.h.b16 %v1884
        %v2476 = vunpack.c.l.b16 %v1885
        %v2477 = vunpack.c.h.b16 %v1885
        %v2478 = vunpack.c.l.b16 %v1886
        %v2479 = vunpack.c.h.b16 %v1886
        %v2480 = vunpack.c.l.b16 %v1887
        %v2481 = vunpack.c.h.b16 %v1887
        %v2482 = vunpack.c.l.b16 %v1888
        %v2483 = vunpack.c.h.b16 %v1888
        %v2484 = vunpack.c.l.b16 %v1889
        %v2485 = vunpack.c.h.b16 %v1889
        %v2486 = vunpack.c.l.b16 %v1890
        %v2487 = vunpack.c.h.b16 %v1890
        %v2488 = vunpack.c.l.b16 %v1891
        %v2489 = vunpack.c.h.b16 %v1891
        %v2490 = vunpack.c.l.b16 %v1892
        %v2491 = vunpack.c.h.b16 %v1892
        %v2492 = vunpack.c.l.b16 %v1893
        %v2493 = vunpack.c.h.b16 %v1893
        %v2494 = vunpack.c.l.b16 %v1894
        %v2495 = vunpack.c.h.b16 %v1894
        %v2496 = vunpack.c.l.b16 %v1895
        %v2497 = vunpack.c.h.b16 %v1895
        %v2498 = vunpack.c.l.b16 %v1896
        %v2499 = vunpack.c.h.b16 %v1896
        %v2500 = vunpack.c.l.b16 %v1897
        %v2501 = vunpack.c.h.b16 %v1897
        %v2502 = vunpack.c.l.b16 %v1898
        %v2503 = vunpack.c.h.b16 %v1898
        %v2504 = vunpack.c.l.b16 %v1899
        %v2505 = vunpack.c.h.b16 %v1899
        %v2506 = vunpack.c.l.b16 %v1900
        %v2507 = vunpack.c.h.b16 %v1900
        %v2508 = vunpack.c.l.b16 %v1901
        %v2509 = vunpack.c.h.b16 %v1901
        %v2510 = vunpack.c.l.b16 %v1902
        %v2511 = vunpack.c.h.b16 %v1902
        %v2512 = vunpack.c.l.b16 %v1903
        %v2513 = vunpack.c.h.b16 %v1903
        %v2514 = vunpack.c.l.b16 %v1904
        %v2515 = vunpack.c.h.b16 %v1904
        %v2516 = vunpack.c.l.b16 %v1905
        %v2517 = vunpack.c.h.b16 %v1905
        %v2518 = vunpack.c.l.b16 %v1906
        %v2519 = vunpack.c.h.b16 %v1906
        %v2520 = vunpack.c.l.b16 %v1907
        %v2521 = vunpack.c.h.b16 %v1907
        %v2522 = vunpack.c.l.b16 %v1908
        %v2523 = vunpack.c.h.b16 %v1908
        %v2524 = vunpack.c.l.b16 %v1909
        %v2525 = vunpack.c.h.b16 %v1909
        %v2526 = vunpack.c.l.b16 %v1910
        %v2527 = vunpack.c.h.b16 %v1910
        %v2528 = vunpack.c.l.b16 %v1911
        %v2529 = vunpack.c.h.b16 %v1911
        %v2530 = vunpack.c.l.b16 %v1912
        %v2531 = vunpack.c.h.b16 %v1912
        %v2532 = vunpack.c.l.b16 %v1913
        %v2533 = vunpack.c.h.b16 %v1913
        %v2534 = vunpack.c.l.b16 %v1914
        %v2535 = vunpack.c.h.b16 %v1914
        %v2536 = vunpack.c.l.b16 %v1915
        %v2537 = vunpack.c.h.b16 %v1915
        %v2538 = vunpack.c.l.b16 %v1916
        %v2539 = vunpack.c.h.b16 %v1916
        %v2540 = vunpack.c.l.b16 %v1917
        %v2541 = vunpack.c.h.b16 %v1917
        %v2542 = vunpack.c.l.b16 %v1918
        %v2543 = vunpack.c.h.b16 %v1918
        %v2544 = vunpack.c.l.b16 %v1919
        %v2545 = vunpack.c.h.b16 %v1919
        %v2546 = vunpack.c.l.b16 %v1920
        %v2547 = vunpack.c.h.b16 %v1920
        %v2548 = vunpack.c.l.b16 %v1921
        %v2549 = vunpack.c.h.b16 %v1921
        %v2550 = vunpack.c.l.b16 %v1922
        %v2551 = vunpack.c.h.b16 %v1922
        %v2552 = vunpack.c.l.b16 %v1923
        %v2553 = vunpack.c.h.b16 %v1923
        %v2554 = vunpack.c.l.b16 %v1924
        %v2555 = vunpack.c.h.b16 %v1924
        %v2556 = vunpack.c.l.b16 %v1925
        %v2557 = vunpack.c.h.b16 %v1925
        %v2558 = vunpack.c.l.b16 %v1926
        %v2559 = vunpack.c.h.b16 %v1926
        %v2560 = vunpack.c.l.b16 %v1927
        %v2561 = vunpack.c.h.b16 %v1927
        %v2562 = vunpack.c.l.b16 %v1928
        %v2563 = vunpack.c.h.b16 %v1928
        %v2564 = vunpack.c.l.b16 %v1929
        %v2565 = vunpack.c.h.b16 %v1929
        %v2566 = vunpack.c.l.b16 %v1930
        %v2567 = vunpack.c.h.b16 %v1930
        %v2568 = vunpack.c.l.b16 %v1931
        %v2569 = vunpack.c.h.b16 %v1931
        %v2570 = vunpack.c.l.b16 %v1932
        %v2571 = vunpack.c.h.b16 %v1932
        %v2572 = vunpack.c.l.b16 %v1933
        %v2573 = vunpack.c.h.b16 %v1933
        %v2574 = vunpack.c.l.b16 %v1934
        %v2575 = vunpack.c.h.b16 %v1934
        %v2576 = vunpack.c.l.b16 %v1935
        %v2577 = vunpack.c.h.b16 %v1935
        %v2578 = vunpack.c.l.b16 %v1936
        %v2579 = vunpack.c.h.b16 %v1936
        %v2580 = vunpack.c.l.b16 %v1937
        %v2581 = vunpack.c.h.b16 %v1937
        %v2582 = vunpack.c.l.b16 %v1938
        %v2583 = vunpack.c.h.b16 %v1938
        %v2584 = vunpack.c.l.b16 %v1939
        %v2585 = vunpack.c.h.b16 %v1939
        %v2586 = vunpack.c.l.b16 %v1940
        %v2587 = vunpack.c.h.b16 %v1940
        %v2588 = vunpack.c.l.b16 %v1941
        %v2589 = vunpack.c.h.b16 %v1941
        %v2590 = vunpack.c.l.b16 %v1942
        %v2591 = vunpack.c.h.b16 %v1942
        %v2592 = vunpack.c.l.b16 %v1943
        %v2593 = vunpack.c.h.b16 %v1943
        %v2594 = vunpack.c.l.b16 %v1944
        %v2595 = vunpack.c.h.b16 %v1944
        %v2596 = vunpack.c.l.b16 %v1945
        %v2597 = vunpack.c.h.b16 %v1945
        %v2598 = vunpack.c.l.b16 %v1946
        %v2599 = vunpack.c.h.b16 %v1946
        %v2600 = vunpack.c.l.b16 %v1947
        %v2601 = vunpack.c.h.b16 %v1947
        %v2602 = vunpack.c.l.b16 %v1948
        %v2603 = vunpack.c.h.b16 %v1948
        %v2604 = vunpack.c.l.b16 %v1949
        %v2605 = vunpack.c.h.b16 %v1949
        %v2606 = vunpack.c.l.b16 %v1950
        %v2607 = vunpack.c.h.b16 %v1950
        %v2608 = vunpack.c.l.b16 %v1951
        %v2609 = vunpack.c.h.b16 %v1951
        %v2610 = vunpack.c.l.b16 %v1952
        %v2611 = vunpack.c.h.b16 %v1952
        %v2612 = vunpack.c.l.b16 %v1953
        %v2613 = vunpack.c.h.b16 %v1953
        %v2614 = vunpack.c.l.b16 %v1954
        %v2615 = vunpack.c.h.b16 %v1954
        %v2616 = vunpack.c.l.b16 %v1955
        %v2617 = vunpack.c.h.b16 %v1955
        %v2618 = vunpack.c.l.b16 %v1956
        %v2619 = vunpack.c.h.b16 %v1956
        %v2620 = vunpack.c.l.b16 %v1957
        %v2621 = vunpack.c.h.b16 %v1957
        %v2622 = vunpack.c.l.b16 %v1958
        %v2623 = vunpack.c.h.b16 %v1958
        %v2624 = vunpack.c.l.b16 %v1959
        %v2625 = vunpack.c.h.b16 %v1959
        %v2626 = vunpack.c.l.b16 %v1960
        %v2627 = vunpack.c.h.b16 %v1960
        %v2628 = vunpack.c.l.b16 %v1961
        %v2629 = vunpack.c.h.b16 %v1961
        %v2630 = vunpack.c.l.b16 %v1962
        %v2631 = vunpack.c.h.b16 %v1962
        %v2632 = vunpack.c.l.b16 %v1963
        %v2633 = vunpack.c.h.b16 %v1963
        %v2634 = vunpack.c.l.b16 %v1964
        %v2635 = vunpack.c.h.b16 %v1964
        %v2636 = vunpack.c.l.b16 %v1965
        %v2637 = vunpack.c.h.b16 %v1965
        %v2638 = vunpack.c.l.b16 %v1966
        %v2639 = vunpack.c.h.b16 %v1966
        %v2640 = vunpack.c.l.b16 %v1967
        %v2641 = vunpack.c.h.b16 %v1967
        %v2642 = vunpack.c.l.b16 %v1968
        %v2643 = vunpack.c.h.b16 %v1968
        %v2644 = vunpack.c.l.b16 %v1969
        %v2645 = vunpack.c.h.b16 %v1969
        %v2646 = vunpack.c.l.b16 %v1970
        %v2647 = vunpack.c.h.b16 %v1970
        %v2648 = vunpack.c.l.b16 %v1971
        %v2649 = vunpack.c.h.b16 %v1971
        %v2650 = vunpack.c.l.b16 %v1972
        %v2651 = vunpack.c.h.b16 %v1972
        %v2652 = vunpack.c.l.b16 %v1973
        %v2653 = vunpack.c.h.b16 %v1973
        %v2654 = vunpack.c.l.b16 %v1974
        %v2655 = vunpack.c.h.b16 %v1974
        %v2656 = vunpack.c.l.b16 %v1975
        %v2657 = vunpack.c.h.b16 %v1975
        %v2658 = vunpack.c.l.b16 %v1976
        %v2659 = vunpack.c.h.b16 %v1976
        %v2660 = vunpack.c.l.b16 %v1977
        %v2661 = vunpack.c.h.b16 %v1977
        %v2662 = vunpack.c.l.b16 %v1978
        %v2663 = vunpack.c.h.b16 %v1978
        %v2664 = vunpack.c.l.b16 %v1979
        %v2665 = vunpack.c.h.b16 %v1979
        %v2666 = vunpack.c.l.b16 %v1980
        %v2667 = vunpack.c.h.b16 %v1980
        %v2668 = vunpack.c.l.b16 %v1981
        %v2669 = vunpack.c.h.b16 %v1981
        %v2670 = vunpack.c.l.b16 %v1982
        %v2671 = vunpack.c.h.b16 %v1982
        %v2672 = vunpack.c.l.b16 %v1983
        %v2673 = vunpack.c.h.b16 %v1983
        %v2674 = vunpack.c.l.b16 %v1984
        %v2675 = vunpack.c.h.b16 %v1984
        %v2676 = vunpack.c.l.b16 %v1985
        %v2677 = vunpack.c.h.b16 %v1985
        %v2678 = vunpack.c.l.b16 %v1986
        %v2679 = vunpack.c.h.b16 %v1986
        %v2680 = vunpack.c.l.b16 %v1987
        %v2681 = vunpack.c.h.b16 %v1987
        %v2682 = vunpack.c.l.b16 %v1988
        %v2683 = vunpack.c.h.b16 %v1988
        %v2684 = vunpack.c.l.b16 %v1989
        %v2685 = vunpack.c.h.b16 %v1989
        %v2686 = vunpack.c.l.b16 %v1990
        %v2687 = vunpack.c.h.b16 %v1990
        %v2688 = vunpack.c.l.b16 %v1991
        %v2689 = vunpack.c.h.b16 %v1991
        %v2690 = vunpack.c.l.b16 %v1992
        %v2691 = vunpack.c.h.b16 %v1992
        %v2692 = vunpack.c.l.b16 %v1993
        %v2693 = vunpack.c.h.b16 %v1993
        %v2694 = vunpack.c.l.b16 %v1994
        %v2695 = vunpack.c.h.b16 %v1994
        %v2696 = vunpack.c.l.b16 %v1995
        %v2697 = vunpack.c.h.b16 %v1995
        %v2698 = vunpack.c.l.b16 %v1996
        %v2699 = vunpack.c.h.b16 %v1996
        %v2700 = vunpack.c.l.b16 %v1997
        %v2701 = vunpack.c.h.b16 %v1997
        %v2702 = vunpack.c.l.b16 %v1998
        %v2703 = vunpack.c.h.b16 %v1998
        %v2704 = vunpack.c.l.b16 %v1999
        %v2705 = vunpack.c.h.b16 %v1999
        %v2706 = vunpack.c.l.b16 %v2000
        %v2707 = vunpack.c.h.b16 %v2000
        %v2708 = vunpack.c.l.b16 %v2001
        %v2709 = vunpack.c.h.b16 %v2001
        %v2710 = vunpack.c.l.b16 %v2002
        %v2711 = vunpack.c.h.b16 %v2002
        %v2712 = vunpack.c.l.b16 %v2003
        %v2713 = vunpack.c.h.b16 %v2003
        %v2714 = vunpack.c.l.b16 %v2004
        %v2715 = vunpack.c.h.b16 %v2004
        %v2716 = vunpack.c.l.b16 %v2005
        %v2717 = vunpack.c.h.b16 %v2005
        %v2718 = vunpack.c.l.b16 %v2006
        %v2719 = vunpack.c.h.b16 %v2006
        %v2720 = vunpack.c.l.b16 %v2007
        %v2721 = vunpack.c.h.b16 %v2007
        %v2722 = vunpack.c.l.b16 %v2008
        %v2723 = vunpack.c.h.b16 %v2008
        %v2724 = vunpack.c.l.b16 %v2009
        %v2725 = vunpack.c.h.b16 %v2009
        %v2726 = vunpack.c.l.b16 %v2010
        %v2727 = vunpack.c.h.b16 %v2010
        %v2728 = vunpack.c.l.b16 %v2011
        %v2729 = vunpack.c.h.b16 %v2011
        %v2730 = vunpack.c.l.b16 %v2012
        %v2731 = vunpack.c.h.b16 %v2012
        %v2732 = vunpack.c.l.b16 %v2013
        %v2733 = vunpack.c.h.b16 %v2013
        %v2734 = vunpack.c.l.b16 %v2014
        %v2735 = vunpack.c.h.b16 %v2014
        %v2736 = vunpack.c.l.b16 %v2015
        %v2737 = vunpack.c.h.b16 %v2015
        %v2738 = vunpack.c.l.b16 %v2016
        %v2739 = vunpack.c.h.b16 %v2016
        %v2740 = vunpack.c.l.b16 %v2017
        %v2741 = vunpack.c.h.b16 %v2017
        %v2742 = vunpack.c.l.b16 %v2018
        %v2743 = vunpack.c.h.b16 %v2018
        %v2744 = vunpack.c.l.b16 %v2019
        %v2745 = vunpack.c.h.b16 %v2019
        %v2746 = vunpack.c.l.b16 %v2020
        %v2747 = vunpack.c.h.b16 %v2020
        %v2748 = vunpack.c.l.b16 %v2021
        %v2749 = vunpack.c.h.b16 %v2021
        %v2750 = vunpack.c.l.b16 %v2022
        %v2751 = vunpack.c.h.b16 %v2022
        %v2752 = vunpack.c.l.b16 %v2023
        %v2753 = vunpack.c.h.b16 %v2023
        %v2754 = vunpack.c.l.b16 %v2024
        %v2755 = vunpack.c.h.b16 %v2024
        %v2756 = vunpack.c.l.b16 %v2025
        %v2757 = vunpack.c.h.b16 %v2025
        %v2758 = vunpack.c.l.b16 %v2026
        %v2759 = vunpack.c.h.b16 %v2026
        %v2760 = vunpack.c.l.b16 %v2027
        %v2761 = vunpack.c.h.b16 %v2027
        %v2762 = vunpack.c.l.b16 %v2028
        %v2763 = vunpack.c.h.b16 %v2028
        %v2764 = vunpack.c.l.b16 %v2029
        %v2765 = vunpack.c.h.b16 %v2029
        %v2766 = vunpack.c.l.b16 %v2030
        %v2767 = vunpack.c.h.b16 %v2030
        %v2768 = vunpack.c.l.b16 %v2031
        %v2769 = vunpack.c.h.b16 %v2031
        %v2770 = vunpack.c.l.b16 %v2032
        %v2771 = vunpack.c.h.b16 %v2032
        %v2772 = vunpack.c.l.b16 %v2033
        %v2773 = vunpack.c.h.b16 %v2033
        %v2774 = vunpack.c.l.b16 %v2034
        %v2775 = vunpack.c.h.b16 %v2034
        %v2776 = vunpack.c.l.b16 %v2035
        %v2777 = vunpack.c.h.b16 %v2035
        %v2778 = vunpack.c.l.b16 %v2036
        %v2779 = vunpack.c.h.b16 %v2036
        %v2780 = vunpack.c.l.b16 %v2037
        %v2781 = vunpack.c.h.b16 %v2037
        %v2782 = vunpack.c.l.b16 %v2038
        %v2783 = vunpack.c.h.b16 %v2038
        %v2784 = vunpack.c.l.b16 %v2039
        %v2785 = vunpack.c.h.b16 %v2039
        %v2786 = vunpack.c.l.b16 %v2040
        %v2787 = vunpack.c.h.b16 %v2040
        %v2788 = vunpack.c.l.b16 %v2041
        %v2789 = vunpack.c.h.b16 %v2041
        %v2790 = vunpack.c.l.b16 %v2042
        %v2791 = vunpack.c.h.b16 %v2042
        %v2792 = vunpack.c.l.b16 %v2043
        %v2793 = vunpack.c.h.b16 %v2043
        %v2794 = vunpack.c.l.b16 %v2044
        %v2795 = vunpack.c.h.b16 %v2044
        %v2796 = vunpack.c.l.b16 %v2045
        %v2797 = vunpack.c.h.b16 %v2045
        %v2798 = vunpack.c.l.b16 %v2046
        %v2799 = vunpack.c.h.b16 %v2046
        %v2800 = vunpack.c.l.b16 %v2047
        %v2801 = vunpack.c.h.b16 %v2047
        %v2802 = vunpack.c.l.b16 %v2048
        %v2803 = vunpack.c.h.b16 %v2048
        %v2804 = vunpack.c.l.b16 %v2049
        %v2805 = vunpack.c.h.b16 %v2049
        %v2806 = vunpack.c.l.b16 %v2050
        %v2807 = vunpack.c.h.b16 %v2050
        %v2808 = vunpack.c.l.b16 %v2051
        %v2809 = vunpack.c.h.b16 %v2051
        %v2810 = vunpack.c.l.b16 %v2052
        %v2811 = vunpack.c.h.b16 %v2052
        %v2812 = vunpack.c.l.b16 %v2053
        %v2813 = vunpack.c.h.b16 %v2053
        %v2814 = vunpack.c.l.b16 %v2054
        %v2815 = vunpack.c.h.b16 %v2054
        %v2816 = vunpack.c.l.b16 %v2055
        %v2817 = vunpack.c.h.b16 %v2055
        %v2818 = vunpack.c.l.b16 %v2056
        %v2819 = vunpack.c.h.b16 %v2056
        %v2820 = vunpack.c.l.b16 %v2057
        %v2821 = vunpack.c.h.b16 %v2057
        %v2822 = vunpack.c.l.b16 %v2058
        %v2823 = vunpack.c.h.b16 %v2058
        %v2824 = vunpack.c.l.b16 %v2059
        %v2825 = vunpack.c.h.b16 %v2059
        %v2826 = vunpack.c.l.b16 %v2060
        %v2827 = vunpack.c.h.b16 %v2060
        %v2828 = vunpack.c.l.b16 %v2061
        %v2829 = vunpack.c.h.b16 %v2061
        %v2830 = vunpack.c.l.b16 %v2062
        %v2831 = vunpack.c.h.b16 %v2062
        %v2832 = vunpack.c.l.b16 %v2063
        %v2833 = vunpack.c.h.b16 %v2063
        %v2834 = vunpack.c.l.b16 %v2064
        %v2835 = vunpack.c.h.b16 %v2064
        %v2836 = vunpack.c.l.b16 %v2065
        %v2837 = vunpack.c.h.b16 %v2065
        %v2838 = vunpack.c.l.b16 %v2066
        %v2839 = vunpack.c.h.b16 %v2066
        %v2840 = vunpack.c.l.b16 %v2067
        %v2841 = vunpack.c.h.b16 %v2067
        %v2842 = vunpack.c.l.b16 %v2068
        %v2843 = vunpack.c.h.b16 %v2068
        %v2844 = vunpack.c.l.b16 %v2069
        %v2845 = vunpack.c.h.b16 %v2069
        %v2846 = vunpack.c.l.b16 %v2070
        %v2847 = vunpack.c.h.b16 %v2070
        %v2848 = vunpack.c.l.b16 %v2071
        %v2849 = vunpack.c.h.b16 %v2071
        %v2850 = vunpack.c.l.b16 %v2072
        %v2851 = vunpack.c.h.b16 %v2072
        %v2852 = vunpack.c.l.b16 %v2073
        %v2853 = vunpack.c.h.b16 %v2073
        %v2854 = vunpack.c.l.b16 %v2074
        %v2855 = vunpack.c.h.b16 %v2074
        %v2856 = vunpack.c.l.b16 %v2075
        %v2857 = vunpack.c.h.b16 %v2075
        %v2858 = vunpack.c.l.b16 %v2076
        %v2859 = vunpack.c.h.b16 %v2076
        %v2860 = vunpack.c.l.b16 %v2077
        %v2861 = vunpack.c.h.b16 %v2077
        %v2862 = vunpack.c.l.b16 %v2078
        %v2863 = vunpack.c.h.b16 %v2078
        %v2864 = vunpack.c.l.b16 %v2079
        %v2865 = vunpack.c.h.b16 %v2079
        %v2866 = vunpack.c.l.b16 %v2080
        %v2867 = vunpack.c.h.b16 %v2080
        %v2868 = vunpack.c.l.b16 %v2081
        %v2869 = vunpack.c.h.b16 %v2081
        %v2870 = vunpack.c.l.b16 %v2082
        %v2871 = vunpack.c.h.b16 %v2082
        %v2872 = vunpack.c.l.b16 %v2083
        %v2873 = vunpack.c.h.b16 %v2083
        %v2874 = vunpack.c.l.b16 %v2084
        %v2875 = vunpack.c.h.b16 %v2084
        %v2876 = vunpack.c.l.b16 %v2085
        %v2877 = vunpack.c.h.b16 %v2085
        %v2878 = vunpack.c.l.b16 %v2086
        %v2879 = vunpack.c.h.b16 %v2086
        %v2880 = vunpack.c.l.b16 %v2087
        %v2881 = vunpack.c.h.b16 %v2087
        %v2882 = vunpack.c.l.b16 %v2088
        %v2883 = vunpack.c.h.b16 %v2088
        %v2884 = vunpack.c.l.b16 %v2089
        %v2885 = vunpack.c.h.b16 %v2089
        %v2886 = vunpack.c.l.b16 %v2090
        %v2887 = vunpack.c.h.b16 %v2090
        %v2888 = vunpack.c.l.b16 %v2091
        %v2889 = vunpack.c.h.b16 %v2091
        %v2890 = vunpack.c.l.b16 %v2092
        %v2891 = vunpack.c.h.b16 %v2092
        %v2892 = vunpack.c.l.b16 %v2093
        %v2893 = vunpack.c.h.b16 %v2093
        %v2894 = vunpack.c.l.b16 %v2094
        %v2895 = vunpack.c.h.b16 %v2094
        %v2896 = vunpack.c.l.b16 %v2095
        %v2897 = vunpack.c.h.b16 %v2095
        %v2898 = vunpack.c.l.b16 %v2096
        %v2899 = vunpack.c.h.b16 %v2096
        %v2900 = vunpack.c.l.b16 %v2097
        %v2901 = vunpack.c.h.b16 %v2097
        %v2902 = vunpack.c.l.b16 %v2098
        %v2903 = vunpack.c.h.b16 %v2098
        %v2904 = vunpack.c.l.b16 %v2099
        %v2905 = vunpack.c.h.b16 %v2099
        %v2906 = vunpack.c.l.b16 %v2100
        %v2907 = vunpack.c.h.b16 %v2100
        %v2908 = vunpack.c.l.b16 %v2101
        %v2909 = vunpack.c.h.b16 %v2101
        %v2910 = vunpack.c.l.b16 %v2102
        %v2911 = vunpack.c.h.b16 %v2102
        %v2912 = vunpack.c.l.b16 %v2103
        %v2913 = vunpack.c.h.b16 %v2103
        %v2914 = vpack.c.b16 %v2410, %v2402
        %v2915 = vpack.c.b16 %v2411, %v2403
        %v2916 = vpack.c.b16 %v2412, %v2404
        %v2917 = vpack.c.b16 %v2413, %v2405
        %v2918 = vpack.c.b16 %v2414, %v2406
        %v2919 = vpack.c.b16 %v2415, %v2407
        %v2920 = vpack.c.b16 %v2416, %v2408
        %v2921 = vpack.c.b16 %v2417, %v2409
        %v2922 = vpack.c.b16 %v2426, %v2418
        %v2923 = vpack.c.b16 %v2427, %v2419
        %v2924 = vpack.c.b16 %v2428, %v2420
        %v2925 = vpack.c.b16 %v2429, %v2421
        %v2926 = vpack.c.b16 %v2430, %v2422
        %v2927 = vpack.c.b16 %v2431, %v2423
        %v2928 = vpack.c.b16 %v2432, %v2424
        %v2929 = vpack.c.b16 %v2433, %v2425
        %v2930 = vpack.c.b16 %v2442, %v2434
        %v2931 = vpack.c.b16 %v2443, %v2435
        %v2932 = vpack.c.b16 %v2444, %v2436
        %v2933 = vpack.c.b16 %v2445, %v2437
        %v2934 = vpack.c.b16 %v2446, %v2438
        %v2935 = vpack.c.b16 %v2447, %v2439
        %v2936 = vpack.c.b16 %v2448, %v2440
        %v2937 = vpack.c.b16 %v2449, %v2441
        %v2938 = vpack.c.b16 %v2458, %v2450
        %v2939 = vpack.c.b16 %v2459, %v2451
        %v2940 = vpack.c.b16 %v2460, %v2452
        %v2941 = vpack.c.b16 %v2461, %v2453
        %v2942 = vpack.c.b16 %v2462, %v2454
        %v2943 = vpack.c.b16 %v2463, %v2455
        %v2944 = vpack.c.b16 %v2464, %v2456
        %v2945 = vpack.c.b16 %v2465, %v2457
        %v2946 = vpack.c.b16 %v2474, %v2466
        %v2947 = vpack.c.b16 %v2475, %v2467
        %v2948 = vpack.c.b16 %v2476, %v2468
        %v2949 = vpack.c.b16 %v2477, %v2469
        %v2950 = vpack.c.b16 %v2478, %v2470
        %v2951 = vpack.c.b16 %v2479, %v2471
        %v2952 = vpack.c.b16 %v2480, %v2472
        %v2953 = vpack.c.b16 %v2481, %v2473
        %v2954 = vpack.c.b16 %v2490, %v2482
        %v2955 = vpack.c.b16 %v2491, %v2483
        %v2956 = vpack.c.b16 %v2492, %v2484
        %v2957 = vpack.c.b16 %v2493, %v2485
        %v2958 = vpack.c.b16 %v2494, %v2486
        %v2959 = vpack.c.b16 %v2495, %v2487
        %v2960 = vpack.c.b16 %v2496, %v2488
        %v2961 = vpack.c.b16 %v2497, %v2489
        %v2962 = vpack.c.b16 %v2506, %v2498
        %v2963 = vpack.c.b16 %v2507, %v2499
        %v2964 = vpack.c.b16 %v2508, %v2500
        %v2965 = vpack.c.b16 %v2509, %v2501
        %v2966 = vpack.c.b16 %v2510, %v2502
        %v2967 = vpack.c.b16 %v2511, %v2503
        %v2968 = vpack.c.b16 %v2512, %v2504
        %v2969 = vpack.c.b16 %v2513, %v2505
        %v2970 = vpack.c.b16 %v2522, %v2514
        %v2971 = vpack.c.b16 %v2523, %v2515
        %v2972 = vpack.c.b16 %v2524, %v2516
        %v2973 = vpack.c.b16 %v2525, %v2517
        %v2974 = vpack.c.b16 %v2526, %v2518
        %v2975 = vpack.c.b16 %v2527, %v2519
        %v2976 = vpack.c.b16 %v2528, %v2520
        %v2977 = vpack.c.b16 %v2529, %v2521
        %v2978 = vpack.c.b16 %v2538, %v2530
        %v2979 = vpack.c.b16 %v2539, %v2531
        %v2980 = vpack.c.b16 %v2540, %v2532
        %v2981 = vpack.c.b16 %v2541, %v2533
        %v2982 = vpack.c.b16 %v2542, %v2534
        %v2983 = vpack.c.b16 %v2543, %v2535
        %v2984 = vpack.c.b16 %v2544, %v2536
        %v2985 = vpack.c.b16 %v2545, %v2537
        %v2986 = vpack.c.b16 %v2554, %v2546
        %v2987 = vpack.c.b16 %v2555, %v2547
        %v2988 = vpack.c.b16 %v2556, %v2548
        %v2989 = vpack.c.b16 %v2557, %v2549
        %v2990 = vpack.c.b16 %v2558, %v2550
        %v2991 = vpack.c.b16 %v2559, %v2551
        %v2992 = vpack.c.b16 %v2560, %v2552
        %v2993 = vpack.c.b16 %v2561, %v2553
        %v2994 = vpack.c.b16 %v2570, %v2562
        %v2995 = vpack.c.b16 %v2571, %v2563
        %v2996 = vpack.c.b16 %v2572, %v2564
        %v2997 = vpack.c.b16 %v2573, %v2565
        %v2998 = vpack.c.b16 %v2574, %v2566
        %v2999 = vpack.c.b16 %v2575, %v2567
        %v3000 = vpack.c.b16 %v2576, %v2568
        %v3001 = vpack.c.b16 %v2577, %v2569
        %v3002 = vpack.c.b16 %v2586, %v2578
        %v3003 = vpack.c.b16 %v2587, %v2579
        %v3004 = vpack.c.b16 %v2588, %v2580
        %v3005 = vpack.c.b16 %v2589, %v2581
        %v3006 = vpack.c.b16 %v2590, %v2582
        %v3007 = vpack.c.b16 %v2591, %v2583
        %v3008 = vpack.c.b16 %v2592, %v2584
        %v3009 = vpack.c.b16 %v2593, %v2585
        %v3010 = vpack.c.b16 %v2602, %v2594
        %v3011 = vpack.c.b16 %v2603, %v2595
        %v3012 = vpack.c.b16 %v2604, %v2596
        %v3013 = vpack.c.b16 %v2605, %v2597
        %v3014 = vpack.c.b16 %v2606, %v2598
        %v3015 = vpack.c.b16 %v2607, %v2599
        %v3016 = vpack.c.b16 %v2608, %v2600
        %v3017 = vpack.c.b16 %v2609, %v2601
        %v3018 = vpack.c.b16 %v2618, %v2610
        %v3019 = vpack.c.b16 %v2619, %v2611
        %v3020 = vpack.c.b16 %v2620, %v2612
        %v3021 = vpack.c.b16 %v2621, %v2613
        %v3022 = vpack.c.b16 %v2622, %v2614
        %v3023 = vpack.c.b16 %v2623, %v2615
        %v3024 = vpack.c.b16 %v2624, %v2616
        %v3025 = vpack.c.b16 %v2625, %v2617
        %v3026 = vpack.c.b16 %v2634, %v2626
        %v3027 = vpack.c.b16 %v2635, %v2627
        %v3028 = vpack.c.b16 %v2636, %v2628
        %v3029 = vpack.c.b16 %v2637, %v2629
        %v3030 = vpack.c.b16 %v2638, %v2630
        %v3031 = vpack.c.b16 %v2639, %v2631
        %v3032 = vpack.c.b16 %v2640, %v2632
        %v3033 = vpack.c.b16 %v2641, %v2633
        %v3034 = vpack.c.b16 %v2650, %v2642
        %v3035 = vpack.c.b16 %v2651, %v2643
        %v3036 = vpack.c.b16 %v2652, %v2644
        %v3037 = vpack.c.b16 %v2653, %v2645
        %v3038 = vpack.c.b16 %v2654, %v2646
        %v3039 = vpack.c.b16 %v2655, %v2647
        %v3040 = vpack.c.b16 %v2656, %v2648
        %v3041 = vpack.c.b16 %v2657, %v2649
        %v3042 = vpack.c.b16 %v2666, %v2658
        %v3043 = vpack.c.b16 %v2667, %v2659
        %v3044 = vpack.c.b16 %v2668, %v2660
        %v3045 = vpack.c.b16 %v2669, %v2661
        %v3046 = vpack.c.b16 %v2670, %v2662
        %v3047 = vpack.c.b16 %v2671, %v2663
        %v3048 = vpack.c.b16 %v2672, %v2664
        %v3049 = vpack.c.b16 %v2673, %v2665
        %v3050 = vpack.c.b16 %v2682, %v2674
        %v3051 = vpack.c.b16 %v2683, %v2675
        %v3052 = vpack.c.b16 %v2684, %v2676
        %v3053 = vpack.c.b16 %v2685, %v2677
        %v3054 = vpack.c.b16 %v2686, %v2678
        %v3055 = vpack.c.b16 %v2687, %v2679
        %v3056 = vpack.c.b16 %v2688, %v2680
        %v3057 = vpack.c.b16 %v2689, %v2681
        %v3058 = vpack.c.b16 %v2698, %v2690
        %v3059 = vpack.c.b16 %v2699, %v2691
        %v3060 = vpack.c.b16 %v2700, %v2692
        %v3061 = vpack.c.b16 %v2701, %v2693
        %v3062 = vpack.c.b16 %v2702, %v2694
        %v3063 = vpack.c.b16 %v2703, %v2695
        %v3064 = vpack.c.b16 %v2704, %v2696
        %v3065 = vpack.c.b16 %v2705, %v2697
        %v3066 = vpack.c.b16 %v2714, %v2706
        %v3067 = vpack.c.b16 %v2715, %v2707
        %v3068 = vpack.c.b16 %v2716, %v2708
        %v3069 = vpack.c.b16 %v2717, %v2709
        %v3070 = vpack.c.b16 %v2718, %v2710
        %v3071 = vpack.c.b16 %v2719, %v2711
        %v3072 = vpack.c.b16 %v2720, %v2712
        %v3073 = vpack.c.b16 %v2721, %v2713
        %v3074 = vpack.c.b16 %v2730, %v2722
        %v3075 = vpack.c.b16 %v2731, %v2723
        %v3076 = vpack.c.b16 %v2732, %v2724
        %v3077 = vpack.c.b16 %v2733, %v2725
        %v3078 = vpack.c.b16 %v2734, %v2726
        %v3079 = vpack.c.b16 %v2735, %v2727
        %v3080 = vpack.c.b16 %v2736, %v2728
        %v3081 = vpack.c.b16 %v2737, %v2729
        %v3082 = vpack.c.b16 %v2746, %v2738
        %v3083 = vpack.c.b16 %v2747, %v2739
        %v3084 = vpack.c.b16 %v2748, %v2740
        %v3085 = vpack.c.b16 %v2749, %v2741
        %v3086 = vpack.c.b16 %v2750, %v2742
        %v3087 = vpack.c.b16 %v2751, %v2743
        %v3088 = vpack.c.b16 %v2752, %v2744
        %v3089 = vpack.c.b16 %v2753, %v2745
        %v3090 = vpack.c.b16 %v2762, %v2754
        %v3091 = vpack.c.b16 %v2763, %v2755
        %v3092 = vpack.c.b16 %v2764, %v2756
        %v3093 = vpack.c.b16 %v2765, %v2757
        %v3094 = vpack.c.b16 %v2766, %v2758
        %v3095 = vpack.c.b16 %v2767, %v2759
        %v3096 = vpack.c.b16 %v2768, %v2760
        %v3097 = vpack.c.b16 %v2769, %v2761
        %v3098 = vpack.c.b16 %v2778, %v2770
        %v3099 = vpack.c.b16 %v2779, %v2771
        %v3100 = vpack.c.b16 %v2780, %v2772
        %v3101 = vpack.c.b16 %v2781, %v2773
        %v3102 = vpack.c.b16 %v2782, %v2774
        %v3103 = vpack.c.b16 %v2783, %v2775
        %v3104 = vpack.c.b16 %v2784, %v2776
        %v3105 = vpack.c.b16 %v2785, %v2777
        %v3106 = vpack.c.b16 %v2794, %v2786
        %v3107 = vpack.c.b16 %v2795, %v2787
        %v3108 = vpack.c.b16 %v2796, %v2788
        %v3109 = vpack.c.b16 %v2797, %v2789
        %v3110 = vpack.c.b16 %v2798, %v2790
        %v3111 = vpack.c.b16 %v2799, %v2791
        %v3112 = vpack.c.b16 %v2800, %v2792
        %v3113 = vpack.c.b16 %v2801, %v2793
        %v3114 = vpack.c.b16 %v2810, %v2802
        %v3115 = vpack.c.b16 %v2811, %v2803
        %v3116 = vpack.c.b16 %v2812, %v2804
        %v3117 = vpack.c.b16 %v2813, %v2805
        %v3118 = vpack.c.b16 %v2814, %v2806
        %v3119 = vpack.c.b16 %v2815, %v2807
        %v3120 = vpack.c.b16 %v2816, %v2808
        %v3121 = vpack.c.b16 %v2817, %v2809
        %v3122 = vpack.c.b16 %v2826, %v2818
        %v3123 = vpack.c.b16 %v2827, %v2819
        %v3124 = vpack.c.b16 %v2828, %v2820
        %v3125 = vpack.c.b16 %v2829, %v2821
        %v3126 = vpack.c.b16 %v2830, %v2822
        %v3127 = vpack.c.b16 %v2831, %v2823
        %v3128 = vpack.c.b16 %v2832, %v2824
        %v3129 = vpack.c.b16 %v2833, %v2825
        %v3130 = vpack.c.b16 %v2842, %v2834
        %v3131 = vpack.c.b16 %v2843, %v2835
        %v3132 = vpack.c.b16 %v2844, %v2836
        %v3133 = vpack.c.b16 %v2845, %v2837
        %v3134 = vpack.c.b16 %v2846, %v2838
        %v3135 = vpack.c.b16 %v2847, %v2839
        %v3136 = vpack.c.b16 %v2848, %v2840
        %v3137 = vpack.c.b16 %v2849, %v2841
        %v3138 = vpack.c.b16 %v2858, %v2850
        %v3139 = vpack.c.b16 %v2859, %v2851
        %v3140 = vpack.c.b16 %v2860, %v2852
        %v3141 = vpack.c.b16 %v2861, %v2853
        %v3142 = vpack.c.b16 %v2862, %v2854
        %v3143 = vpack.c.b16 %v2863, %v2855
        %v3144 = vpack.c.b16 %v2864, %v2856
        %v3145 = vpack.c.b16 %v2865, %v2857
        %v3146 = vpack.c.b16 %v2874, %v2866
        %v3147 = vpack.c.b16 %v2875, %v2867
        %v3148 = vpack.c.b16 %v2876, %v2868
        %v3149 = vpack.c.b16 %v2877, %v2869
        %v3150 = vpack.c.b16 %v2878, %v2870
        %v3151 = vpack.c.b16 %v2879, %v2871
        %v3152 = vpack.c.b16 %v2880, %v2872
        %v3153 = vpack.c.b16 %v2881, %v2873
        %v3154 = vpack.c.b16 %v2890, %v2882
        %v3155 = vpack.c.b16 %v2891, %v2883
        %v3156 = vpack.c.b16 %v2892, %v2884
        %v3157 = vpack.c.b16 %v2893, %v2885
        %v3158 = vpack.c.b16 %v2894, %v2886
        %v3159 = vpack.c.b16 %v2895, %v2887
        %v3160 = vpack.c.b16 %v2896, %v2888
        %v3161 = vpack.c.b16 %v2897, %v2889
        %v3162 = vpack.c.b16 %v2906, %v2898
        %v3163 = vpack.c.b16 %v2907, %v2899
        %v3164 = vpack.c.b16 %v2908, %v2900
        %v3165 = vpack.c.b16 %v2909, %v2901
        %v3166 = vpack.c.b16 %v2910, %v2902
        %v3167 = vpack.c.b16 %v2911, %v2903
        %v3168 = vpack.c.b16 %v2912, %v2904
        %v3169 = vpack.c.b16 %v2913, %v2905
        %3426 = vmatprep.subr.bf16.mxu0 %v2915
        %3427 = vmatpush1.bf16.msra.mxu0 %v2914
        %3428 = vmatprep.subr.bf16.mxu0 %v2923
        %3429 = vmatpush1.bf16.msra.mxu0 %v2922
        %3430 = vmatprep.subr.bf16.mxu0 %v2931
        %3431 = vmatpush1.bf16.msra.mxu0 %v2930
        %3432 = vmatprep.subr.bf16.mxu0 %v2939
        %3433 = vmatpush1.bf16.msra.mxu0 %v2938
        %3434 = vmatprep.subr.bf16.mxu0 %v2947
        %3435 = vmatpush1.bf16.msra.mxu0 %v2946
        %3436 = vmatprep.subr.bf16.mxu0 %v2955
        %3437 = vmatpush1.bf16.msra.mxu0 %v2954
        %3438 = vmatprep.subr.bf16.mxu0 %v2963
        %3439 = vmatpush1.bf16.msra.mxu0 %v2962
        %3440 = vmatprep.subr.bf16.mxu0 %v2971
        %3441 = vmatpush1.bf16.msra.mxu0 %v2970
        %3442 = vmatprep.subr.bf16.mxu0 %v2979
        %3443 = vmatpush1.bf16.msra.mxu0 %v2978
        %3444 = vmatprep.subr.bf16.mxu0 %v2987
        %3445 = vmatpush1.bf16.msra.mxu0 %v2986
        %3446 = vmatprep.subr.bf16.mxu0 %v2995
        %3447 = vmatpush1.bf16.msra.mxu0 %v2994
        %3448 = vmatprep.subr.bf16.mxu0 %v3003
        %3449 = vmatpush1.bf16.msra.mxu0 %v3002
        %3450 = vmatprep.subr.bf16.mxu0 %v3011
        %3451 = vmatpush1.bf16.msra.mxu0 %v3010
        %3452 = vmatprep.subr.bf16.mxu0 %v3019
        %3453 = vmatpush1.bf16.msra.mxu0 %v3018
        %3454 = vmatprep.subr.bf16.mxu0 %v3027
        %3455 = vmatpush1.bf16.msra.mxu0 %v3026
        %3456 = vmatprep.subr.bf16.mxu0 %v3035
        %3457 = vmatpush1.bf16.msra.mxu0 %v3034
        %3458 = vmatprep.mubr.bf16.mxu0 %v1845
        %3459 = vmatmul.mubr.bf16.gmra.mrb[0].mxu0 %v1844
        %v3460 = vpop.f32.mrb[0].mxu0
        %v3461 = vadd.f32 %v2109, %v3460
        %v3462 = vpop.f32.mrb[0].mxu0
        %v3463 = vadd.f32 %v2113, %v3462
        %v3464 = vpop.f32.mrb[0].mxu0
        %v3465 = vpop.f32.mrb[0].mxu0
        %3466 = vdwg.mxu0
        %3467 = vmatprep.subr.bf16.mxu0 %v3043
        %3468 = vmatpush1.bf16.msra.mxu0 %v3042
        %3469 = vmatprep.subr.bf16.mxu0 %v3051
        %3470 = vmatpush1.bf16.msra.mxu0 %v3050
        %3471 = vmatprep.subr.bf16.mxu0 %v3059
        %3472 = vmatpush1.bf16.msra.mxu0 %v3058
        %3473 = vmatprep.subr.bf16.mxu0 %v3067
        %3474 = vmatpush1.bf16.msra.mxu0 %v3066
        %3475 = vmatprep.subr.bf16.mxu0 %v3075
        %3476 = vmatpush1.bf16.msra.mxu0 %v3074
        %3477 = vmatprep.subr.bf16.mxu0 %v3083
        %3478 = vmatpush1.bf16.msra.mxu0 %v3082
        %3479 = vmatprep.subr.bf16.mxu0 %v3091
        %3480 = vmatpush1.bf16.msra.mxu0 %v3090
        %3481 = vmatprep.subr.bf16.mxu0 %v3099
        %3482 = vmatpush1.bf16.msra.mxu0 %v3098
        %3483 = vmatprep.subr.bf16.mxu0 %v3107
        %3484 = vmatpush1.bf16.msra.mxu0 %v3106
        %3485 = vmatprep.subr.bf16.mxu0 %v3115
        %3486 = vmatpush1.bf16.msra.mxu0 %v3114
        %3487 = vmatprep.subr.bf16.mxu0 %v3123
        %3488 = vmatpush1.bf16.msra.mxu0 %v3122
        %3489 = vmatprep.subr.bf16.mxu0 %v3131
        %3490 = vmatpush1.bf16.msra.mxu0 %v3130
        %3491 = vmatprep.subr.bf16.mxu0 %v3139
        %3492 = vmatpush1.bf16.msra.mxu0 %v3138
        %3493 = vmatprep.subr.bf16.mxu0 %v3147
        %3494 = vmatpush1.bf16.msra.mxu0 %v3146
        %3495 = vmatprep.subr.bf16.mxu0 %v3155
        %3496 = vmatpush1.bf16.msra.mxu0 %v3154
        %3497 = vmatprep.subr.bf16.mxu0 %v3163
        %3498 = vmatpush1.bf16.msra.mxu0 %v3162
        %3499 = vmatprep.mubr.bf16.mxu0 %v1847
        %3500 = vmatmul.mubr.bf16.gmra.mrb[0].mxu0 %v1846
        %v3501 = vpop.f32.mrb[0].mxu0
        %v3502 = vadd.f32 %v3461, %v3501
        %v3503 = vpop.f32.mrb[0].mxu0
        %v3504 = vadd.f32 %v3463, %v3503
        %v3505 = vpop.f32.mrb[0].mxu0
        %v3506 = vpop.f32.mrb[0].mxu0
        %3507 = vdwg.mxu0
        %3508 = vmatprep.subr.bf16.mxu0 %v2917
        %3509 = vmatpush1.bf16.msra.mxu0 %v2916
        %3510 = vmatprep.subr.bf16.mxu0 %v2925
        %3511 = vmatpush1.bf16.msra.mxu0 %v2924
        %3512 = vmatprep.subr.bf16.mxu0 %v2933
        %3513 = vmatpush1.bf16.msra.mxu0 %v2932
        %3514 = vmatprep.subr.bf16.mxu0 %v2941
        %3515 = vmatpush1.bf16.msra.mxu0 %v2940
        %3516 = vmatprep.subr.bf16.mxu0 %v2949
        %3517 = vmatpush1.bf16.msra.mxu0 %v2948
        %3518 = vmatprep.subr.bf16.mxu0 %v2957
        %3519 = vmatpush1.bf16.msra.mxu0 %v2956
        %3520 = vmatprep.subr.bf16.mxu0 %v2965
        %3521 = vmatpush1.bf16.msra.mxu0 %v2964
        %3522 = vmatprep.subr.bf16.mxu0 %v2973
        %3523 = vmatpush1.bf16.msra.mxu0 %v2972
        %3524 = vmatprep.subr.bf16.mxu0 %v2981
        %3525 = vmatpush1.bf16.msra.mxu0 %v2980
        %3526 = vmatprep.subr.bf16.mxu0 %v2989
        %3527 = vmatpush1.bf16.msra.mxu0 %v2988
        %3528 = vmatprep.subr.bf16.mxu0 %v2997
        %3529 = vmatpush1.bf16.msra.mxu0 %v2996
        %3530 = vmatprep.subr.bf16.mxu0 %v3005
        %3531 = vmatpush1.bf16.msra.mxu0 %v3004
        %3532 = vmatprep.subr.bf16.mxu0 %v3013
        %3533 = vmatpush1.bf16.msra.mxu0 %v3012
        %3534 = vmatprep.subr.bf16.mxu0 %v3021
        %3535 = vmatpush1.bf16.msra.mxu0 %v3020
        %3536 = vmatprep.subr.bf16.mxu0 %v3029
        %3537 = vmatpush1.bf16.msra.mxu0 %v3028
        %3538 = vmatprep.subr.bf16.mxu0 %v3037
        %3539 = vmatpush1.bf16.msra.mxu0 %v3036
        %3540 = vmatprep.mubr.bf16.mxu0 %v1845
        %3541 = vmatmul.mubr.bf16.gmra.mrb[0].mxu0 %v1844
        %v3542 = vpop.f32.mrb[0].mxu0
        %v3543 = vadd.f32 %v2117, %v3542
        %v3544 = vpop.f32.mrb[0].mxu0
        %v3545 = vadd.f32 %v2121, %v3544
        %v3546 = vpop.f32.mrb[0].mxu0
        %v3547 = vpop.f32.mrb[0].mxu0
        %3548 = vdwg.mxu0
        %3549 = vmatprep.subr.bf16.mxu0 %v3045
        %3550 = vmatpush1.bf16.msra.mxu0 %v3044
        %3551 = vmatprep.subr.bf16.mxu0 %v3053
        %3552 = vmatpush1.bf16.msra.mxu0 %v3052
        %3553 = vmatprep.subr.bf16.mxu0 %v3061
        %3554 = vmatpush1.bf16.msra.mxu0 %v3060
        %3555 = vmatprep.subr.bf16.mxu0 %v3069
        %3556 = vmatpush1.bf16.msra.mxu0 %v3068
        %3557 = vmatprep.subr.bf16.mxu0 %v3077
        %3558 = vmatpush1.bf16.msra.mxu0 %v3076
        %3559 = vmatprep.subr.bf16.mxu0 %v3085
        %3560 = vmatpush1.bf16.msra.mxu0 %v3084
        %3561 = vmatprep.subr.bf16.mxu0 %v3093
        %3562 = vmatpush1.bf16.msra.mxu0 %v3092
        %3563 = vmatprep.subr.bf16.mxu0 %v3101
        %3564 = vmatpush1.bf16.msra.mxu0 %v3100
        %3565 = vmatprep.subr.bf16.mxu0 %v3109
        %3566 = vmatpush1.bf16.msra.mxu0 %v3108
        %3567 = vmatprep.subr.bf16.mxu0 %v3117
        %3568 = vmatpush1.bf16.msra.mxu0 %v3116
        %3569 = vmatprep.subr.bf16.mxu0 %v3125
        %3570 = vmatpush1.bf16.msra.mxu0 %v3124
        %3571 = vmatprep.subr.bf16.mxu0 %v3133
        %3572 = vmatpush1.bf16.msra.mxu0 %v3132
        %3573 = vmatprep.subr.bf16.mxu0 %v3141
        %3574 = vmatpush1.bf16.msra.mxu0 %v3140
        %3575 = vmatprep.subr.bf16.mxu0 %v3149
        %3576 = vmatpush1.bf16.msra.mxu0 %v3148
        %3577 = vmatprep.subr.bf16.mxu0 %v3157
        %3578 = vmatpush1.bf16.msra.mxu0 %v3156
        %3579 = vmatprep.subr.bf16.mxu0 %v3165
        %3580 = vmatpush1.bf16.msra.mxu0 %v3164
        %3581 = vmatprep.mubr.bf16.mxu0 %v1847
        %3582 = vmatmul.mubr.bf16.gmra.mrb[0].mxu0 %v1846
        %v3583 = vpop.f32.mrb[0].mxu0
        %v3584 = vadd.f32 %v3543, %v3583
        %v3585 = vpop.f32.mrb[0].mxu0
        %v3586 = vadd.f32 %v3545, %v3585
        %v3587 = vpop.f32.mrb[0].mxu0
        %v3588 = vpop.f32.mrb[0].mxu0
        %3589 = vdwg.mxu0
        %3590 = vmatprep.subr.bf16.mxu0 %v2919
        %3591 = vmatpush1.bf16.msra.mxu0 %v2918
        %3592 = vmatprep.subr.bf16.mxu0 %v2927
        %3593 = vmatpush1.bf16.msra.mxu0 %v2926
        %3594 = vmatprep.subr.bf16.mxu0 %v2935
        %3595 = vmatpush1.bf16.msra.mxu0 %v2934
        %3596 = vmatprep.subr.bf16.mxu0 %v2943
        %3597 = vmatpush1.bf16.msra.mxu0 %v2942
        %3598 = vmatprep.subr.bf16.mxu0 %v2951
        %3599 = vmatpush1.bf16.msra.mxu0 %v2950
        %3600 = vmatprep.subr.bf16.mxu0 %v2959
        %3601 = vmatpush1.bf16.msra.mxu0 %v2958
        %3602 = vmatprep.subr.bf16.mxu0 %v2967
        %3603 = vmatpush1.bf16.msra.mxu0 %v2966
        %3604 = vmatprep.subr.bf16.mxu0 %v2975
        %3605 = vmatpush1.bf16.msra.mxu0 %v2974
        %3606 = vmatprep.subr.bf16.mxu0 %v2983
        %3607 = vmatpush1.bf16.msra.mxu0 %v2982
        %3608 = vmatprep.subr.bf16.mxu0 %v2991
        %3609 = vmatpush1.bf16.msra.mxu0 %v2990
        %3610 = vmatprep.subr.bf16.mxu0 %v2999
        %3611 = vmatpush1.bf16.msra.mxu0 %v2998
        %3612 = vmatprep.subr.bf16.mxu0 %v3007
        %3613 = vmatpush1.bf16.msra.mxu0 %v3006
        %3614 = vmatprep.subr.bf16.mxu0 %v3015
        %3615 = vmatpush1.bf16.msra.mxu0 %v3014
        %3616 = vmatprep.subr.bf16.mxu0 %v3023
        %3617 = vmatpush1.bf16.msra.mxu0 %v3022
        %3618 = vmatprep.subr.bf16.mxu0 %v3031
        %3619 = vmatpush1.bf16.msra.mxu0 %v3030
        %3620 = vmatprep.subr.bf16.mxu0 %v3039
        %3621 = vmatpush1.bf16.msra.mxu0 %v3038
        %3622 = vmatprep.mubr.bf16.mxu0 %v1845
        %3623 = vmatmul.mubr.bf16.gmra.mrb[0].mxu0 %v1844
        %v3624 = vpop.f32.mrb[0].mxu0
        %v3625 = vadd.f32 %v2125, %v3624
        %v3626 = vpop.f32.mrb[0].mxu0
        %v3627 = vadd.f32 %v2129, %v3626
        %v3628 = vpop.f32.mrb[0].mxu0
        %v3629 = vpop.f32.mrb[0].mxu0
        %3630 = vdwg.mxu0
        %3631 = vmatprep.subr.bf16.mxu0 %v3047
        %3632 = vmatpush1.bf16.msra.mxu0 %v3046
        %3633 = vmatprep.subr.bf16.mxu0 %v3055
        %3634 = vmatpush1.bf16.msra.mxu0 %v3054
        %3635 = vmatprep.subr.bf16.mxu0 %v3063
        %3636 = vmatpush1.bf16.msra.mxu0 %v3062
        %3637 = vmatprep.subr.bf16.mxu0 %v3071
        %3638 = vmatpush1.bf16.msra.mxu0 %v3070
        %3639 = vmatprep.subr.bf16.mxu0 %v3079
        %3640 = vmatpush1.bf16.msra.mxu0 %v3078
        %3641 = vmatprep.subr.bf16.mxu0 %v3087
        %3642 = vmatpush1.bf16.msra.mxu0 %v3086
        %3643 = vmatprep.subr.bf16.mxu0 %v3095
        %3644 = vmatpush1.bf16.msra.mxu0 %v3094
        %3645 = vmatprep.subr.bf16.mxu0 %v3103
        %3646 = vmatpush1.bf16.msra.mxu0 %v3102
        %3647 = vmatprep.subr.bf16.mxu0 %v3111
        %3648 = vmatpush1.bf16.msra.mxu0 %v3110
        %3649 = vmatprep.subr.bf16.mxu0 %v3119
        %3650 = vmatpush1.bf16.msra.mxu0 %v3118
        %3651 = vmatprep.subr.bf16.mxu0 %v3127
        %3652 = vmatpush1.bf16.msra.mxu0 %v3126
        %3653 = vmatprep.subr.bf16.mxu0 %v3135
        %3654 = vmatpush1.bf16.msra.mxu0 %v3134
        %3655 = vmatprep.subr.bf16.mxu0 %v3143
        %3656 = vmatpush1.bf16.msra.mxu0 %v3142
        %3657 = vmatprep.subr.bf16.mxu0 %v3151
        %3658 = vmatpush1.bf16.msra.mxu0 %v3150
        %3659 = vmatprep.subr.bf16.mxu0 %v3159
        %3660 = vmatpush1.bf16.msra.mxu0 %v3158
        %3661 = vmatprep.subr.bf16.mxu0 %v3167
        %3662 = vmatpush1.bf16.msra.mxu0 %v3166
        %3663 = vmatprep.mubr.bf16.mxu0 %v1847
        %3664 = vmatmul.mubr.bf16.gmra.mrb[0].mxu0 %v1846
        %v3665 = vpop.f32.mrb[0].mxu0
        %v3666 = vadd.f32 %v3625, %v3665
        %v3667 = vpop.f32.mrb[0].mxu0
        %v3668 = vadd.f32 %v3627, %v3667
        %v3669 = vpop.f32.mrb[0].mxu0
        %v3670 = vpop.f32.mrb[0].mxu0
        %3671 = vdwg.mxu0
        %3672 = vmatprep.subr.bf16.mxu0 %v2921
        %3673 = vmatpush1.bf16.msra.mxu0 %v2920
        %3674 = vmatprep.subr.bf16.mxu0 %v2929
        %3675 = vmatpush1.bf16.msra.mxu0 %v2928
        %3676 = vmatprep.subr.bf16.mxu0 %v2937
        %3677 = vmatpush1.bf16.msra.mxu0 %v2936
        %3678 = vmatprep.subr.bf16.mxu0 %v2945
        %3679 = vmatpush1.bf16.msra.mxu0 %v2944
        %3680 = vmatprep.subr.bf16.mxu0 %v2953
        %3681 = vmatpush1.bf16.msra.mxu0 %v2952
        %3682 = vmatprep.subr.bf16.mxu0 %v2961
        %3683 = vmatpush1.bf16.msra.mxu0 %v2960
        %3684 = vmatprep.subr.bf16.mxu0 %v2969
        %3685 = vmatpush1.bf16.msra.mxu0 %v2968
        %3686 = vmatprep.subr.bf16.mxu0 %v2977
        %3687 = vmatpush1.bf16.msra.mxu0 %v2976
        %3688 = vmatprep.subr.bf16.mxu0 %v2985
        %3689 = vmatpush1.bf16.msra.mxu0 %v2984
        %3690 = vmatprep.subr.bf16.mxu0 %v2993
        %3691 = vmatpush1.bf16.msra.mxu0 %v2992
        %3692 = vmatprep.subr.bf16.mxu0 %v3001
        %3693 = vmatpush1.bf16.msra.mxu0 %v3000
        %3694 = vmatprep.subr.bf16.mxu0 %v3009
        %3695 = vmatpush1.bf16.msra.mxu0 %v3008
        %3696 = vmatprep.subr.bf16.mxu0 %v3017
        %3697 = vmatpush1.bf16.msra.mxu0 %v3016
        %3698 = vmatprep.subr.bf16.mxu0 %v3025
        %3699 = vmatpush1.bf16.msra.mxu0 %v3024
        %3700 = vmatprep.subr.bf16.mxu0 %v3033
        %3701 = vmatpush1.bf16.msra.mxu0 %v3032
        %3702 = vmatprep.subr.bf16.mxu0 %v3041
        %3703 = vmatpush1.bf16.msra.mxu0 %v3040
        %3704 = vmatprep.mubr.bf16.mxu0 %v1845
        %3705 = vmatmul.mubr.bf16.gmra.mrb[0].mxu0 %v1844
        %v3706 = vpop.f32.mrb[0].mxu0
        %v3707 = vadd.f32 %v2133, %v3706
        %v3708 = vpop.f32.mrb[0].mxu0
        %v3709 = vadd.f32 %v2137, %v3708
        %v3710 = vpop.f32.mrb[0].mxu0
        %v3711 = vpop.f32.mrb[0].mxu0
        %3712 = vdwg.mxu0
        %3713 = vmatprep.subr.bf16.mxu0 %v3049
        %3714 = vmatpush1.bf16.msra.mxu0 %v3048
        %3715 = vmatprep.subr.bf16.mxu0 %v3057
        %3716 = vmatpush1.bf16.msra.mxu0 %v3056
        %3717 = vmatprep.subr.bf16.mxu0 %v3065
        %3718 = vmatpush1.bf16.msra.mxu0 %v3064
        %3719 = vmatprep.subr.bf16.mxu0 %v3073
        %3720 = vmatpush1.bf16.msra.mxu0 %v3072
        %3721 = vmatprep.subr.bf16.mxu0 %v3081
        %3722 = vmatpush1.bf16.msra.mxu0 %v3080
        %3723 = vmatprep.subr.bf16.mxu0 %v3089
        %3724 = vmatpush1.bf16.msra.mxu0 %v3088
        %3725 = vmatprep.subr.bf16.mxu0 %v3097
        %3726 = vmatpush1.bf16.msra.mxu0 %v3096
        %3727 = vmatprep.subr.bf16.mxu0 %v3105
        %3728 = vmatpush1.bf16.msra.mxu0 %v3104
        %3729 = vmatprep.subr.bf16.mxu0 %v3113
        %3730 = vmatpush1.bf16.msra.mxu0 %v3112
        %3731 = vmatprep.subr.bf16.mxu0 %v3121
        %3732 = vmatpush1.bf16.msra.mxu0 %v3120
        %3733 = vmatprep.subr.bf16.mxu0 %v3129
        %3734 = vmatpush1.bf16.msra.mxu0 %v3128
        %3735 = vmatprep.subr.bf16.mxu0 %v3137
        %3736 = vmatpush1.bf16.msra.mxu0 %v3136
        %3737 = vmatprep.subr.bf16.mxu0 %v3145
        %3738 = vmatpush1.bf16.msra.mxu0 %v3144
        %3739 = vmatprep.subr.bf16.mxu0 %v3153
        %3740 = vmatpush1.bf16.msra.mxu0 %v3152
        %3741 = vmatprep.subr.bf16.mxu0 %v3161
        %3742 = vmatpush1.bf16.msra.mxu0 %v3160
        %3743 = vmatprep.subr.bf16.mxu0 %v3169
        %3744 = vmatpush1.bf16.msra.mxu0 %v3168
        %3745 = vmatprep.mubr.bf16.mxu0 %v1847
        %3746 = vmatmul.mubr.bf16.gmra.mrb[0].mxu0 %v1846
        %v3747 = vpop.f32.mrb[0].mxu0
        %v3748 = vadd.f32 %v3707, %v3747
        %v3749 = vpop.f32.mrb[0].mxu0
        %v3750 = vadd.f32 %v3709, %v3749
        %v3751 = vpop.f32.mrb[0].mxu0
        %v3752 = vpop.f32.mrb[0].mxu0
        %3753 = vdwg.mxu0
        %v3754 = vmax.f32 %v3502, 0.0
        %v3755 = vmax.f32 %v3504, 0.0
        %v3756 = vmax.f32 %v3584, 0.0
        %v3757 = vmax.f32 %v3586, 0.0
        %v3758 = vmax.f32 %v3666, 0.0
        %v3759 = vmax.f32 %v3668, 0.0
        %v3760 = vmax.f32 %v3748, 0.0
        %v3761 = vmax.f32 %v3750, 0.0
        %3762 = vst [vmem:[%s828] sm:$0xff] %v3754
        %3763 = vst [vmem:[%s828 + $0x8] sm:$0xff] %v3755
        %3764 = vst [vmem:[%s828 + $0x10] sm:$0xff] %v3756
        %3765 = vst [vmem:[%s828 + $0x18] sm:$0xff] %v3757
        %3766 = vst [vmem:[%s828 + $0x20] sm:$0xff] %v3758
        %3767 = vst [vmem:[%s828 + $0x28] sm:$0xff] %v3759
        %3768 = vst [vmem:[%s828 + $0x30] sm:$0xff] %v3760
        %3769 = vst [vmem:[%s828 + $0x38] sm:$0xff] %v3761
        %s3770 = smul.u32 8, %s18
        %p3771 = scmp.lt.s32.totalorder %s3770, 31
        %s3772 = scalar_select %p3771, %s3770, 31
        %s3773 = smul.addr %s3772, 8
        %s3774 = scalar_lea.vmem %s7, %s3773
        // Predicated region
        $region72: #{s2i_sid_forward.1} parent=66 // pred_check
          %p3775 = pneg %p193
        $region73: #{s2i_sid_forward.1} parent=66 // pred_check_branch
          %3777 = sbr.rel (%p3775) target = $region75
        $region74: #{s2i_sid_forward.1} parent=66 // pred_region
          %s3778 = smul.u32 8, %s18
        $region75: #{s2i_sid_forward.1} parent=66 // pred_fallthru
          _
      $region67: #{s2i_sid_forward.1} parent=5 // pred_fallthru
        _
      %p3779 = scmp.le.s32.totalorder 2, %s13
      // Predicated region
      $region76: #{s2i_sid_forward.1} parent=5 // pred_check
        %p3780 = pneg %p3779
      $region77: #{s2i_sid_forward.1} parent=5 // pred_check_branch
        %3782 = sbr.rel (%p3780) target = $region79
      $region78: #{s2i_sid_forward.1} parent=5 // pred_region
        %s3783 = ssub.s32 %s13, 2
        // Predicated region
        $region80: #{s2i_sid_forward.1} parent=78 // pred_check
          %p3784 = pneg %p199
        $region81: #{s2i_sid_forward.1} parent=78 // pred_check_branch
          %3786 = sbr.rel (%p3784) target = $region83
        $region82: #{s2i_sid_forward.1} parent=78 // pred_region
          %s3787 = smul.u32 8, %s19
          %p3788 = scmp.lt.s32.totalorder %s3787, 31
          %s3789 = scalar_select %p3788, %s3787, 31
          %s3790 = smul.addr %s3789, 8
          %s3791 = scalar_lea.vmem %s7, %s3790
        $region83: #{s2i_sid_forward.1} parent=78 // pred_fallthru
          _
      $region79: #{s2i_sid_forward.1} parent=5 // pred_fallthru
        _
    $region6: #{s2i_sid_forward.1} parent=1 // loop_footer
      %s17 = sadd.s32 1, %s13
    $region7: #{s2i_sid_forward.1} parent=1 // loop_footer_branch
      %12 = sbr.rel target = $region3
    $region8: #{s2i_sid_forward.1} parent=1 // loop_exit
      _

</llo_original>
